<compile_context>
chip_gen: v6e
topology: v6e:2x2x1
jax: 0.10.0
libtpu: 0.0.40
codegen_flags: <defaults>
</compile_context>

<pallas_src>
import functools

import jax
import jax.numpy as jnp
import numpy as np
from jax import lax
from jax.experimental import pallas as pl
from jax.experimental.pallas import tpu as pltpu


def _basic_block_kernel(x_ref, w1_ref, w2_ref, b1_ref, b2_ref, o_ref,
                        xp1_ref, xp2_ref):
    """Fused BasicBlock forward for one batch element.

    x_ref  : (1, H*W, Cin) f32  input activations (also the residual)
    w1_ref : (3, 3, Cin, C) bf16 conv1 weights, BN1 scale pre-folded
    w2_ref : (3, 3, C,   C) bf16 conv2 weights, BN2 scale pre-folded
    b1_ref : (1, C) f32  folded BN1 bias
    b2_ref : (1, C) f32  folded BN2 bias
    o_ref  : (1, H*W, C) f32  output
    xp1_ref: (H+2, W+2, Cin) f32 VMEM scratch — zero-padded conv1 input
    xp2_ref: (H+2, W+2, C)   f32 VMEM scratch — zero-padded conv2 input
    """
    Hp, Wp, Cin = xp1_ref.shape
    H, W = Hp - 2, Wp - 2
    Cout = o_ref.shape[2]

    def conv3x3(xp_ref, w_ref, cin, cout):
        # 3x3 conv as 9 shifted matmuls on the VMEM-resident padded scratch.
        # Operands are fed to the MXU in bf16, accumulation stays in f32.
        acc = jnp.zeros((H * W, cout), jnp.float32)
        for ky in range(3):
            for kx in range(3):
                patch = xp_ref[ky:ky + H, kx:kx + W, :]
                patch = patch.reshape(H * W, cin).astype(jnp.bfloat16)
                acc += jnp.dot(patch, w_ref[ky, kx],
                               preferred_element_type=jnp.float32)
        return acc

    # ---- conv1 + (folded) bn1 + relu; intermediate never leaves VMEM ----
    xp1_ref[...] = jnp.zeros_like(xp1_ref)
    xp1_ref[1:H + 1, 1:W + 1, :] = x_ref[0].reshape(H, W, Cin)
    h1 = jnp.maximum(conv3x3(xp1_ref, w1_ref, Cin, Cout) + b1_ref[...], 0.0)

    # ---- conv2 + (folded) bn2 + residual + relu ----
    xp2_ref[...] = jnp.zeros_like(xp2_ref)
    xp2_ref[1:H + 1, 1:W + 1, :] = h1.reshape(H, W, Cout)
    out = conv3x3(xp2_ref, w2_ref, Cout, Cout) + b2_ref[...] + x_ref[0]
    o_ref[0] = jnp.maximum(out, 0.0).astype(o_ref.dtype)


def _fold_bn(gamma, beta, mean, var, eps=1e-5):
    scale = gamma / jnp.sqrt(var + eps)
    bias = beta - mean * scale
    return scale, bias


def basic_block_forward(x_nchw, params):
    """BasicBlock forward (stride=1, downsample=None), PyTorch semantics.

    Eval-mode BatchNorm folded into weights/bias; MXU operands in bf16,
    accumulation and all elementwise math (bias, residual, ReLU) in f32.
    """
    N, C, H, W = x_nchw.shape
    w1, w2 = params["w1_hwio"], params["w2_hwio"]
    Cin, Cout = w1.shape[2], w1.shape[3]
    assert Cin == C and Cin == Cout, "stride=1 / no-downsample BasicBlock"

    s1, b1 = _fold_bn(params["bn1_gamma"], params["bn1_beta"],
                      params["bn1_mean"], params["bn1_var"])
    s2, b2 = _fold_bn(params["bn2_gamma"], params["bn2_beta"],
                      params["bn2_mean"], params["bn2_var"])

    # Fold BN scale into the conv weights; hand the MXU bf16 weights.
    w1f = (w1 * s1).astype(jnp.bfloat16)
    w2f = (w2 * s2).astype(jnp.bfloat16)
    b1 = b1.reshape(1, Cout).astype(jnp.float32)
    b2 = b2.reshape(1, Cout).astype(jnp.float32)

    # NCHW -> NHWC -> flat (N, H*W, C): the (rows, channels) layout the kernel
    # computes in, so input / residual / output need no in-kernel reshapes.
    x = jnp.transpose(x_nchw, (0, 2, 3, 1)).reshape(N, H * W, C)

    out = pl.pallas_call(
        _basic_block_kernel,
        out_shape=jax.ShapeDtypeStruct((N, H * W, Cout), x_nchw.dtype),
        grid_spec=pltpu.PrefetchScalarGridSpec(
            num_scalar_prefetch=0,
            grid=(N,),
            in_specs=[
                pl.BlockSpec((1, H * W, Cin), lambda n: (n, 0, 0)),
                pl.BlockSpec((3, 3, Cin, Cout), lambda n: (0, 0, 0, 0)),
                pl.BlockSpec((3, 3, Cout, Cout), lambda n: (0, 0, 0, 0)),
                pl.BlockSpec((1, Cout), lambda n: (0, 0)),
                pl.BlockSpec((1, Cout), lambda n: (0, 0)),
            ],
            out_specs=pl.BlockSpec((1, H * W, Cout), lambda n: (n, 0, 0)),
            scratch_shapes=[
                pltpu.VMEM((H + 2, W + 2, Cin), jnp.float32),
                pltpu.VMEM((H + 2, W + 2, Cout), jnp.float32),
            ],
        ),
        compiler_params=pltpu.CompilerParams(
            dimension_semantics=("parallel",)),
    )(x, w1f, w2f, b1, b2)

    return jnp.transpose(out.reshape(N, H, W, Cout), (0, 3, 1, 2))


def _reference_forward(x_nchw, params):
    """Pure-JAX reference with the same bf16-operand / f32-accumulate numerics."""
    x = jnp.transpose(x_nchw, (0, 2, 3, 1))
    s1, b1 = _fold_bn(params["bn1_gamma"], params["bn1_beta"],
                      params["bn1_mean"], params["bn1_var"])
    s2, b2 = _fold_bn(params["bn2_gamma"], params["bn2_beta"],
                      params["bn2_mean"], params["bn2_var"])
    w1f = (params["w1_hwio"] * s1).astype(jnp.bfloat16)
    w2f = (params["w2_hwio"] * s2).astype(jnp.bfloat16)

    def conv(inp, w):
        return lax.conv_general_dilated(
            inp.astype(jnp.bfloat16), w, window_strides=(1, 1), padding="SAME",
            dimension_numbers=("NHWC", "HWIO", "NHWC"),
            preferred_element_type=jnp.float32)

    h = jnp.maximum(conv(x, w1f) + b1, 0.0)
    out = jnp.maximum(conv(h, w2f) + b2 + x, 0.0)
    return jnp.transpose(out, (0, 3, 1, 2))


if __name__ == "__main__":
    # Small shapes consistent with BasicBlock(inplanes=4, planes=4, stride=1).
    N, C, H, W = 2, 4, 16, 16
    inplanes = planes = C

    key = jax.random.PRNGKey(0)
    ks = jax.random.split(key, 8)

    x = jax.random.normal(ks[0], (N, C, H, W), dtype=jnp.float32)

    # Conv weights (PyTorch OIHW layout -> HWIO for the kernels).
    w1_oihw = 0.1 * jax.random.normal(ks[1], (planes, inplanes, 3, 3), jnp.float32)
    w2_oihw = 0.1 * jax.random.normal(ks[2], (planes, planes, 3, 3), jnp.float32)
    params = {
        "w1_hwio": jnp.transpose(w1_oihw, (2, 3, 1, 0)),
        "w2_hwio": jnp.transpose(w2_oihw, (2, 3, 1, 0)),
        "bn1_gamma": 1.0 + 0.1 * jax.random.normal(ks[3], (planes,), jnp.float32),
        "bn1_beta": 0.1 * jax.random.normal(ks[4], (planes,), jnp.float32),
        "bn1_mean": 0.05 * jax.random.normal(ks[5], (planes,), jnp.float32),
        "bn1_var": jnp.abs(1.0 + 0.1 * jax.random.normal(ks[6], (planes,), jnp.float32)),
        "bn2_gamma": 1.0 + 0.1 * jax.random.normal(ks[7], (planes,), jnp.float32),
        "bn2_beta": jnp.linspace(-0.1, 0.1, planes, dtype=jnp.float32),
        "bn2_mean": jnp.linspace(-0.05, 0.05, planes, dtype=jnp.float32),
        "bn2_var": jnp.linspace(0.9, 1.1, planes, dtype=jnp.float32),
    }

    fwd = jax.jit(functools.partial(basic_block_forward, params=params))
    out = jax.block_until_ready(fwd(x))

    ref = jax.block_until_ready(_reference_forward(x, params))
    np.testing.assert_allclose(np.asarray(out), np.asarray(ref),
                               rtol=2e-3, atol=2e-3)

    print("KERNEL_OK")
</pallas_src>

<mosaic_0001>
module attributes {stable_mosaic.version = 11 : i64} {
  func.func @_basic_block_kernel(%arg0: i32, %arg1: memref<1x256x4xf32, #tpu.memory_space<vmem>>, %arg2: memref<3x3x4x4xbf16, #tpu.memory_space<vmem>>, %arg3: memref<3x3x4x4xbf16, #tpu.memory_space<vmem>>, %arg4: memref<1x4xf32, #tpu.memory_space<vmem>>, %arg5: memref<1x4xf32, #tpu.memory_space<vmem>>, %arg6: memref<1x256x4xf32, #tpu.memory_space<vmem>>, %arg7: memref<18x18x4xf32, #tpu.memory_space<vmem>>, %arg8: memref<18x18x4xf32, #tpu.memory_space<vmem>>) attributes {dimension_semantics = [#tpu.dimension_semantics<parallel>], iteration_bounds = array<i64: 2>, scalar_prefetch = 0 : i64, scratch_operands = 2 : i64, tpu.core_type = #tpu.core_type<tc>, window_params = [{transform_indices = @transform_0, window_bounds = array<i64: 1, 256, 4>}, {pipeline_mode = #tpu.pipeline_mode<synchronous>, transform_indices = @transform_1, window_bounds = array<i64: 3, 3, 4, 4>}, {pipeline_mode = #tpu.pipeline_mode<synchronous>, transform_indices = @transform_2, window_bounds = array<i64: 3, 3, 4, 4>}, {pipeline_mode = #tpu.pipeline_mode<synchronous>, transform_indices = @transform_3, window_bounds = array<i64: 1, 4>}, {pipeline_mode = #tpu.pipeline_mode<synchronous>, transform_indices = @transform_4, window_bounds = array<i64: 1, 4>}, {transform_indices = @transform_5, window_bounds = array<i64: 1, 256, 4>}]} {
    %cst = arith.constant 0.000000e+00 : f32
    %0 = vector.broadcast %cst : f32 to vector<18x18x4xf32>
    %c0 = arith.constant 0 : index
    %c0_0 = arith.constant 0 : index
    %c0_1 = arith.constant 0 : index
    %1 = vector.load %arg7[%c0, %c0_0, %c0_1] : memref<18x18x4xf32, #tpu.memory_space<vmem>>, vector<18x18x4xf32>
    tpu.vector_store %arg7[%c0, %c0_0, %c0_1], %0 {strides = array<i32>} : memref<18x18x4xf32, #tpu.memory_space<vmem>>, vector<18x18x4xf32>,
    %c0_2 = arith.constant 0 : index
    %c0_3 = arith.constant 0 : index
    %c0_4 = arith.constant 0 : index
    %2 = vector.load %arg1[%c0_2, %c0_3, %c0_4] : memref<1x256x4xf32, #tpu.memory_space<vmem>>, vector<1x256x4xf32>
    %3 = vector.shape_cast %2 : vector<1x256x4xf32> to vector<256x4xf32>
    %4 = vector.shape_cast %3 : vector<256x4xf32> to vector<16x16x4xf32>
    %c1 = arith.constant 1 : index
    %c1_5 = arith.constant 1 : index
    %c0_6 = arith.constant 0 : index
    %5 = vector.load %arg7[%c1, %c1_5, %c0_6] : memref<18x18x4xf32, #tpu.memory_space<vmem>>, vector<16x16x4xf32>
    tpu.vector_store %arg7[%c1, %c1_5, %c0_6], %4 {strides = array<i32>} : memref<18x18x4xf32, #tpu.memory_space<vmem>>, vector<16x16x4xf32>,
    %cst_7 = arith.constant 0.000000e+00 : f32
    %6 = vector.broadcast %cst_7 : f32 to vector<256x4xf32>
    %c0_8 = arith.constant 0 : index
    %c0_9 = arith.constant 0 : index
    %c0_10 = arith.constant 0 : index
    %7 = vector.load %arg7[%c0_8, %c0_9, %c0_10] : memref<18x18x4xf32, #tpu.memory_space<vmem>>, vector<16x16x4xf32>
    %8 = vector.shape_cast %7 : vector<16x16x4xf32> to vector<256x4xf32>
    %9 = arith.truncf %8 : vector<256x4xf32> to vector<256x4xbf16>
    %c0_11 = arith.constant 0 : index
    %c0_12 = arith.constant 0 : index
    %c0_13 = arith.constant 0 : index
    %c0_14 = arith.constant 0 : index
    %10 = vector.load %arg2[%c0_11, %c0_12, %c0_13, %c0_14] : memref<3x3x4x4xbf16, #tpu.memory_space<vmem>>, vector<1x1x4x4xbf16>
    %11 = vector.shape_cast %10 : vector<1x1x4x4xbf16> to vector<4x4xbf16>
    %cst_15 = arith.constant dense<0.000000e+00> : vector<256x4xf32>
    %12 = tpu.matmul %9, %11, %cst_15 {dimension_numbers = #tpu.dot_dimension_numbers<[1], [0], [0], [1], [0, 0, 1, 1], [], []>} : vector<256x4xbf16>, vector<4x4xbf16>, vector<256x4xf32> -> vector<256x4xf32>
    %13 = arith.addf %6, %12 : vector<256x4xf32>
    %c0_16 = arith.constant 0 : index
    %c1_17 = arith.constant 1 : index
    %c0_18 = arith.constant 0 : index
    %14 = vector.load %arg7[%c0_16, %c1_17, %c0_18] : memref<18x18x4xf32, #tpu.memory_space<vmem>>, vector<16x16x4xf32>
    %15 = vector.shape_cast %14 : vector<16x16x4xf32> to vector<256x4xf32>
    %16 = arith.truncf %15 : vector<256x4xf32> to vector<256x4xbf16>
    %c0_19 = arith.constant 0 : index
    %c1_20 = arith.constant 1 : index
    %c0_21 = arith.constant 0 : index
    %c0_22 = arith.constant 0 : index
    %17 = vector.load %arg2[%c0_19, %c1_20, %c0_21, %c0_22] : memref<3x3x4x4xbf16, #tpu.memory_space<vmem>>, vector<1x1x4x4xbf16>
    %18 = vector.shape_cast %17 : vector<1x1x4x4xbf16> to vector<4x4xbf16>
    %cst_23 = arith.constant dense<0.000000e+00> : vector<256x4xf32>
    %19 = tpu.matmul %16, %18, %cst_23 {dimension_numbers = #tpu.dot_dimension_numbers<[1], [0], [0], [1], [0, 0, 1, 1], [], []>} : vector<256x4xbf16>, vector<4x4xbf16>, vector<256x4xf32> -> vector<256x4xf32>
    %20 = arith.addf %13, %19 : vector<256x4xf32>
    %c0_24 = arith.constant 0 : index
    %c2 = arith.constant 2 : index
    %c0_25 = arith.constant 0 : index
    %21 = vector.load %arg7[%c0_24, %c2, %c0_25] : memref<18x18x4xf32, #tpu.memory_space<vmem>>, vector<16x16x4xf32>
    %22 = vector.shape_cast %21 : vector<16x16x4xf32> to vector<256x4xf32>
    %23 = arith.truncf %22 : vector<256x4xf32> to vector<256x4xbf16>
    %c0_26 = arith.constant 0 : index
    %c2_27 = arith.constant 2 : index
    %c0_28 = arith.constant 0 : index
    %c0_29 = arith.constant 0 : index
    %24 = vector.load %arg2[%c0_26, %c2_27, %c0_28, %c0_29] : memref<3x3x4x4xbf16, #tpu.memory_space<vmem>>, vector<1x1x4x4xbf16>
    %25 = vector.shape_cast %24 : vector<1x1x4x4xbf16> to vector<4x4xbf16>
    %cst_30 = arith.constant dense<0.000000e+00> : vector<256x4xf32>
    %26 = tpu.matmul %23, %25, %cst_30 {dimension_numbers = #tpu.dot_dimension_numbers<[1], [0], [0], [1], [0, 0, 1, 1], [], []>} : vector<256x4xbf16>, vector<4x4xbf16>, vector<256x4xf32> -> vector<256x4xf32>
    %27 = arith.addf %20, %26 : vector<256x4xf32>
    %c1_31 = arith.constant 1 : index
    %c0_32 = arith.constant 0 : index
    %c0_33 = arith.constant 0 : index
    %28 = vector.load %arg7[%c1_31, %c0_32, %c0_33] : memref<18x18x4xf32, #tpu.memory_space<vmem>>, vector<16x16x4xf32>
    %29 = vector.shape_cast %28 : vector<16x16x4xf32> to vector<256x4xf32>
    %30 = arith.truncf %29 : vector<256x4xf32> to vector<256x4xbf16>
    %c1_34 = arith.constant 1 : index
    %c0_35 = arith.constant 0 : index
    %c0_36 = arith.constant 0 : index
    %c0_37 = arith.constant 0 : index
    %31 = vector.load %arg2[%c1_34, %c0_35, %c0_36, %c0_37] : memref<3x3x4x4xbf16, #tpu.memory_space<vmem>>, vector<1x1x4x4xbf16>
    %32 = vector.shape_cast %31 : vector<1x1x4x4xbf16> to vector<4x4xbf16>
    %cst_38 = arith.constant dense<0.000000e+00> : vector<256x4xf32>
    %33 = tpu.matmul %30, %32, %cst_38 {dimension_numbers = #tpu.dot_dimension_numbers<[1], [0], [0], [1], [0, 0, 1, 1], [], []>} : vector<256x4xbf16>, vector<4x4xbf16>, vector<256x4xf32> -> vector<256x4xf32>
    %34 = arith.addf %27, %33 : vector<256x4xf32>
    %c1_39 = arith.constant 1 : index
    %c1_40 = arith.constant 1 : index
    %c0_41 = arith.constant 0 : index
    %35 = vector.load %arg7[%c1_39, %c1_40, %c0_41] : memref<18x18x4xf32, #tpu.memory_space<vmem>>, vector<16x16x4xf32>
    %36 = vector.shape_cast %35 : vector<16x16x4xf32> to vector<256x4xf32>
    %37 = arith.truncf %36 : vector<256x4xf32> to vector<256x4xbf16>
    %c1_42 = arith.constant 1 : index
    %c1_43 = arith.constant 1 : index
    %c0_44 = arith.constant 0 : index
    %c0_45 = arith.constant 0 : index
    %38 = vector.load %arg2[%c1_42, %c1_43, %c0_44, %c0_45] : memref<3x3x4x4xbf16, #tpu.memory_space<vmem>>, vector<1x1x4x4xbf16>
    %39 = vector.shape_cast %38 : vector<1x1x4x4xbf16> to vector<4x4xbf16>
    %cst_46 = arith.constant dense<0.000000e+00> : vector<256x4xf32>
    %40 = tpu.matmul %37, %39, %cst_46 {dimension_numbers = #tpu.dot_dimension_numbers<[1], [0], [0], [1], [0, 0, 1, 1], [], []>} : vector<256x4xbf16>, vector<4x4xbf16>, vector<256x4xf32> -> vector<256x4xf32>
    %41 = arith.addf %34, %40 : vector<256x4xf32>
    %c1_47 = arith.constant 1 : index
    %c2_48 = arith.constant 2 : index
    %c0_49 = arith.constant 0 : index
    %42 = vector.load %arg7[%c1_47, %c2_48, %c0_49] : memref<18x18x4xf32, #tpu.memory_space<vmem>>, vector<16x16x4xf32>
    %43 = vector.shape_cast %42 : vector<16x16x4xf32> to vector<256x4xf32>
    %44 = arith.truncf %43 : vector<256x4xf32> to vector<256x4xbf16>
    %c1_50 = arith.constant 1 : index
    %c2_51 = arith.constant 2 : index
    %c0_52 = arith.constant 0 : index
    %c0_53 = arith.constant 0 : index
    %45 = vector.load %arg2[%c1_50, %c2_51, %c0_52, %c0_53] : memref<3x3x4x4xbf16, #tpu.memory_space<vmem>>, vector<1x1x4x4xbf16>
    %46 = vector.shape_cast %45 : vector<1x1x4x4xbf16> to vector<4x4xbf16>
    %cst_54 = arith.constant dense<0.000000e+00> : vector<256x4xf32>
    %47 = tpu.matmul %44, %46, %cst_54 {dimension_numbers = #tpu.dot_dimension_numbers<[1], [0], [0], [1], [0, 0, 1, 1], [], []>} : vector<256x4xbf16>, vector<4x4xbf16>, vector<256x4xf32> -> vector<256x4xf32>
    %48 = arith.addf %41, %47 : vector<256x4xf32>
    %c2_55 = arith.constant 2 : index
    %c0_56 = arith.constant 0 : index
    %c0_57 = arith.constant 0 : index
    %49 = vector.load %arg7[%c2_55, %c0_56, %c0_57] : memref<18x18x4xf32, #tpu.memory_space<vmem>>, vector<16x16x4xf32>
    %50 = vector.shape_cast %49 : vector<16x16x4xf32> to vector<256x4xf32>
    %51 = arith.truncf %50 : vector<256x4xf32> to vector<256x4xbf16>
    %c2_58 = arith.constant 2 : index
    %c0_59 = arith.constant 0 : index
    %c0_60 = arith.constant 0 : index
    %c0_61 = arith.constant 0 : index
    %52 = vector.load %arg2[%c2_58, %c0_59, %c0_60, %c0_61] : memref<3x3x4x4xbf16, #tpu.memory_space<vmem>>, vector<1x1x4x4xbf16>
    %53 = vector.shape_cast %52 : vector<1x1x4x4xbf16> to vector<4x4xbf16>
    %cst_62 = arith.constant dense<0.000000e+00> : vector<256x4xf32>
    %54 = tpu.matmul %51, %53, %cst_62 {dimension_numbers = #tpu.dot_dimension_numbers<[1], [0], [0], [1], [0, 0, 1, 1], [], []>} : vector<256x4xbf16>, vector<4x4xbf16>, vector<256x4xf32> -> vector<256x4xf32>
    %55 = arith.addf %48, %54 : vector<256x4xf32>
    %c2_63 = arith.constant 2 : index
    %c1_64 = arith.constant 1 : index
    %c0_65 = arith.constant 0 : index
    %56 = vector.load %arg7[%c2_63, %c1_64, %c0_65] : memref<18x18x4xf32, #tpu.memory_space<vmem>>, vector<16x16x4xf32>
    %57 = vector.shape_cast %56 : vector<16x16x4xf32> to vector<256x4xf32>
    %58 = arith.truncf %57 : vector<256x4xf32> to vector<256x4xbf16>
    %c2_66 = arith.constant 2 : index
    %c1_67 = arith.constant 1 : index
    %c0_68 = arith.constant 0 : index
    %c0_69 = arith.constant 0 : index
    %59 = vector.load %arg2[%c2_66, %c1_67, %c0_68, %c0_69] : memref<3x3x4x4xbf16, #tpu.memory_space<vmem>>, vector<1x1x4x4xbf16>
    %60 = vector.shape_cast %59 : vector<1x1x4x4xbf16> to vector<4x4xbf16>
    %cst_70 = arith.constant dense<0.000000e+00> : vector<256x4xf32>
    %61 = tpu.matmul %58, %60, %cst_70 {dimension_numbers = #tpu.dot_dimension_numbers<[1], [0], [0], [1], [0, 0, 1, 1], [], []>} : vector<256x4xbf16>, vector<4x4xbf16>, vector<256x4xf32> -> vector<256x4xf32>
    %62 = arith.addf %55, %61 : vector<256x4xf32>
    %c2_71 = arith.constant 2 : index
    %c2_72 = arith.constant 2 : index
    %c0_73 = arith.constant 0 : index
    %63 = vector.load %arg7[%c2_71, %c2_72, %c0_73] : memref<18x18x4xf32, #tpu.memory_space<vmem>>, vector<16x16x4xf32>
    %64 = vector.shape_cast %63 : vector<16x16x4xf32> to vector<256x4xf32>
    %65 = arith.truncf %64 : vector<256x4xf32> to vector<256x4xbf16>
    %c2_74 = arith.constant 2 : index
    %c2_75 = arith.constant 2 : index
    %c0_76 = arith.constant 0 : index
    %c0_77 = arith.constant 0 : index
    %66 = vector.load %arg2[%c2_74, %c2_75, %c0_76, %c0_77] : memref<3x3x4x4xbf16, #tpu.memory_space<vmem>>, vector<1x1x4x4xbf16>
    %67 = vector.shape_cast %66 : vector<1x1x4x4xbf16> to vector<4x4xbf16>
    %cst_78 = arith.constant dense<0.000000e+00> : vector<256x4xf32>
    %68 = tpu.matmul %65, %67, %cst_78 {dimension_numbers = #tpu.dot_dimension_numbers<[1], [0], [0], [1], [0, 0, 1, 1], [], []>} : vector<256x4xbf16>, vector<4x4xbf16>, vector<256x4xf32> -> vector<256x4xf32>
    %69 = arith.addf %62, %68 : vector<256x4xf32>
    %c0_79 = arith.constant 0 : index
    %c0_80 = arith.constant 0 : index
    %70 = vector.load %arg4[%c0_79, %c0_80] : memref<1x4xf32, #tpu.memory_space<vmem>>, vector<1x4xf32>
    %71 = vector.broadcast %70 : vector<1x4xf32> to vector<256x4xf32>
    %72 = arith.addf %69, %71 : vector<256x4xf32>
    %cst_81 = arith.constant 0.000000e+00 : f32
    %73 = vector.broadcast %cst_81 : f32 to vector<256x4xf32>
    %74 = arith.maximumf %72, %73 : vector<256x4xf32>
    %cst_82 = arith.constant 0.000000e+00 : f32
    %75 = vector.broadcast %cst_82 : f32 to vector<18x18x4xf32>
    %c0_83 = arith.constant 0 : index
    %c0_84 = arith.constant 0 : index
    %c0_85 = arith.constant 0 : index
    %76 = vector.load %arg8[%c0_83, %c0_84, %c0_85] : memref<18x18x4xf32, #tpu.memory_space<vmem>>, vector<18x18x4xf32>
    tpu.vector_store %arg8[%c0_83, %c0_84, %c0_85], %75 {strides = array<i32>} : memref<18x18x4xf32, #tpu.memory_space<vmem>>, vector<18x18x4xf32>,
    %77 = vector.shape_cast %74 : vector<256x4xf32> to vector<16x16x4xf32>
    %c1_86 = arith.constant 1 : index
    %c1_87 = arith.constant 1 : index
    %c0_88 = arith.constant 0 : index
    %78 = vector.load %arg8[%c1_86, %c1_87, %c0_88] : memref<18x18x4xf32, #tpu.memory_space<vmem>>, vector<16x16x4xf32>
    tpu.vector_store %arg8[%c1_86, %c1_87, %c0_88], %77 {strides = array<i32>} : memref<18x18x4xf32, #tpu.memory_space<vmem>>, vector<16x16x4xf32>,
    %cst_89 = arith.constant 0.000000e+00 : f32
    %79 = vector.broadcast %cst_89 : f32 to vector<256x4xf32>
    %c0_90 = arith.constant 0 : index
    %c0_91 = arith.constant 0 : index
    %c0_92 = arith.constant 0 : index
    %80 = vector.load %arg8[%c0_90, %c0_91, %c0_92] : memref<18x18x4xf32, #tpu.memory_space<vmem>>, vector<16x16x4xf32>
    %81 = vector.shape_cast %80 : vector<16x16x4xf32> to vector<256x4xf32>
    %82 = arith.truncf %81 : vector<256x4xf32> to vector<256x4xbf16>
    %c0_93 = arith.constant 0 : index
    %c0_94 = arith.constant 0 : index
    %c0_95 = arith.constant 0 : index
    %c0_96 = arith.constant 0 : index
    %83 = vector.load %arg3[%c0_93, %c0_94, %c0_95, %c0_96] : memref<3x3x4x4xbf16, #tpu.memory_space<vmem>>, vector<1x1x4x4xbf16>
    %84 = vector.shape_cast %83 : vector<1x1x4x4xbf16> to vector<4x4xbf16>
    %cst_97 = arith.constant dense<0.000000e+00> : vector<256x4xf32>
    %85 = tpu.matmul %82, %84, %cst_97 {dimension_numbers = #tpu.dot_dimension_numbers<[1], [0], [0], [1], [0, 0, 1, 1], [], []>} : vector<256x4xbf16>, vector<4x4xbf16>, vector<256x4xf32> -> vector<256x4xf32>
    %86 = arith.addf %79, %85 : vector<256x4xf32>
    %c0_98 = arith.constant 0 : index
    %c1_99 = arith.constant 1 : index
    %c0_100 = arith.constant 0 : index
    %87 = vector.load %arg8[%c0_98, %c1_99, %c0_100] : memref<18x18x4xf32, #tpu.memory_space<vmem>>, vector<16x16x4xf32>
    %88 = vector.shape_cast %87 : vector<16x16x4xf32> to vector<256x4xf32>
    %89 = arith.truncf %88 : vector<256x4xf32> to vector<256x4xbf16>
    %c0_101 = arith.constant 0 : index
    %c1_102 = arith.constant 1 : index
    %c0_103 = arith.constant 0 : index
    %c0_104 = arith.constant 0 : index
    %90 = vector.load %arg3[%c0_101, %c1_102, %c0_103, %c0_104] : memref<3x3x4x4xbf16, #tpu.memory_space<vmem>>, vector<1x1x4x4xbf16>
    %91 = vector.shape_cast %90 : vector<1x1x4x4xbf16> to vector<4x4xbf16>
    %cst_105 = arith.constant dense<0.000000e+00> : vector<256x4xf32>
    %92 = tpu.matmul %89, %91, %cst_105 {dimension_numbers = #tpu.dot_dimension_numbers<[1], [0], [0], [1], [0, 0, 1, 1], [], []>} : vector<256x4xbf16>, vector<4x4xbf16>, vector<256x4xf32> -> vector<256x4xf32>
    %93 = arith.addf %86, %92 : vector<256x4xf32>
    %c0_106 = arith.constant 0 : index
    %c2_107 = arith.constant 2 : index
    %c0_108 = arith.constant 0 : index
    %94 = vector.load %arg8[%c0_106, %c2_107, %c0_108] : memref<18x18x4xf32, #tpu.memory_space<vmem>>, vector<16x16x4xf32>
    %95 = vector.shape_cast %94 : vector<16x16x4xf32> to vector<256x4xf32>
    %96 = arith.truncf %95 : vector<256x4xf32> to vector<256x4xbf16>
    %c0_109 = arith.constant 0 : index
    %c2_110 = arith.constant 2 : index
    %c0_111 = arith.constant 0 : index
    %c0_112 = arith.constant 0 : index
    %97 = vector.load %arg3[%c0_109, %c2_110, %c0_111, %c0_112] : memref<3x3x4x4xbf16, #tpu.memory_space<vmem>>, vector<1x1x4x4xbf16>
    %98 = vector.shape_cast %97 : vector<1x1x4x4xbf16> to vector<4x4xbf16>
    %cst_113 = arith.constant dense<0.000000e+00> : vector<256x4xf32>
    %99 = tpu.matmul %96, %98, %cst_113 {dimension_numbers = #tpu.dot_dimension_numbers<[1], [0], [0], [1], [0, 0, 1, 1], [], []>} : vector<256x4xbf16>, vector<4x4xbf16>, vector<256x4xf32> -> vector<256x4xf32>
    %100 = arith.addf %93, %99 : vector<256x4xf32>
    %c1_114 = arith.constant 1 : index
    %c0_115 = arith.constant 0 : index
    %c0_116 = arith.constant 0 : index
    %101 = vector.load %arg8[%c1_114, %c0_115, %c0_116] : memref<18x18x4xf32, #tpu.memory_space<vmem>>, vector<16x16x4xf32>
    %102 = vector.shape_cast %101 : vector<16x16x4xf32> to vector<256x4xf32>
    %103 = arith.truncf %102 : vector<256x4xf32> to vector<256x4xbf16>
    %c1_117 = arith.constant 1 : index
    %c0_118 = arith.constant 0 : index
    %c0_119 = arith.constant 0 : index
    %c0_120 = arith.constant 0 : index
    %104 = vector.load %arg3[%c1_117, %c0_118, %c0_119, %c0_120] : memref<3x3x4x4xbf16, #tpu.memory_space<vmem>>, vector<1x1x4x4xbf16>
    %105 = vector.shape_cast %104 : vector<1x1x4x4xbf16> to vector<4x4xbf16>
    %cst_121 = arith.constant dense<0.000000e+00> : vector<256x4xf32>
    %106 = tpu.matmul %103, %105, %cst_121 {dimension_numbers = #tpu.dot_dimension_numbers<[1], [0], [0], [1], [0, 0, 1, 1], [], []>} : vector<256x4xbf16>, vector<4x4xbf16>, vector<256x4xf32> -> vector<256x4xf32>
    %107 = arith.addf %100, %106 : vector<256x4xf32>
    %c1_122 = arith.constant 1 : index
    %c1_123 = arith.constant 1 : index
    %c0_124 = arith.constant 0 : index
    %108 = vector.load %arg8[%c1_122, %c1_123, %c0_124] : memref<18x18x4xf32, #tpu.memory_space<vmem>>, vector<16x16x4xf32>
    %109 = vector.shape_cast %108 : vector<16x16x4xf32> to vector<256x4xf32>
    %110 = arith.truncf %109 : vector<256x4xf32> to vector<256x4xbf16>
    %c1_125 = arith.constant 1 : index
    %c1_126 = arith.constant 1 : index
    %c0_127 = arith.constant 0 : index
    %c0_128 = arith.constant 0 : index
    %111 = vector.load %arg3[%c1_125, %c1_126, %c0_127, %c0_128] : memref<3x3x4x4xbf16, #tpu.memory_space<vmem>>, vector<1x1x4x4xbf16>
    %112 = vector.shape_cast %111 : vector<1x1x4x4xbf16> to vector<4x4xbf16>
    %cst_129 = arith.constant dense<0.000000e+00> : vector<256x4xf32>
    %113 = tpu.matmul %110, %112, %cst_129 {dimension_numbers = #tpu.dot_dimension_numbers<[1], [0], [0], [1], [0, 0, 1, 1], [], []>} : vector<256x4xbf16>, vector<4x4xbf16>, vector<256x4xf32> -> vector<256x4xf32>
    %114 = arith.addf %107, %113 : vector<256x4xf32>
    %c1_130 = arith.constant 1 : index
    %c2_131 = arith.constant 2 : index
    %c0_132 = arith.constant 0 : index
    %115 = vector.load %arg8[%c1_130, %c2_131, %c0_132] : memref<18x18x4xf32, #tpu.memory_space<vmem>>, vector<16x16x4xf32>
    %116 = vector.shape_cast %115 : vector<16x16x4xf32> to vector<256x4xf32>
    %117 = arith.truncf %116 : vector<256x4xf32> to vector<256x4xbf16>
    %c1_133 = arith.constant 1 : index
    %c2_134 = arith.constant 2 : index
    %c0_135 = arith.constant 0 : index
    %c0_136 = arith.constant 0 : index
    %118 = vector.load %arg3[%c1_133, %c2_134, %c0_135, %c0_136] : memref<3x3x4x4xbf16, #tpu.memory_space<vmem>>, vector<1x1x4x4xbf16>
    %119 = vector.shape_cast %118 : vector<1x1x4x4xbf16> to vector<4x4xbf16>
    %cst_137 = arith.constant dense<0.000000e+00> : vector<256x4xf32>
    %120 = tpu.matmul %117, %119, %cst_137 {dimension_numbers = #tpu.dot_dimension_numbers<[1], [0], [0], [1], [0, 0, 1, 1], [], []>} : vector<256x4xbf16>, vector<4x4xbf16>, vector<256x4xf32> -> vector<256x4xf32>
    %121 = arith.addf %114, %120 : vector<256x4xf32>
    %c2_138 = arith.constant 2 : index
    %c0_139 = arith.constant 0 : index
    %c0_140 = arith.constant 0 : index
    %122 = vector.load %arg8[%c2_138, %c0_139, %c0_140] : memref<18x18x4xf32, #tpu.memory_space<vmem>>, vector<16x16x4xf32>
    %123 = vector.shape_cast %122 : vector<16x16x4xf32> to vector<256x4xf32>
    %124 = arith.truncf %123 : vector<256x4xf32> to vector<256x4xbf16>
    %c2_141 = arith.constant 2 : index
    %c0_142 = arith.constant 0 : index
    %c0_143 = arith.constant 0 : index
    %c0_144 = arith.constant 0 : index
    %125 = vector.load %arg3[%c2_141, %c0_142, %c0_143, %c0_144] : memref<3x3x4x4xbf16, #tpu.memory_space<vmem>>, vector<1x1x4x4xbf16>
    %126 = vector.shape_cast %125 : vector<1x1x4x4xbf16> to vector<4x4xbf16>
    %cst_145 = arith.constant dense<0.000000e+00> : vector<256x4xf32>
    %127 = tpu.matmul %124, %126, %cst_145 {dimension_numbers = #tpu.dot_dimension_numbers<[1], [0], [0], [1], [0, 0, 1, 1], [], []>} : vector<256x4xbf16>, vector<4x4xbf16>, vector<256x4xf32> -> vector<256x4xf32>
    %128 = arith.addf %121, %127 : vector<256x4xf32>
    %c2_146 = arith.constant 2 : index
    %c1_147 = arith.constant 1 : index
    %c0_148 = arith.constant 0 : index
    %129 = vector.load %arg8[%c2_146, %c1_147, %c0_148] : memref<18x18x4xf32, #tpu.memory_space<vmem>>, vector<16x16x4xf32>
    %130 = vector.shape_cast %129 : vector<16x16x4xf32> to vector<256x4xf32>
    %131 = arith.truncf %130 : vector<256x4xf32> to vector<256x4xbf16>
    %c2_149 = arith.constant 2 : index
    %c1_150 = arith.constant 1 : index
    %c0_151 = arith.constant 0 : index
    %c0_152 = arith.constant 0 : index
    %132 = vector.load %arg3[%c2_149, %c1_150, %c0_151, %c0_152] : memref<3x3x4x4xbf16, #tpu.memory_space<vmem>>, vector<1x1x4x4xbf16>
    %133 = vector.shape_cast %132 : vector<1x1x4x4xbf16> to vector<4x4xbf16>
    %cst_153 = arith.constant dense<0.000000e+00> : vector<256x4xf32>
    %134 = tpu.matmul %131, %133, %cst_153 {dimension_numbers = #tpu.dot_dimension_numbers<[1], [0], [0], [1], [0, 0, 1, 1], [], []>} : vector<256x4xbf16>, vector<4x4xbf16>, vector<256x4xf32> -> vector<256x4xf32>
    %135 = arith.addf %128, %134 : vector<256x4xf32>
    %c2_154 = arith.constant 2 : index
    %c2_155 = arith.constant 2 : index
    %c0_156 = arith.constant 0 : index
    %136 = vector.load %arg8[%c2_154, %c2_155, %c0_156] : memref<18x18x4xf32, #tpu.memory_space<vmem>>, vector<16x16x4xf32>
    %137 = vector.shape_cast %136 : vector<16x16x4xf32> to vector<256x4xf32>
    %138 = arith.truncf %137 : vector<256x4xf32> to vector<256x4xbf16>
    %c2_157 = arith.constant 2 : index
    %c2_158 = arith.constant 2 : index
    %c0_159 = arith.constant 0 : index
    %c0_160 = arith.constant 0 : index
    %139 = vector.load %arg3[%c2_157, %c2_158, %c0_159, %c0_160] : memref<3x3x4x4xbf16, #tpu.memory_space<vmem>>, vector<1x1x4x4xbf16>
    %140 = vector.shape_cast %139 : vector<1x1x4x4xbf16> to vector<4x4xbf16>
    %cst_161 = arith.constant dense<0.000000e+00> : vector<256x4xf32>
    %141 = tpu.matmul %138, %140, %cst_161 {dimension_numbers = #tpu.dot_dimension_numbers<[1], [0], [0], [1], [0, 0, 1, 1], [], []>} : vector<256x4xbf16>, vector<4x4xbf16>, vector<256x4xf32> -> vector<256x4xf32>
    %142 = arith.addf %135, %141 : vector<256x4xf32>
    %c0_162 = arith.constant 0 : index
    %c0_163 = arith.constant 0 : index
    %143 = vector.load %arg5[%c0_162, %c0_163] : memref<1x4xf32, #tpu.memory_space<vmem>>, vector<1x4xf32>
    %144 = vector.broadcast %143 : vector<1x4xf32> to vector<256x4xf32>
    %145 = arith.addf %142, %144 : vector<256x4xf32>
    %c0_164 = arith.constant 0 : index
    %c0_165 = arith.constant 0 : index
    %c0_166 = arith.constant 0 : index
    %146 = vector.load %arg1[%c0_164, %c0_165, %c0_166] : memref<1x256x4xf32, #tpu.memory_space<vmem>>, vector<1x256x4xf32>
    %147 = vector.shape_cast %146 : vector<1x256x4xf32> to vector<256x4xf32>
    %148 = arith.addf %145, %147 : vector<256x4xf32>
    %cst_167 = arith.constant 0.000000e+00 : f32
    %149 = vector.broadcast %cst_167 : f32 to vector<256x4xf32>
    %150 = arith.maximumf %148, %149 : vector<256x4xf32>
    %c0_168 = arith.constant 0 : index
    %c0_169 = arith.constant 0 : index
    %c0_170 = arith.constant 0 : index
    %151 = vector.load %arg6[%c0_168, %c0_169, %c0_170] : memref<1x256x4xf32, #tpu.memory_space<vmem>>, vector<1x256x4xf32>
    %152 = vector.shape_cast %151 : vector<1x256x4xf32> to vector<256x4xf32>
    %153 = vector.shape_cast %150 : vector<256x4xf32> to vector<1x256x4xf32>
    tpu.vector_store %arg6[%c0_168, %c0_169, %c0_170], %153 {strides = array<i32>} : memref<1x256x4xf32, #tpu.memory_space<vmem>>, vector<1x256x4xf32>,
    return
  }
  func.func @transform_0(%arg0: i32) -> (i32, i32, i32) {
    %c0_i32 = arith.constant 0 : i32
    %c0_i32_0 = arith.constant 0 : i32
    %c0_i32_1 = arith.constant 0 : i32
    return %arg0, %c0_i32, %c0_i32_0 : i32, i32, i32
  }
  func.func @transform_1(%arg0: i32) -> (i32, i32, i32, i32) {
    %c0_i32 = arith.constant 0 : i32
    %c0_i32_0 = arith.constant 0 : i32
    %c0_i32_1 = arith.constant 0 : i32
    %c0_i32_2 = arith.constant 0 : i32
    %c0_i32_3 = arith.constant 0 : i32
    return %c0_i32, %c0_i32_0, %c0_i32_1, %c0_i32_2 : i32, i32, i32, i32
  }
  func.func @transform_2(%arg0: i32) -> (i32, i32, i32, i32) {
    %c0_i32 = arith.constant 0 : i32
    %c0_i32_0 = arith.constant 0 : i32
    %c0_i32_1 = arith.constant 0 : i32
    %c0_i32_2 = arith.constant 0 : i32
    %c0_i32_3 = arith.constant 0 : i32
    return %c0_i32, %c0_i32_0, %c0_i32_1, %c0_i32_2 : i32, i32, i32, i32
  }
  func.func @transform_3(%arg0: i32) -> (i32, i32) {
    %c0_i32 = arith.constant 0 : i32
    %c0_i32_0 = arith.constant 0 : i32
    %c0_i32_1 = arith.constant 0 : i32
    return %c0_i32, %c0_i32_0 : i32, i32
  }
  func.func @transform_4(%arg0: i32) -> (i32, i32) {
    %c0_i32 = arith.constant 0 : i32
    %c0_i32_0 = arith.constant 0 : i32
    %c0_i32_1 = arith.constant 0 : i32
    return %c0_i32, %c0_i32_0 : i32, i32
  }
  func.func @transform_5(%arg0: i32) -> (i32, i32, i32) {
    %c0_i32 = arith.constant 0 : i32
    %c0_i32_0 = arith.constant 0 : i32
    %c0_i32_1 = arith.constant 0 : i32
    return %arg0, %c0_i32, %c0_i32_0 : i32, i32, i32
  }
}

</mosaic_0001>

<llo_original>
// kernel: basic_block_forward.1
$region0: #{basic_block_forward.1}
  #allocation0 [shape = 'u32[]', space=smem, size = 0x4, offset = 0x4, fixed_abs, tag = 'smem constant byte address 0x4 - core index']
  #allocation1 [shape = 'u32[144,128]{1,0:T(1,128)}', space=vmem, size = 0x12000, scoped, tag = 'internal scratch']
  #allocation2 [shape = 'f32[18,18,4]{2,1,0:T(8,128)}', space=vmem, size = 0x36000, scoped, tag = 'scratch operand']
  #allocation3 [shape = 'f32[18,18,4]{2,1,0:T(8,128)}', space=vmem, size = 0x36000, scoped, tag = 'scratch operand']
  %s0 = inlined_call_operand.vmem [shape: f32[2,256,4], index: 0, kind: input, shape index: {}]
  %s1 = inlined_call_operand.vmem [shape: bf16[3,3,4,4], index: 1, kind: input, shape index: {}]
  %s2 = inlined_call_operand.vmem [shape: bf16[3,3,4,4], index: 2, kind: input, shape index: {}]
  %s3 = inlined_call_operand.vmem [shape: f32[1,4], index: 3, kind: input, shape index: {}]
  %s4 = inlined_call_operand.vmem [shape: f32[1,4], index: 4, kind: input, shape index: {}]
  %s5 = inlined_call_operand.vmem [shape: f32[2,256,4], index: 5, kind: output, shape index: {}]
  %s6 = sld [smem:[#allocation0]]
  $region53: #{basic_block_forward.1} parent=0
    _
  %s8 = ssub.s32 1, %s6
  %s9 = scalar_select 0, %s8, %s6
  loop: start=0, step=1, limit=4
  $region2: #{basic_block_forward.1} parent=0 // loop_pre_header
    _
  $region3: #{basic_block_forward.1} parent=0 // loop_header
    %s11 = sphi 0, %s15
    %p12 = scmp.ge.s32.totalorder %s11, 4
    %s21 = sphi 0, %s23
    %s24 = sphi 0, %s21
    %s25 = sphi 0, %s24
    %s41 = sphi 0, %s25
    %s45 = sphi 0, %s45
    %s47 = sphi 0, %s45
    %s48 = sphi 0, %s47
    %s62 = sphi 0, %s48
    %s66 = sphi 0, %s66
    %s68 = sphi 0, %s66
    %s69 = sphi 0, %s68
    %s83 = sphi 0, %s69
    %s87 = sphi 0, %s87
    %s89 = sphi 0, %s87
    %s90 = sphi 0, %s89
    %s104 = sphi 0, %s90
    %s108 = sphi 0, %s108
    %s110 = sphi 0, %s108
    %s111 = sphi 0, %s110
    %s125 = sphi 0, %s111
    %s131 = sphi 0, %s133
    %s134 = sphi 0, %s131
    %s135 = sphi 0, %s134
    %s151 = sphi 0, %s135
  $region4: #{basic_block_forward.1} parent=0 // loop_header_branch
    %14 = sbr.rel (%p12) target = $region8
  $region5: #{basic_block_forward.1} parent=0 // loop_body
    %s16 = ssub.s32 %s11, 1
    %s17 = ssub.s32 %s11, 2
    %s18 = sadd.s32 %s11, 1
    %s19 = ssub.s32 %s11, %s18
    %p20 = scmp.eq.s32.totalorder %s19, 0
    %s22 = sadd.s32 %s21, 1
    %s23 = scalar_select %p20, %s21, %s22
    %p26 = pneg %p20
    %p27 = scmp.eq.s32.totalorder %s11, 1
    %p28 = por %p26, %p27
    %p29 = scmp.ne.s32.totalorder %s21, %s24
    %p30 = scmp.eq.s32.totalorder %s11, 0
    %p31 = por %p29, %p30
    %p32 = scmp.ne.s32.totalorder %s21, %s24
    %p33 = scmp.eq.s32.totalorder %s16, 1
    %p34 = por %p32, %p33
    %p35 = scmp.ne.s32.totalorder %s24, %s25
    %p36 = scmp.eq.s32.totalorder %s16, 0
    %p37 = por %p35, %p36
    %p38 = scmp.ne.s32.totalorder %s24, %s25
    %p39 = scmp.eq.s32.totalorder %s17, 1
    %p40 = por %p38, %p39
    %p42 = scmp.ne.s32.totalorder %s25, %s41
    %p43 = scmp.eq.s32.totalorder %s17, 0
    %p44 = por %p42, %p43
    %s46 = sadd.s32 %s45, 1
    %p49 = scmp.eq.s32.totalorder %s11, 1
    %p50 = scmp.ne.s32.totalorder %s45, %s47
    %p51 = scmp.eq.s32.totalorder %s11, 0
    %p52 = por %p50, %p51
    %p53 = scmp.ne.s32.totalorder %s45, %s47
    %p54 = scmp.eq.s32.totalorder %s16, 1
    %p55 = por %p53, %p54
    %p56 = scmp.ne.s32.totalorder %s47, %s48
    %p57 = scmp.eq.s32.totalorder %s16, 0
    %p58 = por %p56, %p57
    %p59 = scmp.ne.s32.totalorder %s47, %s48
    %p60 = scmp.eq.s32.totalorder %s17, 1
    %p61 = por %p59, %p60
    %p63 = scmp.ne.s32.totalorder %s48, %s62
    %p64 = scmp.eq.s32.totalorder %s17, 0
    %p65 = por %p63, %p64
    %s67 = sadd.s32 %s66, 1
    %p70 = scmp.eq.s32.totalorder %s11, 1
    %p71 = scmp.ne.s32.totalorder %s66, %s68
    %p72 = scmp.eq.s32.totalorder %s11, 0
    %p73 = por %p71, %p72
    %p74 = scmp.ne.s32.totalorder %s66, %s68
    %p75 = scmp.eq.s32.totalorder %s16, 1
    %p76 = por %p74, %p75
    %p77 = scmp.ne.s32.totalorder %s68, %s69
    %p78 = scmp.eq.s32.totalorder %s16, 0
    %p79 = por %p77, %p78
    %p80 = scmp.ne.s32.totalorder %s68, %s69
    %p81 = scmp.eq.s32.totalorder %s17, 1
    %p82 = por %p80, %p81
    %p84 = scmp.ne.s32.totalorder %s69, %s83
    %p85 = scmp.eq.s32.totalorder %s17, 0
    %p86 = por %p84, %p85
    %s88 = sadd.s32 %s87, 1
    %p91 = scmp.eq.s32.totalorder %s11, 1
    %p92 = scmp.ne.s32.totalorder %s87, %s89
    %p93 = scmp.eq.s32.totalorder %s11, 0
    %p94 = por %p92, %p93
    %p95 = scmp.ne.s32.totalorder %s87, %s89
    %p96 = scmp.eq.s32.totalorder %s16, 1
    %p97 = por %p95, %p96
    %p98 = scmp.ne.s32.totalorder %s89, %s90
    %p99 = scmp.eq.s32.totalorder %s16, 0
    %p100 = por %p98, %p99
    %p101 = scmp.ne.s32.totalorder %s89, %s90
    %p102 = scmp.eq.s32.totalorder %s17, 1
    %p103 = por %p101, %p102
    %p105 = scmp.ne.s32.totalorder %s90, %s104
    %p106 = scmp.eq.s32.totalorder %s17, 0
    %p107 = por %p105, %p106
    %s109 = sadd.s32 %s108, 1
    %p112 = scmp.eq.s32.totalorder %s11, 1
    %p113 = scmp.ne.s32.totalorder %s108, %s110
    %p114 = scmp.eq.s32.totalorder %s11, 0
    %p115 = por %p113, %p114
    %p116 = scmp.ne.s32.totalorder %s108, %s110
    %p117 = scmp.eq.s32.totalorder %s16, 1
    %p118 = por %p116, %p117
    %p119 = scmp.ne.s32.totalorder %s110, %s111
    %p120 = scmp.eq.s32.totalorder %s16, 0
    %p121 = por %p119, %p120
    %p122 = scmp.ne.s32.totalorder %s110, %s111
    %p123 = scmp.eq.s32.totalorder %s17, 1
    %p124 = por %p122, %p123
    %p126 = scmp.ne.s32.totalorder %s111, %s125
    %p127 = scmp.eq.s32.totalorder %s17, 0
    %p128 = por %p126, %p127
    %s129 = ssub.s32 %s11, %s18
    %p130 = scmp.eq.s32.totalorder %s129, 0
    %s132 = sadd.s32 %s131, 1
    %s133 = scalar_select %p130, %s131, %s132
    %p136 = pneg %p130
    %p137 = scmp.eq.s32.totalorder %s11, 1
    %p138 = por %p136, %p137
    %p139 = scmp.ne.s32.totalorder %s131, %s134
    %p140 = scmp.eq.s32.totalorder %s11, 0
    %p141 = por %p139, %p140
    %p142 = scmp.ne.s32.totalorder %s131, %s134
    %p143 = scmp.eq.s32.totalorder %s16, 1
    %p144 = por %p142, %p143
    %p145 = scmp.ne.s32.totalorder %s134, %s135
    %p146 = scmp.eq.s32.totalorder %s16, 0
    %p147 = por %p145, %p146
    %p148 = scmp.ne.s32.totalorder %s134, %s135
    %p149 = scmp.eq.s32.totalorder %s17, 1
    %p150 = por %p148, %p149
    %p152 = scmp.ne.s32.totalorder %s135, %s151
    %p153 = scmp.eq.s32.totalorder %s17, 0
    %p154 = por %p152, %p153
    %p155 = scmp.le.s32.totalorder 1, %s11
    %p156 = scmp.lt.s32.totalorder %s11, 3
    %p157 = pnand %p155, %p156
    %p158 = pneg %p157
    // Predicated region
    $region9: #{basic_block_forward.1} parent=5 // pred_check
      _
    $region10: #{basic_block_forward.1} parent=5 // pred_check_branch
      %160 = sbr.rel (%p157) target = $region12
    $region11: #{basic_block_forward.1} parent=5 // pred_region
      %s161 = ssub.s32 %s11, 1
      // Predicated region
      $region13: #{basic_block_forward.1} parent=11 // pred_check
        %p162 = pneg %p58
      $region14: #{basic_block_forward.1} parent=11 // pred_check_branch
        %164 = sbr.rel (%p162) target = $region16
      $region15: #{basic_block_forward.1} parent=11 // pred_region
        _
      $region16: #{basic_block_forward.1} parent=11 // pred_fallthru
        _
      // Predicated region
      $region17: #{basic_block_forward.1} parent=11 // pred_check
        %p165 = pneg %p79
      $region18: #{basic_block_forward.1} parent=11 // pred_check_branch
        %167 = sbr.rel (%p165) target = $region20
      $region19: #{basic_block_forward.1} parent=11 // pred_region
        _
      $region20: #{basic_block_forward.1} parent=11 // pred_fallthru
        _
      // Predicated region
      $region21: #{basic_block_forward.1} parent=11 // pred_check
        %p168 = pneg %p100
      $region22: #{basic_block_forward.1} parent=11 // pred_check_branch
        %170 = sbr.rel (%p168) target = $region24
      $region23: #{basic_block_forward.1} parent=11 // pred_region
        _
      $region24: #{basic_block_forward.1} parent=11 // pred_fallthru
        _
      // Predicated region
      $region25: #{basic_block_forward.1} parent=11 // pred_check
        %p171 = pneg %p121
      $region26: #{basic_block_forward.1} parent=11 // pred_check_branch
        %173 = sbr.rel (%p171) target = $region28
      $region27: #{basic_block_forward.1} parent=11 // pred_region
        _
      $region28: #{basic_block_forward.1} parent=11 // pred_fallthru
        _
    $region12: #{basic_block_forward.1} parent=5 // pred_fallthru
      _
    %p174 = scmp.lt.s32.totalorder %s11, 2
    // Predicated region
    $region29: #{basic_block_forward.1} parent=5 // pred_check
      %p175 = pneg %p174
    $region30: #{basic_block_forward.1} parent=5 // pred_check_branch
      %177 = sbr.rel (%p175) target = $region32
    $region31: #{basic_block_forward.1} parent=5 // pred_region
      // Predicated region
      $region33: #{basic_block_forward.1} parent=31 // pred_check
        %p178 = pneg %p31
      $region34: #{basic_block_forward.1} parent=31 // pred_check_branch
        %180 = sbr.rel (%p178) target = $region36
      $region35: #{basic_block_forward.1} parent=31 // pred_region
        %p181 = scmp.lt.s32.totalorder %s11, 1
        %s182 = scalar_select %p181, %s11, 1
        %s183 = smul.addr %s182, 32
        %s184 = smul.addr %s183, 8
        %s185 = scalar_lea.vmem %s0, %s184
      $region36: #{basic_block_forward.1} parent=31 // pred_fallthru
        _
    $region32: #{basic_block_forward.1} parent=5 // pred_fallthru
      _
    %p186 = scmp.le.s32.totalorder 1, %s11
    %p187 = scmp.lt.s32.totalorder %s11, 3
    %p188 = pnand %p186, %p187
    %p189 = pneg %p188
    // Predicated region
    $region37: #{basic_block_forward.1} parent=5 // pred_check
      _
    $region38: #{basic_block_forward.1} parent=5 // pred_check_branch
      %191 = sbr.rel (%p188) target = $region40
    $region39: #{basic_block_forward.1} parent=5 // pred_region
      %s192 = ssub.s32 %s11, 1
      %p193 = scmp.lt.s32.totalorder %s16, 1
      %s194 = scalar_select %p193, %s16, 1
      %s195 = smul.addr %s194, 32
      %s196 = smul.addr %s195, 8
      %s197 = scalar_lea.vmem %s0, %s196
      %p198 = pneg %p37
      %p199 = pneg %p34
      %p200 = pneg %p58
      %p201 = pneg %p55
      %p202 = pneg %p79
      %p203 = pneg %p76
      %p204 = pneg %p100
      %p205 = pneg %p97
      %p206 = pneg %p121
      %p207 = pneg %p118
      %p208 = pneg %p147
      %p209 = pneg %p144
      %p210 = scmp.lt.s32.totalorder %s16, 1
      %s211 = scalar_select %p210, %s16, 1
      %s212 = smul.addr %s211, 32
      %s213 = smul.addr %s212, 8
      %s214 = scalar_lea.vmem %s5, %s213
      %p215 = scmp.lt.s32.totalorder %s16, 1
      %s216 = scalar_select %p215, %s16, 1
      %s217 = smul.addr %s216, 32
      %s218 = smul.addr %s217, 8
      %s219 = scalar_lea.vmem %s0, %s218
      %p220 = scmp.lt.s32.totalorder %s16, 1
      %s221 = scalar_select %p220, %s16, 1
      %s222 = smul.addr %s221, 32
      %s223 = smul.addr %s222, 8
      %s224 = scalar_lea.vmem %s5, %s223
      %vm226 = vcmask 31744
      %227 = vst.msk [vmem:[#allocation2] sm:$0xff] %vm226, 0.0
      %228 = vst.msk [vmem:[#allocation2 + $0x8] sm:$0xff] %vm226, 0.0
      %vm229 = vcmask 25600
      %230 = vst.msk [vmem:[#allocation2 + $0x10] sm:$0x3] %vm229, 0.0
      %231 = vst.msk [vmem:[#allocation2 + $0x18] sm:$0xff] %vm226, 0.0
      %232 = vst.msk [vmem:[#allocation2 + $0x20] sm:$0xff] %vm226, 0.0
      %233 = vst.msk [vmem:[#allocation2 + $0x28] sm:$0x3] %vm229, 0.0
      %234 = vst.msk [vmem:[#allocation2 + $0x30] sm:$0xff] %vm226, 0.0
      %235 = vst.msk [vmem:[#allocation2 + $0x38] sm:$0xff] %vm226, 0.0
      %236 = vst.msk [vmem:[#allocation2 + $0x40] sm:$0x3] %vm229, 0.0
      %237 = vst.msk [vmem:[#allocation2 + $0x48] sm:$0xff] %vm226, 0.0
      %238 = vst.msk [vmem:[#allocation2 + $0x50] sm:$0xff] %vm226, 0.0
      %239 = vst.msk [vmem:[#allocation2 + $0x58] sm:$0x3] %vm229, 0.0
      %240 = vst.msk [vmem:[#allocation2 + $0x60] sm:$0xff] %vm226, 0.0
      %241 = vst.msk [vmem:[#allocation2 + $0x68] sm:$0xff] %vm226, 0.0
      %242 = vst.msk [vmem:[#allocation2 + $0x70] sm:$0x3] %vm229, 0.0
      %243 = vst.msk [vmem:[#allocation2 + $0x78] sm:$0xff] %vm226, 0.0
      %244 = vst.msk [vmem:[#allocation2 + $0x80] sm:$0xff] %vm226, 0.0
      %245 = vst.msk [vmem:[#allocation2 + $0x88] sm:$0x3] %vm229, 0.0
      %246 = vst.msk [vmem:[#allocation2 + $0x90] sm:$0xff] %vm226, 0.0
      %247 = vst.msk [vmem:[#allocation2 + $0x98] sm:$0xff] %vm226, 0.0
      %248 = vst.msk [vmem:[#allocation2 + $0xa0] sm:$0x3] %vm229, 0.0
      %249 = vst.msk [vmem:[#allocation2 + $0xa8] sm:$0xff] %vm226, 0.0
      %250 = vst.msk [vmem:[#allocation2 + $0xb0] sm:$0xff] %vm226, 0.0
      %251 = vst.msk [vmem:[#allocation2 + $0xb8] sm:$0x3] %vm229, 0.0
      %252 = vst.msk [vmem:[#allocation2 + $0xc0] sm:$0xff] %vm226, 0.0
      %253 = vst.msk [vmem:[#allocation2 + $0xc8] sm:$0xff] %vm226, 0.0
      %254 = vst.msk [vmem:[#allocation2 + $0xd0] sm:$0x3] %vm229, 0.0
      %255 = vst.msk [vmem:[#allocation2 + $0xd8] sm:$0xff] %vm226, 0.0
      %256 = vst.msk [vmem:[#allocation2 + $0xe0] sm:$0xff] %vm226, 0.0
      %257 = vst.msk [vmem:[#allocation2 + $0xe8] sm:$0x3] %vm229, 0.0
      %258 = vst.msk [vmem:[#allocation2 + $0xf0] sm:$0xff] %vm226, 0.0
      %259 = vst.msk [vmem:[#allocation2 + $0xf8] sm:$0xff] %vm226, 0.0
      %260 = vst.msk [vmem:[#allocation2 + $0x100] sm:$0x3] %vm229, 0.0
      %261 = vst.msk [vmem:[#allocation2 + $0x108] sm:$0xff] %vm226, 0.0
      %262 = vst.msk [vmem:[#allocation2 + $0x110] sm:$0xff] %vm226, 0.0
      %263 = vst.msk [vmem:[#allocation2 + $0x118] sm:$0x3] %vm229, 0.0
      %264 = vst.msk [vmem:[#allocation2 + $0x120] sm:$0xff] %vm226, 0.0
      %265 = vst.msk [vmem:[#allocation2 + $0x128] sm:$0xff] %vm226, 0.0
      %266 = vst.msk [vmem:[#allocation2 + $0x130] sm:$0x3] %vm229, 0.0
      %267 = vst.msk [vmem:[#allocation2 + $0x138] sm:$0xff] %vm226, 0.0
      %268 = vst.msk [vmem:[#allocation2 + $0x140] sm:$0xff] %vm226, 0.0
      %269 = vst.msk [vmem:[#allocation2 + $0x148] sm:$0x3] %vm229, 0.0
      %270 = vst.msk [vmem:[#allocation2 + $0x150] sm:$0xff] %vm226, 0.0
      %271 = vst.msk [vmem:[#allocation2 + $0x158] sm:$0xff] %vm226, 0.0
      %272 = vst.msk [vmem:[#allocation2 + $0x160] sm:$0x3] %vm229, 0.0
      %273 = vst.msk [vmem:[#allocation2 + $0x168] sm:$0xff] %vm226, 0.0
      %274 = vst.msk [vmem:[#allocation2 + $0x170] sm:$0xff] %vm226, 0.0
      %275 = vst.msk [vmem:[#allocation2 + $0x178] sm:$0x3] %vm229, 0.0
      %276 = vst.msk [vmem:[#allocation2 + $0x180] sm:$0xff] %vm226, 0.0
      %277 = vst.msk [vmem:[#allocation2 + $0x188] sm:$0xff] %vm226, 0.0
      %278 = vst.msk [vmem:[#allocation2 + $0x190] sm:$0x3] %vm229, 0.0
      %279 = vst.msk [vmem:[#allocation2 + $0x198] sm:$0xff] %vm226, 0.0
      %280 = vst.msk [vmem:[#allocation2 + $0x1a0] sm:$0xff] %vm226, 0.0
      %281 = vst.msk [vmem:[#allocation2 + $0x1a8] sm:$0x3] %vm229, 0.0
      %v282 = vld [vmem:[%s219] sm:$0xff]
      %v283 = vld [vmem:[%s219 + $0x8] sm:$0xff]
      %v284 = vld [vmem:[%s219 + $0x10] sm:$0xff]
      %v285 = vld [vmem:[%s219 + $0x18] sm:$0xff]
      %v286 = vld [vmem:[%s219 + $0x20] sm:$0xff]
      %v287 = vld [vmem:[%s219 + $0x28] sm:$0xff]
      %v288 = vld [vmem:[%s219 + $0x30] sm:$0xff]
      %v289 = vld [vmem:[%s219 + $0x38] sm:$0xff]
      %v290 = vld [vmem:[%s219 + $0x40] sm:$0xff]
      %v291 = vld [vmem:[%s219 + $0x48] sm:$0xff]
      %v292 = vld [vmem:[%s219 + $0x50] sm:$0xff]
      %v293 = vld [vmem:[%s219 + $0x58] sm:$0xff]
      %v294 = vld [vmem:[%s219 + $0x60] sm:$0xff]
      %v295 = vld [vmem:[%s219 + $0x68] sm:$0xff]
      %v296 = vld [vmem:[%s219 + $0x70] sm:$0xff]
      %v297 = vld [vmem:[%s219 + $0x78] sm:$0xff]
      %v298 = vld [vmem:[%s219 + $0x80] sm:$0xff]
      %v299 = vld [vmem:[%s219 + $0x88] sm:$0xff]
      %v300 = vld [vmem:[%s219 + $0x90] sm:$0xff]
      %v301 = vld [vmem:[%s219 + $0x98] sm:$0xff]
      %v302 = vld [vmem:[%s219 + $0xa0] sm:$0xff]
      %v303 = vld [vmem:[%s219 + $0xa8] sm:$0xff]
      %v304 = vld [vmem:[%s219 + $0xb0] sm:$0xff]
      %v305 = vld [vmem:[%s219 + $0xb8] sm:$0xff]
      %v306 = vld [vmem:[%s219 + $0xc0] sm:$0xff]
      %v307 = vld [vmem:[%s219 + $0xc8] sm:$0xff]
      %v308 = vld [vmem:[%s219 + $0xd0] sm:$0xff]
      %v309 = vld [vmem:[%s219 + $0xd8] sm:$0xff]
      %v310 = vld [vmem:[%s219 + $0xe0] sm:$0xff]
      %v311 = vld [vmem:[%s219 + $0xe8] sm:$0xff]
      %v312 = vld [vmem:[%s219 + $0xf0] sm:$0xff]
      %v313 = vld [vmem:[%s219 + $0xf8] sm:$0xff]
      %s314 = scalar_lea.vmem [#allocation2], 24
      %315 = vst.msk [vmem:[%s314 + $0x1] sm:$0xff] %vm226, %v282
      %316 = vst.msk [vmem:[%s314 + $0x9] sm:$0xff] %vm226, %v283
      %317 = vst.msk [vmem:[%s314 + $0x19] sm:$0xff] %vm226, %v284
      %318 = vst.msk [vmem:[%s314 + $0x21] sm:$0xff] %vm226, %v285
      %319 = vst.msk [vmem:[%s314 + $0x31] sm:$0xff] %vm226, %v286
      %320 = vst.msk [vmem:[%s314 + $0x39] sm:$0xff] %vm226, %v287
      %321 = vst.msk [vmem:[%s314 + $0x49] sm:$0xff] %vm226, %v288
      %322 = vst.msk [vmem:[%s314 + $0x51] sm:$0xff] %vm226, %v289
      %323 = vst.msk [vmem:[%s314 + $0x61] sm:$0xff] %vm226, %v290
      %324 = vst.msk [vmem:[%s314 + $0x69] sm:$0xff] %vm226, %v291
      %325 = vst.msk [vmem:[%s314 + $0x79] sm:$0xff] %vm226, %v292
      %326 = vst.msk [vmem:[%s314 + $0x81] sm:$0xff] %vm226, %v293
      %327 = vst.msk [vmem:[%s314 + $0x91] sm:$0xff] %vm226, %v294
      %328 = vst.msk [vmem:[%s314 + $0x99] sm:$0xff] %vm226, %v295
      %329 = vst.msk [vmem:[%s314 + $0xa9] sm:$0xff] %vm226, %v296
      %330 = vst.msk [vmem:[%s314 + $0xb1] sm:$0xff] %vm226, %v297
      %331 = vst.msk [vmem:[%s314 + $0xc1] sm:$0xff] %vm226, %v298
      %332 = vst.msk [vmem:[%s314 + $0xc9] sm:$0xff] %vm226, %v299
      %333 = vst.msk [vmem:[%s314 + $0xd9] sm:$0xff] %vm226, %v300
      %334 = vst.msk [vmem:[%s314 + $0xe1] sm:$0xff] %vm226, %v301
      %335 = vst.msk [vmem:[%s314 + $0xf1] sm:$0xff] %vm226, %v302
      %336 = vst.msk [vmem:[%s314 + $0xf9] sm:$0xff] %vm226, %v303
      %337 = vst.msk [vmem:[%s314 + $0x109] sm:$0xff] %vm226, %v304
      %338 = vst.msk [vmem:[%s314 + $0x111] sm:$0xff] %vm226, %v305
      %339 = vst.msk [vmem:[%s314 + $0x121] sm:$0xff] %vm226, %v306
      %340 = vst.msk [vmem:[%s314 + $0x129] sm:$0xff] %vm226, %v307
      %341 = vst.msk [vmem:[%s314 + $0x139] sm:$0xff] %vm226, %v308
      %342 = vst.msk [vmem:[%s314 + $0x141] sm:$0xff] %vm226, %v309
      %343 = vst.msk [vmem:[%s314 + $0x151] sm:$0xff] %vm226, %v310
      %344 = vst.msk [vmem:[%s314 + $0x159] sm:$0xff] %vm226, %v311
      %345 = vst.msk [vmem:[%s314 + $0x169] sm:$0xff] %vm226, %v312
      %346 = vst.msk [vmem:[%s314 + $0x171] sm:$0xff] %vm226, %v313
      %v347 = vld [vmem:[#allocation2] sm:$0xff]
      %v348 = vld [vmem:[#allocation2 + $0x8] sm:$0xff]
      %v349 = vld [vmem:[#allocation2 + $0x18] sm:$0xff]
      %v350 = vld [vmem:[#allocation2 + $0x20] sm:$0xff]
      %v351 = vld [vmem:[#allocation2 + $0x30] sm:$0xff]
      %v352 = vld [vmem:[#allocation2 + $0x38] sm:$0xff]
      %v353 = vld [vmem:[#allocation2 + $0x48] sm:$0xff]
      %v354 = vld [vmem:[#allocation2 + $0x50] sm:$0xff]
      %v355 = vld [vmem:[#allocation2 + $0x60] sm:$0xff]
      %v356 = vld [vmem:[#allocation2 + $0x68] sm:$0xff]
      %v357 = vld [vmem:[#allocation2 + $0x78] sm:$0xff]
      %v358 = vld [vmem:[#allocation2 + $0x80] sm:$0xff]
      %v359 = vld [vmem:[#allocation2 + $0x90] sm:$0xff]
      %v360 = vld [vmem:[#allocation2 + $0x98] sm:$0xff]
      %v361 = vld [vmem:[#allocation2 + $0xa8] sm:$0xff]
      %v362 = vld [vmem:[#allocation2 + $0xb0] sm:$0xff]
      %v363 = vld [vmem:[#allocation2 + $0xc0] sm:$0xff]
      %v364 = vld [vmem:[#allocation2 + $0xc8] sm:$0xff]
      %v365 = vld [vmem:[#allocation2 + $0xd8] sm:$0xff]
      %v366 = vld [vmem:[#allocation2 + $0xe0] sm:$0xff]
      %v367 = vld [vmem:[#allocation2 + $0xf0] sm:$0xff]
      %v368 = vld [vmem:[#allocation2 + $0xf8] sm:$0xff]
      %v369 = vld [vmem:[#allocation2 + $0x108] sm:$0xff]
      %v370 = vld [vmem:[#allocation2 + $0x110] sm:$0xff]
      %v371 = vld [vmem:[#allocation2 + $0x120] sm:$0xff]
      %v372 = vld [vmem:[#allocation2 + $0x128] sm:$0xff]
      %v373 = vld [vmem:[#allocation2 + $0x138] sm:$0xff]
      %v374 = vld [vmem:[#allocation2 + $0x140] sm:$0xff]
      %v375 = vld [vmem:[#allocation2 + $0x150] sm:$0xff]
      %v376 = vld [vmem:[#allocation2 + $0x158] sm:$0xff]
      %v377 = vld [vmem:[#allocation2 + $0x168] sm:$0xff]
      %v378 = vld [vmem:[#allocation2 + $0x170] sm:$0xff]
      %v379 = vpack.c.bf16 %v348, %v347
      %v380 = vpack.c.bf16 %v350, %v349
      %v381 = vpack.c.bf16 %v352, %v351
      %v382 = vpack.c.bf16 %v354, %v353
      %v383 = vpack.c.bf16 %v356, %v355
      %v384 = vpack.c.bf16 %v358, %v357
      %v385 = vpack.c.bf16 %v360, %v359
      %v386 = vpack.c.bf16 %v362, %v361
      %v387 = vpack.c.bf16 %v364, %v363
      %v388 = vpack.c.bf16 %v366, %v365
      %v389 = vpack.c.bf16 %v368, %v367
      %v390 = vpack.c.bf16 %v370, %v369
      %v391 = vpack.c.bf16 %v372, %v371
      %v392 = vpack.c.bf16 %v374, %v373
      %v393 = vpack.c.bf16 %v376, %v375
      %v394 = vpack.c.bf16 %v378, %v377
      %v395 = vld [vmem:[%s1] sm:$0x3]
      %v396 = vld [vmem:[#allocation2 + $0x1] sm:$0xff]
      %v397 = vld [vmem:[#allocation2 + $0x9] sm:$0xff]
      %v398 = vld [vmem:[#allocation2 + $0x19] sm:$0xff]
      %v399 = vld [vmem:[#allocation2 + $0x21] sm:$0xff]
      %v400 = vld [vmem:[#allocation2 + $0x31] sm:$0xff]
      %v401 = vld [vmem:[#allocation2 + $0x39] sm:$0xff]
      %v402 = vld [vmem:[#allocation2 + $0x49] sm:$0xff]
      %v403 = vld [vmem:[#allocation2 + $0x51] sm:$0xff]
      %v404 = vld [vmem:[#allocation2 + $0x61] sm:$0xff]
      %v405 = vld [vmem:[#allocation2 + $0x69] sm:$0xff]
      %v406 = vld [vmem:[#allocation2 + $0x79] sm:$0xff]
      %v407 = vld [vmem:[#allocation2 + $0x81] sm:$0xff]
      %v408 = vld [vmem:[#allocation2 + $0x91] sm:$0xff]
      %v409 = vld [vmem:[#allocation2 + $0x99] sm:$0xff]
      %v410 = vld [vmem:[#allocation2 + $0xa9] sm:$0xff]
      %v411 = vld [vmem:[#allocation2 + $0xb1] sm:$0xff]
      %v412 = vld [vmem:[#allocation2 + $0xc1] sm:$0xff]
      %v413 = vld [vmem:[#allocation2 + $0xc9] sm:$0xff]
      %v414 = vld [vmem:[#allocation2 + $0xd9] sm:$0xff]
      %v415 = vld [vmem:[#allocation2 + $0xe1] sm:$0xff]
      %v416 = vld [vmem:[#allocation2 + $0xf1] sm:$0xff]
      %v417 = vld [vmem:[#allocation2 + $0xf9] sm:$0xff]
      %v418 = vld [vmem:[#allocation2 + $0x109] sm:$0xff]
      %v419 = vld [vmem:[#allocation2 + $0x111] sm:$0xff]
      %v420 = vld [vmem:[#allocation2 + $0x121] sm:$0xff]
      %v421 = vld [vmem:[#allocation2 + $0x129] sm:$0xff]
      %v422 = vld [vmem:[#allocation2 + $0x139] sm:$0xff]
      %v423 = vld [vmem:[#allocation2 + $0x141] sm:$0xff]
      %v424 = vld [vmem:[#allocation2 + $0x151] sm:$0xff]
      %v425 = vld [vmem:[#allocation2 + $0x159] sm:$0xff]
      %v426 = vld [vmem:[#allocation2 + $0x169] sm:$0xff]
      %v427 = vld [vmem:[#allocation2 + $0x171] sm:$0xff]
      %v428 = vpack.c.bf16 %v397, %v396
      %v429 = vpack.c.bf16 %v399, %v398
      %v430 = vpack.c.bf16 %v401, %v400
      %v431 = vpack.c.bf16 %v403, %v402
      %v432 = vpack.c.bf16 %v405, %v404
      %v433 = vpack.c.bf16 %v407, %v406
      %v434 = vpack.c.bf16 %v409, %v408
      %v435 = vpack.c.bf16 %v411, %v410
      %v436 = vpack.c.bf16 %v413, %v412
      %v437 = vpack.c.bf16 %v415, %v414
      %v438 = vpack.c.bf16 %v417, %v416
      %v439 = vpack.c.bf16 %v419, %v418
      %v440 = vpack.c.bf16 %v421, %v420
      %v441 = vpack.c.bf16 %v423, %v422
      %v442 = vpack.c.bf16 %v425, %v424
      %v443 = vpack.c.bf16 %v427, %v426
      %s444 = scalar_lea.vmem %s1, 2
      %v445 = vld [vmem:[%s444] sm:$0x3]
      %v447 = vsel %vm226, %v428, 0
      %v450 = vsel %vm226, %v429, 0
      %v453 = vsel %vm226, %v430, 0
      %v456 = vsel %vm226, %v431, 0
      %v459 = vsel %vm226, %v432, 0
      %v462 = vsel %vm226, %v433, 0
      %v465 = vsel %vm226, %v434, 0
      %v468 = vsel %vm226, %v435, 0
      %v471 = vsel %vm226, %v436, 0
      %v474 = vsel %vm226, %v437, 0
      %v477 = vsel %vm226, %v438, 0
      %v480 = vsel %vm226, %v439, 0
      %v483 = vsel %vm226, %v440, 0
      %v486 = vsel %vm226, %v441, 0
      %v489 = vsel %vm226, %v442, 0
      %v492 = vsel %vm226, %v443, 0
      %vm494 = vcmask 1041408
      %v496 = vsel %vm494, %v445, 0
      %498 = vmatprep.subr.bf16.mxu0 0
      %499 = vmatpush1.bf16.msra.mxu0 0
      %500 = vmatprep.subr.bf16.mxu0 0
      %501 = vmatpush1.bf16.msra.mxu0 0
      %502 = vmatprep.subr.bf16.mxu0 0
      %503 = vmatpush1.bf16.msra.mxu0 0
      %504 = vmatprep.subr.bf16.mxu0 0
      %505 = vmatpush1.bf16.msra.mxu0 0
      %506 = vmatprep.subr.bf16.mxu0 0
      %507 = vmatpush1.bf16.msra.mxu0 0
      %508 = vmatprep.subr.bf16.mxu0 0
      %509 = vmatpush1.bf16.msra.mxu0 0
      %510 = vmatprep.subr.bf16.mxu0 0
      %511 = vmatpush1.bf16.msra.mxu0 0
      %512 = vmatprep.subr.bf16.mxu0 0
      %513 = vmatpush1.bf16.msra.mxu0 %v496
      %514 = vmatprep.subr.bf16.mxu0 0
      %515 = vmatpush2.bf16.msra.mxu0 0
      %516 = vmatprep.subr.bf16.mxu0 0
      %517 = vmatpush2.bf16.msra.mxu0 0
      %518 = vmatprep.subr.bf16.mxu0 0
      %519 = vmatpush2.bf16.msra.mxu0 0
      %520 = vmatprep.subr.bf16.mxu0 0
      %521 = vmatpush2.bf16.msra.mxu0 0
      %522 = vmatprep.subr.bf16.mxu0 0
      %523 = vmatpush2.bf16.msra.mxu0 0
      %524 = vmatprep.subr.bf16.mxu0 0
      %525 = vmatpush2.bf16.msra.mxu0 0
      %526 = vmatprep.subr.bf16.mxu0 0
      %527 = vmatpush2.bf16.msra.mxu0 0
      %528 = vmatprep.subr.bf16.mxu0 0
      %529 = vmatpush2.bf16.msra.mxu0 0
      %530 = vmatprep.mubr.bf16.mxu0 0
      %531 = vmatmul.mubr.bf16.gmra.mxu0 %v447
      %v532 = vpop.f32.mrf.mxu0
      %v533 = vadd.f32 0.0, %v532
      %v534 = vpop.f32.mrf.mxu0
      %v535 = vpop.f32.mrf.mxu0
      %v536 = vadd.f32 0.0, %v535
      %v537 = vpop.f32.mrf.mxu0
      %538 = vmatprep.mubr.bf16.mxu0 0
      %539 = vmatmul.mubr.bf16.gmra.mxu0 %v450
      %v540 = vpop.f32.mrf.mxu0
      %v541 = vadd.f32 0.0, %v540
      %v542 = vpop.f32.mrf.mxu0
      %v543 = vpop.f32.mrf.mxu0
      %v544 = vadd.f32 0.0, %v543
      %v545 = vpop.f32.mrf.mxu0
      %546 = vmatprep.mubr.bf16.mxu0 0
      %547 = vmatmul.mubr.bf16.gmra.mxu0 %v453
      %v548 = vpop.f32.mrf.mxu0
      %v549 = vadd.f32 0.0, %v548
      %v550 = vpop.f32.mrf.mxu0
      %v551 = vpop.f32.mrf.mxu0
      %v552 = vadd.f32 0.0, %v551
      %v553 = vpop.f32.mrf.mxu0
      %554 = vmatprep.mubr.bf16.mxu0 0
      %555 = vmatmul.mubr.bf16.gmra.mxu0 %v456
      %v556 = vpop.f32.mrf.mxu0
      %v557 = vadd.f32 0.0, %v556
      %v558 = vpop.f32.mrf.mxu0
      %v559 = vpop.f32.mrf.mxu0
      %v560 = vadd.f32 0.0, %v559
      %v561 = vpop.f32.mrf.mxu0
      %562 = vmatprep.mubr.bf16.mxu0 0
      %563 = vmatmul.mubr.bf16.gmra.mxu0 %v459
      %v564 = vpop.f32.mrf.mxu0
      %v565 = vadd.f32 0.0, %v564
      %v566 = vpop.f32.mrf.mxu0
      %v567 = vpop.f32.mrf.mxu0
      %v568 = vadd.f32 0.0, %v567
      %v569 = vpop.f32.mrf.mxu0
      %570 = vmatprep.mubr.bf16.mxu0 0
      %571 = vmatmul.mubr.bf16.gmra.mxu0 %v462
      %v572 = vpop.f32.mrf.mxu0
      %v573 = vadd.f32 0.0, %v572
      %v574 = vpop.f32.mrf.mxu0
      %v575 = vpop.f32.mrf.mxu0
      %v576 = vadd.f32 0.0, %v575
      %v577 = vpop.f32.mrf.mxu0
      %578 = vmatprep.mubr.bf16.mxu0 0
      %579 = vmatmul.mubr.bf16.gmra.mxu0 %v465
      %v580 = vpop.f32.mrf.mxu0
      %v581 = vadd.f32 0.0, %v580
      %v582 = vpop.f32.mrf.mxu0
      %v583 = vpop.f32.mrf.mxu0
      %v584 = vadd.f32 0.0, %v583
      %v585 = vpop.f32.mrf.mxu0
      %586 = vmatprep.mubr.bf16.mxu0 0
      %587 = vmatmul.mubr.bf16.gmra.mxu0 %v468
      %v588 = vpop.f32.mrf.mxu0
      %v589 = vadd.f32 0.0, %v588
      %v590 = vpop.f32.mrf.mxu0
      %v591 = vpop.f32.mrf.mxu0
      %v592 = vadd.f32 0.0, %v591
      %v593 = vpop.f32.mrf.mxu0
      %594 = vmatprep.mubr.bf16.mxu0 0
      %595 = vmatmul.mubr.bf16.gmra.mxu0 %v471
      %v596 = vpop.f32.mrf.mxu0
      %v597 = vadd.f32 0.0, %v596
      %v598 = vpop.f32.mrf.mxu0
      %v599 = vpop.f32.mrf.mxu0
      %v600 = vadd.f32 0.0, %v599
      %v601 = vpop.f32.mrf.mxu0
      %602 = vmatprep.mubr.bf16.mxu0 0
      %603 = vmatmul.mubr.bf16.gmra.mxu0 %v474
      %v604 = vpop.f32.mrf.mxu0
      %v605 = vadd.f32 0.0, %v604
      %v606 = vpop.f32.mrf.mxu0
      %v607 = vpop.f32.mrf.mxu0
      %v608 = vadd.f32 0.0, %v607
      %v609 = vpop.f32.mrf.mxu0
      %610 = vmatprep.mubr.bf16.mxu0 0
      %611 = vmatmul.mubr.bf16.gmra.mxu0 %v477
      %v612 = vpop.f32.mrf.mxu0
      %v613 = vadd.f32 0.0, %v612
      %v614 = vpop.f32.mrf.mxu0
      %v615 = vpop.f32.mrf.mxu0
      %v616 = vadd.f32 0.0, %v615
      %v617 = vpop.f32.mrf.mxu0
      %618 = vmatprep.mubr.bf16.mxu0 0
      %619 = vmatmul.mubr.bf16.gmra.mxu0 %v480
      %v620 = vpop.f32.mrf.mxu0
      %v621 = vadd.f32 0.0, %v620
      %v622 = vpop.f32.mrf.mxu0
      %v623 = vpop.f32.mrf.mxu0
      %v624 = vadd.f32 0.0, %v623
      %v625 = vpop.f32.mrf.mxu0
      %626 = vmatprep.mubr.bf16.mxu0 0
      %627 = vmatmul.mubr.bf16.gmra.mxu0 %v483
      %v628 = vpop.f32.mrf.mxu0
      %v629 = vadd.f32 0.0, %v628
      %v630 = vpop.f32.mrf.mxu0
      %v631 = vpop.f32.mrf.mxu0
      %v632 = vadd.f32 0.0, %v631
      %v633 = vpop.f32.mrf.mxu0
      %634 = vmatprep.mubr.bf16.mxu0 0
      %635 = vmatmul.mubr.bf16.gmra.mxu0 %v486
      %v636 = vpop.f32.mrf.mxu0
      %v637 = vadd.f32 0.0, %v636
      %v638 = vpop.f32.mrf.mxu0
      %v639 = vpop.f32.mrf.mxu0
      %v640 = vadd.f32 0.0, %v639
      %v641 = vpop.f32.mrf.mxu0
      %642 = vmatprep.mubr.bf16.mxu0 0
      %643 = vmatmul.mubr.bf16.gmra.mxu0 %v489
      %v644 = vpop.f32.mrf.mxu0
      %v645 = vadd.f32 0.0, %v644
      %v646 = vpop.f32.mrf.mxu0
      %v647 = vpop.f32.mrf.mxu0
      %v648 = vadd.f32 0.0, %v647
      %v649 = vpop.f32.mrf.mxu0
      %650 = vmatprep.mubr.bf16.mxu0 0
      %651 = vmatmul.mubr.bf16.gmra.mxu0 %v492
      %v652 = vpop.f32.mrf.mxu0
      %v653 = vadd.f32 0.0, %v652
      %v654 = vpop.f32.mrf.mxu0
      %v655 = vpop.f32.mrf.mxu0
      %v656 = vadd.f32 0.0, %v655
      %v657 = vpop.f32.mrf.mxu0
      %658 = vdwg.mxu0
      %v660 = vsel %vm226, %v379, 0
      %v663 = vsel %vm226, %v380, 0
      %v666 = vsel %vm226, %v381, 0
      %v669 = vsel %vm226, %v382, 0
      %v672 = vsel %vm226, %v383, 0
      %v675 = vsel %vm226, %v384, 0
      %v678 = vsel %vm226, %v385, 0
      %v681 = vsel %vm226, %v386, 0
      %v684 = vsel %vm226, %v387, 0
      %v687 = vsel %vm226, %v388, 0
      %v690 = vsel %vm226, %v389, 0
      %v693 = vsel %vm226, %v390, 0
      %v696 = vsel %vm226, %v391, 0
      %v699 = vsel %vm226, %v392, 0
      %v702 = vsel %vm226, %v393, 0
      %v705 = vsel %vm226, %v394, 0
      %v708 = vsel %vm494, %v395, 0
      %710 = vmatprep.subr.bf16.mxu0 0
      %711 = vmatpush1.bf16.msra.mxu0 0
      %712 = vmatprep.subr.bf16.mxu0 0
      %713 = vmatpush1.bf16.msra.mxu0 0
      %714 = vmatprep.subr.bf16.mxu0 0
      %715 = vmatpush1.bf16.msra.mxu0 0
      %716 = vmatprep.subr.bf16.mxu0 0
      %717 = vmatpush1.bf16.msra.mxu0 0
      %718 = vmatprep.subr.bf16.mxu0 0
      %719 = vmatpush1.bf16.msra.mxu0 0
      %720 = vmatprep.subr.bf16.mxu0 0
      %721 = vmatpush1.bf16.msra.mxu0 0
      %722 = vmatprep.subr.bf16.mxu0 0
      %723 = vmatpush1.bf16.msra.mxu0 0
      %724 = vmatprep.subr.bf16.mxu0 0
      %725 = vmatpush1.bf16.msra.mxu0 %v708
      %726 = vmatprep.subr.bf16.mxu0 0
      %727 = vmatpush2.bf16.msra.mxu0 0
      %728 = vmatprep.subr.bf16.mxu0 0
      %729 = vmatpush2.bf16.msra.mxu0 0
      %730 = vmatprep.subr.bf16.mxu0 0
      %731 = vmatpush2.bf16.msra.mxu0 0
      %732 = vmatprep.subr.bf16.mxu0 0
      %733 = vmatpush2.bf16.msra.mxu0 0
      %734 = vmatprep.subr.bf16.mxu0 0
      %735 = vmatpush2.bf16.msra.mxu0 0
      %736 = vmatprep.subr.bf16.mxu0 0
      %737 = vmatpush2.bf16.msra.mxu0 0
      %738 = vmatprep.subr.bf16.mxu0 0
      %739 = vmatpush2.bf16.msra.mxu0 0
      %740 = vmatprep.subr.bf16.mxu0 0
      %741 = vmatpush2.bf16.msra.mxu0 0
      %742 = vmatprep.mubr.bf16.mxu0 0
      %743 = vmatmul.mubr.bf16.gmra.mxu0 %v660
      %v744 = vpop.f32.mrf.mxu0
      %v745 = vadd.f32 %v533, %v744
      %v746 = vpop.f32.mrf.mxu0
      %v747 = vpop.f32.mrf.mxu0
      %v748 = vadd.f32 %v536, %v747
      %v749 = vpop.f32.mrf.mxu0
      %750 = vmatprep.mubr.bf16.mxu0 0
      %751 = vmatmul.mubr.bf16.gmra.mxu0 %v663
      %v752 = vpop.f32.mrf.mxu0
      %v753 = vadd.f32 %v541, %v752
      %v754 = vpop.f32.mrf.mxu0
      %v755 = vpop.f32.mrf.mxu0
      %v756 = vadd.f32 %v544, %v755
      %v757 = vpop.f32.mrf.mxu0
      %758 = vmatprep.mubr.bf16.mxu0 0
      %759 = vmatmul.mubr.bf16.gmra.mxu0 %v666
      %v760 = vpop.f32.mrf.mxu0
      %v761 = vadd.f32 %v549, %v760
      %v762 = vpop.f32.mrf.mxu0
      %v763 = vpop.f32.mrf.mxu0
      %v764 = vadd.f32 %v552, %v763
      %v765 = vpop.f32.mrf.mxu0
      %766 = vmatprep.mubr.bf16.mxu0 0
      %767 = vmatmul.mubr.bf16.gmra.mxu0 %v669
      %v768 = vpop.f32.mrf.mxu0
      %v769 = vadd.f32 %v557, %v768
      %v770 = vpop.f32.mrf.mxu0
      %v771 = vpop.f32.mrf.mxu0
      %v772 = vadd.f32 %v560, %v771
      %v773 = vpop.f32.mrf.mxu0
      %774 = vmatprep.mubr.bf16.mxu0 0
      %775 = vmatmul.mubr.bf16.gmra.mxu0 %v672
      %v776 = vpop.f32.mrf.mxu0
      %v777 = vadd.f32 %v565, %v776
      %v778 = vpop.f32.mrf.mxu0
      %v779 = vpop.f32.mrf.mxu0
      %v780 = vadd.f32 %v568, %v779
      %v781 = vpop.f32.mrf.mxu0
      %782 = vmatprep.mubr.bf16.mxu0 0
      %783 = vmatmul.mubr.bf16.gmra.mxu0 %v675
      %v784 = vpop.f32.mrf.mxu0
      %v785 = vadd.f32 %v573, %v784
      %v786 = vpop.f32.mrf.mxu0
      %v787 = vpop.f32.mrf.mxu0
      %v788 = vadd.f32 %v576, %v787
      %v789 = vpop.f32.mrf.mxu0
      %790 = vmatprep.mubr.bf16.mxu0 0
      %791 = vmatmul.mubr.bf16.gmra.mxu0 %v678
      %v792 = vpop.f32.mrf.mxu0
      %v793 = vadd.f32 %v581, %v792
      %v794 = vpop.f32.mrf.mxu0
      %v795 = vpop.f32.mrf.mxu0
      %v796 = vadd.f32 %v584, %v795
      %v797 = vpop.f32.mrf.mxu0
      %798 = vmatprep.mubr.bf16.mxu0 0
      %799 = vmatmul.mubr.bf16.gmra.mxu0 %v681
      %v800 = vpop.f32.mrf.mxu0
      %v801 = vadd.f32 %v589, %v800
      %v802 = vpop.f32.mrf.mxu0
      %v803 = vpop.f32.mrf.mxu0
      %v804 = vadd.f32 %v592, %v803
      %v805 = vpop.f32.mrf.mxu0
      %806 = vmatprep.mubr.bf16.mxu0 0
      %807 = vmatmul.mubr.bf16.gmra.mxu0 %v684
      %v808 = vpop.f32.mrf.mxu0
      %v809 = vadd.f32 %v597, %v808
      %v810 = vpop.f32.mrf.mxu0
      %v811 = vpop.f32.mrf.mxu0
      %v812 = vadd.f32 %v600, %v811
      %v813 = vpop.f32.mrf.mxu0
      %814 = vmatprep.mubr.bf16.mxu0 0
      %815 = vmatmul.mubr.bf16.gmra.mxu0 %v687
      %v816 = vpop.f32.mrf.mxu0
      %v817 = vadd.f32 %v605, %v816
      %v818 = vpop.f32.mrf.mxu0
      %v819 = vpop.f32.mrf.mxu0
      %v820 = vadd.f32 %v608, %v819
      %v821 = vpop.f32.mrf.mxu0
      %822 = vmatprep.mubr.bf16.mxu0 0
      %823 = vmatmul.mubr.bf16.gmra.mxu0 %v690
      %v824 = vpop.f32.mrf.mxu0
      %v825 = vadd.f32 %v613, %v824
      %v826 = vpop.f32.mrf.mxu0
      %v827 = vpop.f32.mrf.mxu0
      %v828 = vadd.f32 %v616, %v827
      %v829 = vpop.f32.mrf.mxu0
      %830 = vmatprep.mubr.bf16.mxu0 0
      %831 = vmatmul.mubr.bf16.gmra.mxu0 %v693
      %v832 = vpop.f32.mrf.mxu0
      %v833 = vadd.f32 %v621, %v832
      %v834 = vpop.f32.mrf.mxu0
      %v835 = vpop.f32.mrf.mxu0
      %v836 = vadd.f32 %v624, %v835
      %v837 = vpop.f32.mrf.mxu0
      %838 = vmatprep.mubr.bf16.mxu0 0
      %839 = vmatmul.mubr.bf16.gmra.mxu0 %v696
      %v840 = vpop.f32.mrf.mxu0
      %v841 = vadd.f32 %v629, %v840
      %v842 = vpop.f32.mrf.mxu0
      %v843 = vpop.f32.mrf.mxu0
      %v844 = vadd.f32 %v632, %v843
      %v845 = vpop.f32.mrf.mxu0
      %846 = vmatprep.mubr.bf16.mxu0 0
      %847 = vmatmul.mubr.bf16.gmra.mxu0 %v699
      %v848 = vpop.f32.mrf.mxu0
      %v849 = vadd.f32 %v637, %v848
      %v850 = vpop.f32.mrf.mxu0
      %v851 = vpop.f32.mrf.mxu0
      %v852 = vadd.f32 %v640, %v851
      %v853 = vpop.f32.mrf.mxu0
      %854 = vmatprep.mubr.bf16.mxu0 0
      %855 = vmatmul.mubr.bf16.gmra.mxu0 %v702
      %v856 = vpop.f32.mrf.mxu0
      %v857 = vadd.f32 %v645, %v856
      %v858 = vpop.f32.mrf.mxu0
      %v859 = vpop.f32.mrf.mxu0
      %v860 = vadd.f32 %v648, %v859
      %v861 = vpop.f32.mrf.mxu0
      %862 = vmatprep.mubr.bf16.mxu0 0
      %863 = vmatmul.mubr.bf16.gmra.mxu0 %v705
      %v864 = vpop.f32.mrf.mxu0
      %v865 = vadd.f32 %v653, %v864
      %v866 = vpop.f32.mrf.mxu0
      %v867 = vpop.f32.mrf.mxu0
      %v868 = vadd.f32 %v656, %v867
      %v869 = vpop.f32.mrf.mxu0
      %870 = vdwg.mxu0
      %v871 = vld [vmem:[#allocation2 + $0x2] sm:$0xff]
      %v872 = vld [vmem:[#allocation2 + $0xa] sm:$0xff]
      %v873 = vld [vmem:[#allocation2 + $0x1a] sm:$0xff]
      %v874 = vld [vmem:[#allocation2 + $0x22] sm:$0xff]
      %v875 = vld [vmem:[#allocation2 + $0x32] sm:$0xff]
      %v876 = vld [vmem:[#allocation2 + $0x3a] sm:$0xff]
      %v877 = vld [vmem:[#allocation2 + $0x4a] sm:$0xff]
      %v878 = vld [vmem:[#allocation2 + $0x52] sm:$0xff]
      %v879 = vld [vmem:[#allocation2 + $0x62] sm:$0xff]
      %v880 = vld [vmem:[#allocation2 + $0x6a] sm:$0xff]
      %v881 = vld [vmem:[#allocation2 + $0x7a] sm:$0xff]
      %v882 = vld [vmem:[#allocation2 + $0x82] sm:$0xff]
      %v883 = vld [vmem:[#allocation2 + $0x92] sm:$0xff]
      %v884 = vld [vmem:[#allocation2 + $0x9a] sm:$0xff]
      %v885 = vld [vmem:[#allocation2 + $0xaa] sm:$0xff]
      %v886 = vld [vmem:[#allocation2 + $0xb2] sm:$0xff]
      %v887 = vld [vmem:[#allocation2 + $0xc2] sm:$0xff]
      %v888 = vld [vmem:[#allocation2 + $0xca] sm:$0xff]
      %v889 = vld [vmem:[#allocation2 + $0xda] sm:$0xff]
      %v890 = vld [vmem:[#allocation2 + $0xe2] sm:$0xff]
      %v891 = vld [vmem:[#allocation2 + $0xf2] sm:$0xff]
      %v892 = vld [vmem:[#allocation2 + $0xfa] sm:$0xff]
      %v893 = vld [vmem:[#allocation2 + $0x10a] sm:$0xff]
      %v894 = vld [vmem:[#allocation2 + $0x112] sm:$0xff]
      %v895 = vld [vmem:[#allocation2 + $0x122] sm:$0xff]
      %v896 = vld [vmem:[#allocation2 + $0x12a] sm:$0xff]
      %v897 = vld [vmem:[#allocation2 + $0x13a] sm:$0xff]
      %v898 = vld [vmem:[#allocation2 + $0x142] sm:$0xff]
      %v899 = vld [vmem:[#allocation2 + $0x152] sm:$0xff]
      %v900 = vld [vmem:[#allocation2 + $0x15a] sm:$0xff]
      %v901 = vld [vmem:[#allocation2 + $0x16a] sm:$0xff]
      %v902 = vld [vmem:[#allocation2 + $0x172] sm:$0xff]
      %v903 = vpack.c.bf16 %v872, %v871
      %v904 = vpack.c.bf16 %v874, %v873
      %v905 = vpack.c.bf16 %v876, %v875
      %v906 = vpack.c.bf16 %v878, %v877
      %v907 = vpack.c.bf16 %v880, %v879
      %v908 = vpack.c.bf16 %v882, %v881
      %v909 = vpack.c.bf16 %v884, %v883
      %v910 = vpack.c.bf16 %v886, %v885
      %v911 = vpack.c.bf16 %v888, %v887
      %v912 = vpack.c.bf16 %v890, %v889
      %v913 = vpack.c.bf16 %v892, %v891
      %v914 = vpack.c.bf16 %v894, %v893
      %v915 = vpack.c.bf16 %v896, %v895
      %v916 = vpack.c.bf16 %v898, %v897
      %v917 = vpack.c.bf16 %v900, %v899
      %v918 = vpack.c.bf16 %v902, %v901
      %s919 = scalar_lea.vmem %s1, 4
      %v920 = vld [vmem:[%s919] sm:$0x3]
      %v922 = vsel %vm226, %v903, 0
      %v925 = vsel %vm226, %v904, 0
      %v928 = vsel %vm226, %v905, 0
      %v931 = vsel %vm226, %v906, 0
      %v934 = vsel %vm226, %v907, 0
      %v937 = vsel %vm226, %v908, 0
      %v940 = vsel %vm226, %v909, 0
      %v943 = vsel %vm226, %v910, 0
      %v946 = vsel %vm226, %v911, 0
      %v949 = vsel %vm226, %v912, 0
      %v952 = vsel %vm226, %v913, 0
      %v955 = vsel %vm226, %v914, 0
      %v958 = vsel %vm226, %v915, 0
      %v961 = vsel %vm226, %v916, 0
      %v964 = vsel %vm226, %v917, 0
      %v967 = vsel %vm226, %v918, 0
      %v970 = vsel %vm494, %v920, 0
      %972 = vmatprep.subr.bf16.mxu0 0
      %973 = vmatpush1.bf16.msra.mxu0 0
      %974 = vmatprep.subr.bf16.mxu0 0
      %975 = vmatpush1.bf16.msra.mxu0 0
      %976 = vmatprep.subr.bf16.mxu0 0
      %977 = vmatpush1.bf16.msra.mxu0 0
      %978 = vmatprep.subr.bf16.mxu0 0
      %979 = vmatpush1.bf16.msra.mxu0 0
      %980 = vmatprep.subr.bf16.mxu0 0
      %981 = vmatpush1.bf16.msra.mxu0 0
      %982 = vmatprep.subr.bf16.mxu0 0
      %983 = vmatpush1.bf16.msra.mxu0 0
      %984 = vmatprep.subr.bf16.mxu0 0
      %985 = vmatpush1.bf16.msra.mxu0 0
      %986 = vmatprep.subr.bf16.mxu0 0
      %987 = vmatpush1.bf16.msra.mxu0 %v970
      %988 = vmatprep.subr.bf16.mxu0 0
      %989 = vmatpush2.bf16.msra.mxu0 0
      %990 = vmatprep.subr.bf16.mxu0 0
      %991 = vmatpush2.bf16.msra.mxu0 0
      %992 = vmatprep.subr.bf16.mxu0 0
      %993 = vmatpush2.bf16.msra.mxu0 0
      %994 = vmatprep.subr.bf16.mxu0 0
      %995 = vmatpush2.bf16.msra.mxu0 0
      %996 = vmatprep.subr.bf16.mxu0 0
      %997 = vmatpush2.bf16.msra.mxu0 0
      %998 = vmatprep.subr.bf16.mxu0 0
      %999 = vmatpush2.bf16.msra.mxu0 0
      %1000 = vmatprep.subr.bf16.mxu0 0
      %1001 = vmatpush2.bf16.msra.mxu0 0
      %1002 = vmatprep.subr.bf16.mxu0 0
      %1003 = vmatpush2.bf16.msra.mxu0 0
      %1004 = vmatprep.mubr.bf16.mxu0 0
      %1005 = vmatmul.mubr.bf16.gmra.mxu0 %v922
      %v1006 = vpop.f32.mrf.mxu0
      %v1007 = vadd.f32 0.0, %v1006
      %v1008 = vpop.f32.mrf.mxu0
      %v1009 = vpop.f32.mrf.mxu0
      %v1010 = vadd.f32 0.0, %v1009
      %v1011 = vpop.f32.mrf.mxu0
      %1012 = vmatprep.mubr.bf16.mxu0 0
      %1013 = vmatmul.mubr.bf16.gmra.mxu0 %v925
      %v1014 = vpop.f32.mrf.mxu0
      %v1015 = vadd.f32 0.0, %v1014
      %v1016 = vpop.f32.mrf.mxu0
      %v1017 = vpop.f32.mrf.mxu0
      %v1018 = vadd.f32 0.0, %v1017
      %v1019 = vpop.f32.mrf.mxu0
      %1020 = vmatprep.mubr.bf16.mxu0 0
      %1021 = vmatmul.mubr.bf16.gmra.mxu0 %v928
      %v1022 = vpop.f32.mrf.mxu0
      %v1023 = vadd.f32 0.0, %v1022
      %v1024 = vpop.f32.mrf.mxu0
      %v1025 = vpop.f32.mrf.mxu0
      %v1026 = vadd.f32 0.0, %v1025
      %v1027 = vpop.f32.mrf.mxu0
      %1028 = vmatprep.mubr.bf16.mxu0 0
      %1029 = vmatmul.mubr.bf16.gmra.mxu0 %v931
      %v1030 = vpop.f32.mrf.mxu0
      %v1031 = vadd.f32 0.0, %v1030
      %v1032 = vpop.f32.mrf.mxu0
      %v1033 = vpop.f32.mrf.mxu0
      %v1034 = vadd.f32 0.0, %v1033
      %v1035 = vpop.f32.mrf.mxu0
      %1036 = vmatprep.mubr.bf16.mxu0 0
      %1037 = vmatmul.mubr.bf16.gmra.mxu0 %v934
      %v1038 = vpop.f32.mrf.mxu0
      %v1039 = vadd.f32 0.0, %v1038
      %v1040 = vpop.f32.mrf.mxu0
      %v1041 = vpop.f32.mrf.mxu0
      %v1042 = vadd.f32 0.0, %v1041
      %v1043 = vpop.f32.mrf.mxu0
      %1044 = vmatprep.mubr.bf16.mxu0 0
      %1045 = vmatmul.mubr.bf16.gmra.mxu0 %v937
      %v1046 = vpop.f32.mrf.mxu0
      %v1047 = vadd.f32 0.0, %v1046
      %v1048 = vpop.f32.mrf.mxu0
      %v1049 = vpop.f32.mrf.mxu0
      %v1050 = vadd.f32 0.0, %v1049
      %v1051 = vpop.f32.mrf.mxu0
      %1052 = vmatprep.mubr.bf16.mxu0 0
      %1053 = vmatmul.mubr.bf16.gmra.mxu0 %v940
      %v1054 = vpop.f32.mrf.mxu0
      %v1055 = vadd.f32 0.0, %v1054
      %v1056 = vpop.f32.mrf.mxu0
      %v1057 = vpop.f32.mrf.mxu0
      %v1058 = vadd.f32 0.0, %v1057
      %v1059 = vpop.f32.mrf.mxu0
      %1060 = vmatprep.mubr.bf16.mxu0 0
      %1061 = vmatmul.mubr.bf16.gmra.mxu0 %v943
      %v1062 = vpop.f32.mrf.mxu0
      %v1063 = vadd.f32 0.0, %v1062
      %v1064 = vpop.f32.mrf.mxu0
      %v1065 = vpop.f32.mrf.mxu0
      %v1066 = vadd.f32 0.0, %v1065
      %v1067 = vpop.f32.mrf.mxu0
      %1068 = vmatprep.mubr.bf16.mxu0 0
      %1069 = vmatmul.mubr.bf16.gmra.mxu0 %v946
      %v1070 = vpop.f32.mrf.mxu0
      %v1071 = vadd.f32 0.0, %v1070
      %v1072 = vpop.f32.mrf.mxu0
      %v1073 = vpop.f32.mrf.mxu0
      %v1074 = vadd.f32 0.0, %v1073
      %v1075 = vpop.f32.mrf.mxu0
      %1076 = vmatprep.mubr.bf16.mxu0 0
      %1077 = vmatmul.mubr.bf16.gmra.mxu0 %v949
      %v1078 = vpop.f32.mrf.mxu0
      %v1079 = vadd.f32 0.0, %v1078
      %v1080 = vpop.f32.mrf.mxu0
      %v1081 = vpop.f32.mrf.mxu0
      %v1082 = vadd.f32 0.0, %v1081
      %v1083 = vpop.f32.mrf.mxu0
      %1084 = vmatprep.mubr.bf16.mxu0 0
      %1085 = vmatmul.mubr.bf16.gmra.mxu0 %v952
      %v1086 = vpop.f32.mrf.mxu0
      %v1087 = vadd.f32 0.0, %v1086
      %v1088 = vpop.f32.mrf.mxu0
      %v1089 = vpop.f32.mrf.mxu0
      %v1090 = vadd.f32 0.0, %v1089
      %v1091 = vpop.f32.mrf.mxu0
      %1092 = vmatprep.mubr.bf16.mxu0 0
      %1093 = vmatmul.mubr.bf16.gmra.mxu0 %v955
      %v1094 = vpop.f32.mrf.mxu0
      %v1095 = vadd.f32 0.0, %v1094
      %v1096 = vpop.f32.mrf.mxu0
      %v1097 = vpop.f32.mrf.mxu0
      %v1098 = vadd.f32 0.0, %v1097
      %v1099 = vpop.f32.mrf.mxu0
      %1100 = vmatprep.mubr.bf16.mxu0 0
      %1101 = vmatmul.mubr.bf16.gmra.mxu0 %v958
      %v1102 = vpop.f32.mrf.mxu0
      %v1103 = vadd.f32 0.0, %v1102
      %v1104 = vpop.f32.mrf.mxu0
      %v1105 = vpop.f32.mrf.mxu0
      %v1106 = vadd.f32 0.0, %v1105
      %v1107 = vpop.f32.mrf.mxu0
      %1108 = vmatprep.mubr.bf16.mxu0 0
      %1109 = vmatmul.mubr.bf16.gmra.mxu0 %v961
      %v1110 = vpop.f32.mrf.mxu0
      %v1111 = vadd.f32 0.0, %v1110
      %v1112 = vpop.f32.mrf.mxu0
      %v1113 = vpop.f32.mrf.mxu0
      %v1114 = vadd.f32 0.0, %v1113
      %v1115 = vpop.f32.mrf.mxu0
      %1116 = vmatprep.mubr.bf16.mxu0 0
      %1117 = vmatmul.mubr.bf16.gmra.mxu0 %v964
      %v1118 = vpop.f32.mrf.mxu0
      %v1119 = vadd.f32 0.0, %v1118
      %v1120 = vpop.f32.mrf.mxu0
      %v1121 = vpop.f32.mrf.mxu0
      %v1122 = vadd.f32 0.0, %v1121
      %v1123 = vpop.f32.mrf.mxu0
      %1124 = vmatprep.mubr.bf16.mxu0 0
      %1125 = vmatmul.mubr.bf16.gmra.mxu0 %v967
      %v1126 = vpop.f32.mrf.mxu0
      %v1127 = vadd.f32 0.0, %v1126
      %v1128 = vpop.f32.mrf.mxu0
      %v1129 = vpop.f32.mrf.mxu0
      %v1130 = vadd.f32 0.0, %v1129
      %v1131 = vpop.f32.mrf.mxu0
      %1132 = vdwg.mxu0
      %v1133 = vadd.f32 %v745, %v1007
      %v1134 = vadd.f32 %v748, %v1010
      %v1135 = vadd.f32 %v753, %v1015
      %v1136 = vadd.f32 %v756, %v1018
      %v1137 = vadd.f32 %v761, %v1023
      %v1138 = vadd.f32 %v764, %v1026
      %v1139 = vadd.f32 %v769, %v1031
      %v1140 = vadd.f32 %v772, %v1034
      %v1141 = vadd.f32 %v777, %v1039
      %v1142 = vadd.f32 %v780, %v1042
      %v1143 = vadd.f32 %v785, %v1047
      %v1144 = vadd.f32 %v788, %v1050
      %v1145 = vadd.f32 %v793, %v1055
      %v1146 = vadd.f32 %v796, %v1058
      %v1147 = vadd.f32 %v801, %v1063
      %v1148 = vadd.f32 %v804, %v1066
      %v1149 = vadd.f32 %v809, %v1071
      %v1150 = vadd.f32 %v812, %v1074
      %v1151 = vadd.f32 %v817, %v1079
      %v1152 = vadd.f32 %v820, %v1082
      %v1153 = vadd.f32 %v825, %v1087
      %v1154 = vadd.f32 %v828, %v1090
      %v1155 = vadd.f32 %v833, %v1095
      %v1156 = vadd.f32 %v836, %v1098
      %v1157 = vadd.f32 %v841, %v1103
      %v1158 = vadd.f32 %v844, %v1106
      %v1159 = vadd.f32 %v849, %v1111
      %v1160 = vadd.f32 %v852, %v1114
      %v1161 = vadd.f32 %v857, %v1119
      %v1162 = vadd.f32 %v860, %v1122
      %v1163 = vadd.f32 %v865, %v1127
      %v1164 = vadd.f32 %v868, %v1130
      %v1165 = vld [vmem:[%s314] sm:$0xff]
      %v1166 = vld [vmem:[%s314 + $0x8] sm:$0xff]
      %v1167 = vld [vmem:[%s314 + $0x18] sm:$0xff]
      %v1168 = vld [vmem:[%s314 + $0x20] sm:$0xff]
      %v1169 = vld [vmem:[%s314 + $0x30] sm:$0xff]
      %v1170 = vld [vmem:[%s314 + $0x38] sm:$0xff]
      %v1171 = vld [vmem:[%s314 + $0x48] sm:$0xff]
      %v1172 = vld [vmem:[%s314 + $0x50] sm:$0xff]
      %v1173 = vld [vmem:[%s314 + $0x60] sm:$0xff]
      %v1174 = vld [vmem:[%s314 + $0x68] sm:$0xff]
      %v1175 = vld [vmem:[%s314 + $0x78] sm:$0xff]
      %v1176 = vld [vmem:[%s314 + $0x80] sm:$0xff]
      %v1177 = vld [vmem:[%s314 + $0x90] sm:$0xff]
      %v1178 = vld [vmem:[%s314 + $0x98] sm:$0xff]
      %v1179 = vld [vmem:[%s314 + $0xa8] sm:$0xff]
      %v1180 = vld [vmem:[%s314 + $0xb0] sm:$0xff]
      %v1181 = vld [vmem:[%s314 + $0xc0] sm:$0xff]
      %v1182 = vld [vmem:[%s314 + $0xc8] sm:$0xff]
      %v1183 = vld [vmem:[%s314 + $0xd8] sm:$0xff]
      %v1184 = vld [vmem:[%s314 + $0xe0] sm:$0xff]
      %v1185 = vld [vmem:[%s314 + $0xf0] sm:$0xff]
      %v1186 = vld [vmem:[%s314 + $0xf8] sm:$0xff]
      %v1187 = vld [vmem:[%s314 + $0x108] sm:$0xff]
      %v1188 = vld [vmem:[%s314 + $0x110] sm:$0xff]
      %v1189 = vld [vmem:[%s314 + $0x120] sm:$0xff]
      %v1190 = vld [vmem:[%s314 + $0x128] sm:$0xff]
      %v1191 = vld [vmem:[%s314 + $0x138] sm:$0xff]
      %v1192 = vld [vmem:[%s314 + $0x140] sm:$0xff]
      %v1193 = vld [vmem:[%s314 + $0x150] sm:$0xff]
      %v1194 = vld [vmem:[%s314 + $0x158] sm:$0xff]
      %v1195 = vld [vmem:[%s314 + $0x168] sm:$0xff]
      %v1196 = vld [vmem:[%s314 + $0x170] sm:$0xff]
      %v1197 = vpack.c.bf16 %v1166, %v1165
      %v1198 = vpack.c.bf16 %v1168, %v1167
      %v1199 = vpack.c.bf16 %v1170, %v1169
      %v1200 = vpack.c.bf16 %v1172, %v1171
      %v1201 = vpack.c.bf16 %v1174, %v1173
      %v1202 = vpack.c.bf16 %v1176, %v1175
      %v1203 = vpack.c.bf16 %v1178, %v1177
      %v1204 = vpack.c.bf16 %v1180, %v1179
      %v1205 = vpack.c.bf16 %v1182, %v1181
      %v1206 = vpack.c.bf16 %v1184, %v1183
      %v1207 = vpack.c.bf16 %v1186, %v1185
      %v1208 = vpack.c.bf16 %v1188, %v1187
      %v1209 = vpack.c.bf16 %v1190, %v1189
      %v1210 = vpack.c.bf16 %v1192, %v1191
      %v1211 = vpack.c.bf16 %v1194, %v1193
      %v1212 = vpack.c.bf16 %v1196, %v1195
      %s1213 = scalar_lea.vmem %s1, 6
      %v1214 = vld [vmem:[%s1213] sm:$0x3]
      %v1216 = vsel %vm226, %v1197, 0
      %v1219 = vsel %vm226, %v1198, 0
      %v1222 = vsel %vm226, %v1199, 0
      %v1225 = vsel %vm226, %v1200, 0
      %v1228 = vsel %vm226, %v1201, 0
      %v1231 = vsel %vm226, %v1202, 0
      %v1234 = vsel %vm226, %v1203, 0
      %v1237 = vsel %vm226, %v1204, 0
      %v1240 = vsel %vm226, %v1205, 0
      %v1243 = vsel %vm226, %v1206, 0
      %v1246 = vsel %vm226, %v1207, 0
      %v1249 = vsel %vm226, %v1208, 0
      %v1252 = vsel %vm226, %v1209, 0
      %v1255 = vsel %vm226, %v1210, 0
      %v1258 = vsel %vm226, %v1211, 0
      %v1261 = vsel %vm226, %v1212, 0
      %v1264 = vsel %vm494, %v1214, 0
      %1266 = vmatprep.subr.bf16.mxu0 0
      %1267 = vmatpush1.bf16.msra.mxu0 0
      %1268 = vmatprep.subr.bf16.mxu0 0
      %1269 = vmatpush1.bf16.msra.mxu0 0
      %1270 = vmatprep.subr.bf16.mxu0 0
      %1271 = vmatpush1.bf16.msra.mxu0 0
      %1272 = vmatprep.subr.bf16.mxu0 0
      %1273 = vmatpush1.bf16.msra.mxu0 0
      %1274 = vmatprep.subr.bf16.mxu0 0
      %1275 = vmatpush1.bf16.msra.mxu0 0
      %1276 = vmatprep.subr.bf16.mxu0 0
      %1277 = vmatpush1.bf16.msra.mxu0 0
      %1278 = vmatprep.subr.bf16.mxu0 0
      %1279 = vmatpush1.bf16.msra.mxu0 0
      %1280 = vmatprep.subr.bf16.mxu0 0
      %1281 = vmatpush1.bf16.msra.mxu0 %v1264
      %1282 = vmatprep.subr.bf16.mxu0 0
      %1283 = vmatpush2.bf16.msra.mxu0 0
      %1284 = vmatprep.subr.bf16.mxu0 0
      %1285 = vmatpush2.bf16.msra.mxu0 0
      %1286 = vmatprep.subr.bf16.mxu0 0
      %1287 = vmatpush2.bf16.msra.mxu0 0
      %1288 = vmatprep.subr.bf16.mxu0 0
      %1289 = vmatpush2.bf16.msra.mxu0 0
      %1290 = vmatprep.subr.bf16.mxu0 0
      %1291 = vmatpush2.bf16.msra.mxu0 0
      %1292 = vmatprep.subr.bf16.mxu0 0
      %1293 = vmatpush2.bf16.msra.mxu0 0
      %1294 = vmatprep.subr.bf16.mxu0 0
      %1295 = vmatpush2.bf16.msra.mxu0 0
      %1296 = vmatprep.subr.bf16.mxu0 0
      %1297 = vmatpush2.bf16.msra.mxu0 0
      %1298 = vmatprep.mubr.bf16.mxu0 0
      %1299 = vmatmul.mubr.bf16.gmra.mxu0 %v1216
      %v1300 = vpop.f32.mrf.mxu0
      %v1301 = vadd.f32 0.0, %v1300
      %v1302 = vpop.f32.mrf.mxu0
      %v1303 = vpop.f32.mrf.mxu0
      %v1304 = vadd.f32 0.0, %v1303
      %v1305 = vpop.f32.mrf.mxu0
      %1306 = vmatprep.mubr.bf16.mxu0 0
      %1307 = vmatmul.mubr.bf16.gmra.mxu0 %v1219
      %v1308 = vpop.f32.mrf.mxu0
      %v1309 = vadd.f32 0.0, %v1308
      %v1310 = vpop.f32.mrf.mxu0
      %v1311 = vpop.f32.mrf.mxu0
      %v1312 = vadd.f32 0.0, %v1311
      %v1313 = vpop.f32.mrf.mxu0
      %1314 = vmatprep.mubr.bf16.mxu0 0
      %1315 = vmatmul.mubr.bf16.gmra.mxu0 %v1222
      %v1316 = vpop.f32.mrf.mxu0
      %v1317 = vadd.f32 0.0, %v1316
      %v1318 = vpop.f32.mrf.mxu0
      %v1319 = vpop.f32.mrf.mxu0
      %v1320 = vadd.f32 0.0, %v1319
      %v1321 = vpop.f32.mrf.mxu0
      %1322 = vmatprep.mubr.bf16.mxu0 0
      %1323 = vmatmul.mubr.bf16.gmra.mxu0 %v1225
      %v1324 = vpop.f32.mrf.mxu0
      %v1325 = vadd.f32 0.0, %v1324
      %v1326 = vpop.f32.mrf.mxu0
      %v1327 = vpop.f32.mrf.mxu0
      %v1328 = vadd.f32 0.0, %v1327
      %v1329 = vpop.f32.mrf.mxu0
      %1330 = vmatprep.mubr.bf16.mxu0 0
      %1331 = vmatmul.mubr.bf16.gmra.mxu0 %v1228
      %v1332 = vpop.f32.mrf.mxu0
      %v1333 = vadd.f32 0.0, %v1332
      %v1334 = vpop.f32.mrf.mxu0
      %v1335 = vpop.f32.mrf.mxu0
      %v1336 = vadd.f32 0.0, %v1335
      %v1337 = vpop.f32.mrf.mxu0
      %1338 = vmatprep.mubr.bf16.mxu0 0
      %1339 = vmatmul.mubr.bf16.gmra.mxu0 %v1231
      %v1340 = vpop.f32.mrf.mxu0
      %v1341 = vadd.f32 0.0, %v1340
      %v1342 = vpop.f32.mrf.mxu0
      %v1343 = vpop.f32.mrf.mxu0
      %v1344 = vadd.f32 0.0, %v1343
      %v1345 = vpop.f32.mrf.mxu0
      %1346 = vmatprep.mubr.bf16.mxu0 0
      %1347 = vmatmul.mubr.bf16.gmra.mxu0 %v1234
      %v1348 = vpop.f32.mrf.mxu0
      %v1349 = vadd.f32 0.0, %v1348
      %v1350 = vpop.f32.mrf.mxu0
      %v1351 = vpop.f32.mrf.mxu0
      %v1352 = vadd.f32 0.0, %v1351
      %v1353 = vpop.f32.mrf.mxu0
      %1354 = vmatprep.mubr.bf16.mxu0 0
      %1355 = vmatmul.mubr.bf16.gmra.mxu0 %v1237
      %v1356 = vpop.f32.mrf.mxu0
      %v1357 = vadd.f32 0.0, %v1356
      %v1358 = vpop.f32.mrf.mxu0
      %v1359 = vpop.f32.mrf.mxu0
      %v1360 = vadd.f32 0.0, %v1359
      %v1361 = vpop.f32.mrf.mxu0
      %1362 = vmatprep.mubr.bf16.mxu0 0
      %1363 = vmatmul.mubr.bf16.gmra.mxu0 %v1240
      %v1364 = vpop.f32.mrf.mxu0
      %v1365 = vadd.f32 0.0, %v1364
      %v1366 = vpop.f32.mrf.mxu0
      %v1367 = vpop.f32.mrf.mxu0
      %v1368 = vadd.f32 0.0, %v1367
      %v1369 = vpop.f32.mrf.mxu0
      %1370 = vmatprep.mubr.bf16.mxu0 0
      %1371 = vmatmul.mubr.bf16.gmra.mxu0 %v1243
      %v1372 = vpop.f32.mrf.mxu0
      %v1373 = vadd.f32 0.0, %v1372
      %v1374 = vpop.f32.mrf.mxu0
      %v1375 = vpop.f32.mrf.mxu0
      %v1376 = vadd.f32 0.0, %v1375
      %v1377 = vpop.f32.mrf.mxu0
      %1378 = vmatprep.mubr.bf16.mxu0 0
      %1379 = vmatmul.mubr.bf16.gmra.mxu0 %v1246
      %v1380 = vpop.f32.mrf.mxu0
      %v1381 = vadd.f32 0.0, %v1380
      %v1382 = vpop.f32.mrf.mxu0
      %v1383 = vpop.f32.mrf.mxu0
      %v1384 = vadd.f32 0.0, %v1383
      %v1385 = vpop.f32.mrf.mxu0
      %1386 = vmatprep.mubr.bf16.mxu0 0
      %1387 = vmatmul.mubr.bf16.gmra.mxu0 %v1249
      %v1388 = vpop.f32.mrf.mxu0
      %v1389 = vadd.f32 0.0, %v1388
      %v1390 = vpop.f32.mrf.mxu0
      %v1391 = vpop.f32.mrf.mxu0
      %v1392 = vadd.f32 0.0, %v1391
      %v1393 = vpop.f32.mrf.mxu0
      %1394 = vmatprep.mubr.bf16.mxu0 0
      %1395 = vmatmul.mubr.bf16.gmra.mxu0 %v1252
      %v1396 = vpop.f32.mrf.mxu0
      %v1397 = vadd.f32 0.0, %v1396
      %v1398 = vpop.f32.mrf.mxu0
      %v1399 = vpop.f32.mrf.mxu0
      %v1400 = vadd.f32 0.0, %v1399
      %v1401 = vpop.f32.mrf.mxu0
      %1402 = vmatprep.mubr.bf16.mxu0 0
      %1403 = vmatmul.mubr.bf16.gmra.mxu0 %v1255
      %v1404 = vpop.f32.mrf.mxu0
      %v1405 = vadd.f32 0.0, %v1404
      %v1406 = vpop.f32.mrf.mxu0
      %v1407 = vpop.f32.mrf.mxu0
      %v1408 = vadd.f32 0.0, %v1407
      %v1409 = vpop.f32.mrf.mxu0
      %1410 = vmatprep.mubr.bf16.mxu0 0
      %1411 = vmatmul.mubr.bf16.gmra.mxu0 %v1258
      %v1412 = vpop.f32.mrf.mxu0
      %v1413 = vadd.f32 0.0, %v1412
      %v1414 = vpop.f32.mrf.mxu0
      %v1415 = vpop.f32.mrf.mxu0
      %v1416 = vadd.f32 0.0, %v1415
      %v1417 = vpop.f32.mrf.mxu0
      %1418 = vmatprep.mubr.bf16.mxu0 0
      %1419 = vmatmul.mubr.bf16.gmra.mxu0 %v1261
      %v1420 = vpop.f32.mrf.mxu0
      %v1421 = vadd.f32 0.0, %v1420
      %v1422 = vpop.f32.mrf.mxu0
      %v1423 = vpop.f32.mrf.mxu0
      %v1424 = vadd.f32 0.0, %v1423
      %v1425 = vpop.f32.mrf.mxu0
      %1426 = vdwg.mxu0
      %v1427 = vadd.f32 %v1133, %v1301
      %v1428 = vadd.f32 %v1134, %v1304
      %v1429 = vadd.f32 %v1135, %v1309
      %v1430 = vadd.f32 %v1136, %v1312
      %v1431 = vadd.f32 %v1137, %v1317
      %v1432 = vadd.f32 %v1138, %v1320
      %v1433 = vadd.f32 %v1139, %v1325
      %v1434 = vadd.f32 %v1140, %v1328
      %v1435 = vadd.f32 %v1141, %v1333
      %v1436 = vadd.f32 %v1142, %v1336
      %v1437 = vadd.f32 %v1143, %v1341
      %v1438 = vadd.f32 %v1144, %v1344
      %v1439 = vadd.f32 %v1145, %v1349
      %v1440 = vadd.f32 %v1146, %v1352
      %v1441 = vadd.f32 %v1147, %v1357
      %v1442 = vadd.f32 %v1148, %v1360
      %v1443 = vadd.f32 %v1149, %v1365
      %v1444 = vadd.f32 %v1150, %v1368
      %v1445 = vadd.f32 %v1151, %v1373
      %v1446 = vadd.f32 %v1152, %v1376
      %v1447 = vadd.f32 %v1153, %v1381
      %v1448 = vadd.f32 %v1154, %v1384
      %v1449 = vadd.f32 %v1155, %v1389
      %v1450 = vadd.f32 %v1156, %v1392
      %v1451 = vadd.f32 %v1157, %v1397
      %v1452 = vadd.f32 %v1158, %v1400
      %v1453 = vadd.f32 %v1159, %v1405
      %v1454 = vadd.f32 %v1160, %v1408
      %v1455 = vadd.f32 %v1161, %v1413
      %v1456 = vadd.f32 %v1162, %v1416
      %v1457 = vadd.f32 %v1163, %v1421
      %v1458 = vadd.f32 %v1164, %v1424
      %v1459 = vld [vmem:[%s314 + $0x1] sm:$0xff]
      %v1460 = vld [vmem:[%s314 + $0x9] sm:$0xff]
      %v1461 = vld [vmem:[%s314 + $0x19] sm:$0xff]
      %v1462 = vld [vmem:[%s314 + $0x21] sm:$0xff]
      %v1463 = vld [vmem:[%s314 + $0x31] sm:$0xff]
      %v1464 = vld [vmem:[%s314 + $0x39] sm:$0xff]
      %v1465 = vld [vmem:[%s314 + $0x49] sm:$0xff]
      %v1466 = vld [vmem:[%s314 + $0x51] sm:$0xff]
      %v1467 = vld [vmem:[%s314 + $0x61] sm:$0xff]
      %v1468 = vld [vmem:[%s314 + $0x69] sm:$0xff]
      %v1469 = vld [vmem:[%s314 + $0x79] sm:$0xff]
      %v1470 = vld [vmem:[%s314 + $0x81] sm:$0xff]
      %v1471 = vld [vmem:[%s314 + $0x91] sm:$0xff]
      %v1472 = vld [vmem:[%s314 + $0x99] sm:$0xff]
      %v1473 = vld [vmem:[%s314 + $0xa9] sm:$0xff]
      %v1474 = vld [vmem:[%s314 + $0xb1] sm:$0xff]
      %v1475 = vld [vmem:[%s314 + $0xc1] sm:$0xff]
      %v1476 = vld [vmem:[%s314 + $0xc9] sm:$0xff]
      %v1477 = vld [vmem:[%s314 + $0xd9] sm:$0xff]
      %v1478 = vld [vmem:[%s314 + $0xe1] sm:$0xff]
      %v1479 = vld [vmem:[%s314 + $0xf1] sm:$0xff]
      %v1480 = vld [vmem:[%s314 + $0xf9] sm:$0xff]
      %v1481 = vld [vmem:[%s314 + $0x109] sm:$0xff]
      %v1482 = vld [vmem:[%s314 + $0x111] sm:$0xff]
      %v1483 = vld [vmem:[%s314 + $0x121] sm:$0xff]
      %v1484 = vld [vmem:[%s314 + $0x129] sm:$0xff]
      %v1485 = vld [vmem:[%s314 + $0x139] sm:$0xff]
      %v1486 = vld [vmem:[%s314 + $0x141] sm:$0xff]
      %v1487 = vld [vmem:[%s314 + $0x151] sm:$0xff]
      %v1488 = vld [vmem:[%s314 + $0x159] sm:$0xff]
      %v1489 = vld [vmem:[%s314 + $0x169] sm:$0xff]
      %v1490 = vld [vmem:[%s314 + $0x171] sm:$0xff]
      %v1491 = vpack.c.bf16 %v1460, %v1459
      %v1492 = vpack.c.bf16 %v1462, %v1461
      %v1493 = vpack.c.bf16 %v1464, %v1463
      %v1494 = vpack.c.bf16 %v1466, %v1465
      %v1495 = vpack.c.bf16 %v1468, %v1467
      %v1496 = vpack.c.bf16 %v1470, %v1469
      %v1497 = vpack.c.bf16 %v1472, %v1471
      %v1498 = vpack.c.bf16 %v1474, %v1473
      %v1499 = vpack.c.bf16 %v1476, %v1475
      %v1500 = vpack.c.bf16 %v1478, %v1477
      %v1501 = vpack.c.bf16 %v1480, %v1479
      %v1502 = vpack.c.bf16 %v1482, %v1481
      %v1503 = vpack.c.bf16 %v1484, %v1483
      %v1504 = vpack.c.bf16 %v1486, %v1485
      %v1505 = vpack.c.bf16 %v1488, %v1487
      %v1506 = vpack.c.bf16 %v1490, %v1489
      %s1507 = scalar_lea.vmem %s1, 8
      %v1508 = vld [vmem:[%s1507] sm:$0x3]
      %v1510 = vsel %vm226, %v1491, 0
      %v1513 = vsel %vm226, %v1492, 0
      %v1516 = vsel %vm226, %v1493, 0
      %v1519 = vsel %vm226, %v1494, 0
      %v1522 = vsel %vm226, %v1495, 0
      %v1525 = vsel %vm226, %v1496, 0
      %v1528 = vsel %vm226, %v1497, 0
      %v1531 = vsel %vm226, %v1498, 0
      %v1534 = vsel %vm226, %v1499, 0
      %v1537 = vsel %vm226, %v1500, 0
      %v1540 = vsel %vm226, %v1501, 0
      %v1543 = vsel %vm226, %v1502, 0
      %v1546 = vsel %vm226, %v1503, 0
      %v1549 = vsel %vm226, %v1504, 0
      %v1552 = vsel %vm226, %v1505, 0
      %v1555 = vsel %vm226, %v1506, 0
      %v1558 = vsel %vm494, %v1508, 0
      %1560 = vmatprep.subr.bf16.mxu0 0
      %1561 = vmatpush1.bf16.msra.mxu0 0
      %1562 = vmatprep.subr.bf16.mxu0 0
      %1563 = vmatpush1.bf16.msra.mxu0 0
      %1564 = vmatprep.subr.bf16.mxu0 0
      %1565 = vmatpush1.bf16.msra.mxu0 0
      %1566 = vmatprep.subr.bf16.mxu0 0
      %1567 = vmatpush1.bf16.msra.mxu0 0
      %1568 = vmatprep.subr.bf16.mxu0 0
      %1569 = vmatpush1.bf16.msra.mxu0 0
      %1570 = vmatprep.subr.bf16.mxu0 0
      %1571 = vmatpush1.bf16.msra.mxu0 0
      %1572 = vmatprep.subr.bf16.mxu0 0
      %1573 = vmatpush1.bf16.msra.mxu0 0
      %1574 = vmatprep.subr.bf16.mxu0 0
      %1575 = vmatpush1.bf16.msra.mxu0 %v1558
      %1576 = vmatprep.subr.bf16.mxu0 0
      %1577 = vmatpush2.bf16.msra.mxu0 0
      %1578 = vmatprep.subr.bf16.mxu0 0
      %1579 = vmatpush2.bf16.msra.mxu0 0
      %1580 = vmatprep.subr.bf16.mxu0 0
      %1581 = vmatpush2.bf16.msra.mxu0 0
      %1582 = vmatprep.subr.bf16.mxu0 0
      %1583 = vmatpush2.bf16.msra.mxu0 0
      %1584 = vmatprep.subr.bf16.mxu0 0
      %1585 = vmatpush2.bf16.msra.mxu0 0
      %1586 = vmatprep.subr.bf16.mxu0 0
      %1587 = vmatpush2.bf16.msra.mxu0 0
      %1588 = vmatprep.subr.bf16.mxu0 0
      %1589 = vmatpush2.bf16.msra.mxu0 0
      %1590 = vmatprep.subr.bf16.mxu0 0
      %1591 = vmatpush2.bf16.msra.mxu0 0
      %1592 = vmatprep.mubr.bf16.mxu0 0
      %1593 = vmatmul.mubr.bf16.gmra.mxu0 %v1510
      %v1594 = vpop.f32.mrf.mxu0
      %v1595 = vadd.f32 0.0, %v1594
      %v1596 = vpop.f32.mrf.mxu0
      %v1597 = vpop.f32.mrf.mxu0
      %v1598 = vadd.f32 0.0, %v1597
      %v1599 = vpop.f32.mrf.mxu0
      %1600 = vmatprep.mubr.bf16.mxu0 0
      %1601 = vmatmul.mubr.bf16.gmra.mxu0 %v1513
      %v1602 = vpop.f32.mrf.mxu0
      %v1603 = vadd.f32 0.0, %v1602
      %v1604 = vpop.f32.mrf.mxu0
      %v1605 = vpop.f32.mrf.mxu0
      %v1606 = vadd.f32 0.0, %v1605
      %v1607 = vpop.f32.mrf.mxu0
      %1608 = vmatprep.mubr.bf16.mxu0 0
      %1609 = vmatmul.mubr.bf16.gmra.mxu0 %v1516
      %v1610 = vpop.f32.mrf.mxu0
      %v1611 = vadd.f32 0.0, %v1610
      %v1612 = vpop.f32.mrf.mxu0
      %v1613 = vpop.f32.mrf.mxu0
      %v1614 = vadd.f32 0.0, %v1613
      %v1615 = vpop.f32.mrf.mxu0
      %1616 = vmatprep.mubr.bf16.mxu0 0
      %1617 = vmatmul.mubr.bf16.gmra.mxu0 %v1519
      %v1618 = vpop.f32.mrf.mxu0
      %v1619 = vadd.f32 0.0, %v1618
      %v1620 = vpop.f32.mrf.mxu0
      %v1621 = vpop.f32.mrf.mxu0
      %v1622 = vadd.f32 0.0, %v1621
      %v1623 = vpop.f32.mrf.mxu0
      %1624 = vmatprep.mubr.bf16.mxu0 0
      %1625 = vmatmul.mubr.bf16.gmra.mxu0 %v1522
      %v1626 = vpop.f32.mrf.mxu0
      %v1627 = vadd.f32 0.0, %v1626
      %v1628 = vpop.f32.mrf.mxu0
      %v1629 = vpop.f32.mrf.mxu0
      %v1630 = vadd.f32 0.0, %v1629
      %v1631 = vpop.f32.mrf.mxu0
      %1632 = vmatprep.mubr.bf16.mxu0 0
      %1633 = vmatmul.mubr.bf16.gmra.mxu0 %v1525
      %v1634 = vpop.f32.mrf.mxu0
      %v1635 = vadd.f32 0.0, %v1634
      %v1636 = vpop.f32.mrf.mxu0
      %v1637 = vpop.f32.mrf.mxu0
      %v1638 = vadd.f32 0.0, %v1637
      %v1639 = vpop.f32.mrf.mxu0
      %1640 = vmatprep.mubr.bf16.mxu0 0
      %1641 = vmatmul.mubr.bf16.gmra.mxu0 %v1528
      %v1642 = vpop.f32.mrf.mxu0
      %v1643 = vadd.f32 0.0, %v1642
      %v1644 = vpop.f32.mrf.mxu0
      %v1645 = vpop.f32.mrf.mxu0
      %v1646 = vadd.f32 0.0, %v1645
      %v1647 = vpop.f32.mrf.mxu0
      %1648 = vmatprep.mubr.bf16.mxu0 0
      %1649 = vmatmul.mubr.bf16.gmra.mxu0 %v1531
      %v1650 = vpop.f32.mrf.mxu0
      %v1651 = vadd.f32 0.0, %v1650
      %v1652 = vpop.f32.mrf.mxu0
      %v1653 = vpop.f32.mrf.mxu0
      %v1654 = vadd.f32 0.0, %v1653
      %v1655 = vpop.f32.mrf.mxu0
      %1656 = vmatprep.mubr.bf16.mxu0 0
      %1657 = vmatmul.mubr.bf16.gmra.mxu0 %v1534
      %v1658 = vpop.f32.mrf.mxu0
      %v1659 = vadd.f32 0.0, %v1658
      %v1660 = vpop.f32.mrf.mxu0
      %v1661 = vpop.f32.mrf.mxu0
      %v1662 = vadd.f32 0.0, %v1661
      %v1663 = vpop.f32.mrf.mxu0
      %1664 = vmatprep.mubr.bf16.mxu0 0
      %1665 = vmatmul.mubr.bf16.gmra.mxu0 %v1537
      %v1666 = vpop.f32.mrf.mxu0
      %v1667 = vadd.f32 0.0, %v1666
      %v1668 = vpop.f32.mrf.mxu0
      %v1669 = vpop.f32.mrf.mxu0
      %v1670 = vadd.f32 0.0, %v1669
      %v1671 = vpop.f32.mrf.mxu0
      %1672 = vmatprep.mubr.bf16.mxu0 0
      %1673 = vmatmul.mubr.bf16.gmra.mxu0 %v1540
      %v1674 = vpop.f32.mrf.mxu0
      %v1675 = vadd.f32 0.0, %v1674
      %v1676 = vpop.f32.mrf.mxu0
      %v1677 = vpop.f32.mrf.mxu0
      %v1678 = vadd.f32 0.0, %v1677
      %v1679 = vpop.f32.mrf.mxu0
      %1680 = vmatprep.mubr.bf16.mxu0 0
      %1681 = vmatmul.mubr.bf16.gmra.mxu0 %v1543
      %v1682 = vpop.f32.mrf.mxu0
      %v1683 = vadd.f32 0.0, %v1682
      %v1684 = vpop.f32.mrf.mxu0
      %v1685 = vpop.f32.mrf.mxu0
      %v1686 = vadd.f32 0.0, %v1685
      %v1687 = vpop.f32.mrf.mxu0
      %1688 = vmatprep.mubr.bf16.mxu0 0
      %1689 = vmatmul.mubr.bf16.gmra.mxu0 %v1546
      %v1690 = vpop.f32.mrf.mxu0
      %v1691 = vadd.f32 0.0, %v1690
      %v1692 = vpop.f32.mrf.mxu0
      %v1693 = vpop.f32.mrf.mxu0
      %v1694 = vadd.f32 0.0, %v1693
      %v1695 = vpop.f32.mrf.mxu0
      %1696 = vmatprep.mubr.bf16.mxu0 0
      %1697 = vmatmul.mubr.bf16.gmra.mxu0 %v1549
      %v1698 = vpop.f32.mrf.mxu0
      %v1699 = vadd.f32 0.0, %v1698
      %v1700 = vpop.f32.mrf.mxu0
      %v1701 = vpop.f32.mrf.mxu0
      %v1702 = vadd.f32 0.0, %v1701
      %v1703 = vpop.f32.mrf.mxu0
      %1704 = vmatprep.mubr.bf16.mxu0 0
      %1705 = vmatmul.mubr.bf16.gmra.mxu0 %v1552
      %v1706 = vpop.f32.mrf.mxu0
      %v1707 = vadd.f32 0.0, %v1706
      %v1708 = vpop.f32.mrf.mxu0
      %v1709 = vpop.f32.mrf.mxu0
      %v1710 = vadd.f32 0.0, %v1709
      %v1711 = vpop.f32.mrf.mxu0
      %1712 = vmatprep.mubr.bf16.mxu0 0
      %1713 = vmatmul.mubr.bf16.gmra.mxu0 %v1555
      %v1714 = vpop.f32.mrf.mxu0
      %v1715 = vadd.f32 0.0, %v1714
      %v1716 = vpop.f32.mrf.mxu0
      %v1717 = vpop.f32.mrf.mxu0
      %v1718 = vadd.f32 0.0, %v1717
      %v1719 = vpop.f32.mrf.mxu0
      %1720 = vdwg.mxu0
      %v1721 = vadd.f32 %v1427, %v1595
      %v1722 = vadd.f32 %v1428, %v1598
      %v1723 = vadd.f32 %v1429, %v1603
      %v1724 = vadd.f32 %v1430, %v1606
      %v1725 = vadd.f32 %v1431, %v1611
      %v1726 = vadd.f32 %v1432, %v1614
      %v1727 = vadd.f32 %v1433, %v1619
      %v1728 = vadd.f32 %v1434, %v1622
      %v1729 = vadd.f32 %v1435, %v1627
      %v1730 = vadd.f32 %v1436, %v1630
      %v1731 = vadd.f32 %v1437, %v1635
      %v1732 = vadd.f32 %v1438, %v1638
      %v1733 = vadd.f32 %v1439, %v1643
      %v1734 = vadd.f32 %v1440, %v1646
      %v1735 = vadd.f32 %v1441, %v1651
      %v1736 = vadd.f32 %v1442, %v1654
      %v1737 = vadd.f32 %v1443, %v1659
      %v1738 = vadd.f32 %v1444, %v1662
      %v1739 = vadd.f32 %v1445, %v1667
      %v1740 = vadd.f32 %v1446, %v1670
      %v1741 = vadd.f32 %v1447, %v1675
      %v1742 = vadd.f32 %v1448, %v1678
      %v1743 = vadd.f32 %v1449, %v1683
      %v1744 = vadd.f32 %v1450, %v1686
      %v1745 = vadd.f32 %v1451, %v1691
      %v1746 = vadd.f32 %v1452, %v1694
      %v1747 = vadd.f32 %v1453, %v1699
      %v1748 = vadd.f32 %v1454, %v1702
      %v1749 = vadd.f32 %v1455, %v1707
      %v1750 = vadd.f32 %v1456, %v1710
      %v1751 = vadd.f32 %v1457, %v1715
      %v1752 = vadd.f32 %v1458, %v1718
      %v1753 = vld [vmem:[%s314 + $0x2] sm:$0xff]
      %v1754 = vld [vmem:[%s314 + $0xa] sm:$0xff]
      %v1755 = vld [vmem:[%s314 + $0x1a] sm:$0xff]
      %v1756 = vld [vmem:[%s314 + $0x22] sm:$0xff]
      %v1757 = vld [vmem:[%s314 + $0x32] sm:$0xff]
      %v1758 = vld [vmem:[%s314 + $0x3a] sm:$0xff]
      %v1759 = vld [vmem:[%s314 + $0x4a] sm:$0xff]
      %v1760 = vld [vmem:[%s314 + $0x52] sm:$0xff]
      %v1761 = vld [vmem:[%s314 + $0x62] sm:$0xff]
      %v1762 = vld [vmem:[%s314 + $0x6a] sm:$0xff]
      %v1763 = vld [vmem:[%s314 + $0x7a] sm:$0xff]
      %v1764 = vld [vmem:[%s314 + $0x82] sm:$0xff]
      %v1765 = vld [vmem:[%s314 + $0x92] sm:$0xff]
      %v1766 = vld [vmem:[%s314 + $0x9a] sm:$0xff]
      %v1767 = vld [vmem:[%s314 + $0xaa] sm:$0xff]
      %v1768 = vld [vmem:[%s314 + $0xb2] sm:$0xff]
      %v1769 = vld [vmem:[%s314 + $0xc2] sm:$0xff]
      %v1770 = vld [vmem:[%s314 + $0xca] sm:$0xff]
      %v1771 = vld [vmem:[%s314 + $0xda] sm:$0xff]
      %v1772 = vld [vmem:[%s314 + $0xe2] sm:$0xff]
      %v1773 = vld [vmem:[%s314 + $0xf2] sm:$0xff]
      %v1774 = vld [vmem:[%s314 + $0xfa] sm:$0xff]
      %v1775 = vld [vmem:[%s314 + $0x10a] sm:$0xff]
      %v1776 = vld [vmem:[%s314 + $0x112] sm:$0xff]
      %v1777 = vld [vmem:[%s314 + $0x122] sm:$0xff]
      %v1778 = vld [vmem:[%s314 + $0x12a] sm:$0xff]
      %v1779 = vld [vmem:[%s314 + $0x13a] sm:$0xff]
      %v1780 = vld [vmem:[%s314 + $0x142] sm:$0xff]
      %v1781 = vld [vmem:[%s314 + $0x152] sm:$0xff]
      %v1782 = vld [vmem:[%s314 + $0x15a] sm:$0xff]
      %v1783 = vld [vmem:[%s314 + $0x16a] sm:$0xff]
      %v1784 = vld [vmem:[%s314 + $0x172] sm:$0xff]
      %v1785 = vpack.c.bf16 %v1754, %v1753
      %v1786 = vpack.c.bf16 %v1756, %v1755
      %v1787 = vpack.c.bf16 %v1758, %v1757
      %v1788 = vpack.c.bf16 %v1760, %v1759
      %v1789 = vpack.c.bf16 %v1762, %v1761
      %v1790 = vpack.c.bf16 %v1764, %v1763
      %v1791 = vpack.c.bf16 %v1766, %v1765
      %v1792 = vpack.c.bf16 %v1768, %v1767
      %v1793 = vpack.c.bf16 %v1770, %v1769
      %v1794 = vpack.c.bf16 %v1772, %v1771
      %v1795 = vpack.c.bf16 %v1774, %v1773
      %v1796 = vpack.c.bf16 %v1776, %v1775
      %v1797 = vpack.c.bf16 %v1778, %v1777
      %v1798 = vpack.c.bf16 %v1780, %v1779
      %v1799 = vpack.c.bf16 %v1782, %v1781
      %v1800 = vpack.c.bf16 %v1784, %v1783
      %s1801 = scalar_lea.vmem %s1, 10
      %v1802 = vld [vmem:[%s1801] sm:$0x3]
      %v1804 = vsel %vm226, %v1785, 0
      %v1807 = vsel %vm226, %v1786, 0
      %v1810 = vsel %vm226, %v1787, 0
      %v1813 = vsel %vm226, %v1788, 0
      %v1816 = vsel %vm226, %v1789, 0
      %v1819 = vsel %vm226, %v1790, 0
      %v1822 = vsel %vm226, %v1791, 0
      %v1825 = vsel %vm226, %v1792, 0
      %v1828 = vsel %vm226, %v1793, 0
      %v1831 = vsel %vm226, %v1794, 0
      %v1834 = vsel %vm226, %v1795, 0
      %v1837 = vsel %vm226, %v1796, 0
      %v1840 = vsel %vm226, %v1797, 0
      %v1843 = vsel %vm226, %v1798, 0
      %v1846 = vsel %vm226, %v1799, 0
      %v1849 = vsel %vm226, %v1800, 0
      %v1852 = vsel %vm494, %v1802, 0
      %1854 = vmatprep.subr.bf16.mxu0 0
      %1855 = vmatpush1.bf16.msra.mxu0 0
      %1856 = vmatprep.subr.bf16.mxu0 0
      %1857 = vmatpush1.bf16.msra.mxu0 0
      %1858 = vmatprep.subr.bf16.mxu0 0
      %1859 = vmatpush1.bf16.msra.mxu0 0
      %1860 = vmatprep.subr.bf16.mxu0 0
      %1861 = vmatpush1.bf16.msra.mxu0 0
      %1862 = vmatprep.subr.bf16.mxu0 0
      %1863 = vmatpush1.bf16.msra.mxu0 0
      %1864 = vmatprep.subr.bf16.mxu0 0
      %1865 = vmatpush1.bf16.msra.mxu0 0
      %1866 = vmatprep.subr.bf16.mxu0 0
      %1867 = vmatpush1.bf16.msra.mxu0 0
      %1868 = vmatprep.subr.bf16.mxu0 0
      %1869 = vmatpush1.bf16.msra.mxu0 %v1852
      %1870 = vmatprep.subr.bf16.mxu0 0
      %1871 = vmatpush2.bf16.msra.mxu0 0
      %1872 = vmatprep.subr.bf16.mxu0 0
      %1873 = vmatpush2.bf16.msra.mxu0 0
      %1874 = vmatprep.subr.bf16.mxu0 0
      %1875 = vmatpush2.bf16.msra.mxu0 0
      %1876 = vmatprep.subr.bf16.mxu0 0
      %1877 = vmatpush2.bf16.msra.mxu0 0
      %1878 = vmatprep.subr.bf16.mxu0 0
      %1879 = vmatpush2.bf16.msra.mxu0 0
      %1880 = vmatprep.subr.bf16.mxu0 0
      %1881 = vmatpush2.bf16.msra.mxu0 0
      %1882 = vmatprep.subr.bf16.mxu0 0
      %1883 = vmatpush2.bf16.msra.mxu0 0
      %1884 = vmatprep.subr.bf16.mxu0 0
      %1885 = vmatpush2.bf16.msra.mxu0 0
      %1886 = vmatprep.mubr.bf16.mxu0 0
      %1887 = vmatmul.mubr.bf16.gmra.mxu0 %v1804
      %v1888 = vpop.f32.mrf.mxu0
      %v1889 = vadd.f32 0.0, %v1888
      %v1890 = vpop.f32.mrf.mxu0
      %v1891 = vpop.f32.mrf.mxu0
      %v1892 = vadd.f32 0.0, %v1891
      %v1893 = vpop.f32.mrf.mxu0
      %1894 = vmatprep.mubr.bf16.mxu0 0
      %1895 = vmatmul.mubr.bf16.gmra.mxu0 %v1807
      %v1896 = vpop.f32.mrf.mxu0
      %v1897 = vadd.f32 0.0, %v1896
      %v1898 = vpop.f32.mrf.mxu0
      %v1899 = vpop.f32.mrf.mxu0
      %v1900 = vadd.f32 0.0, %v1899
      %v1901 = vpop.f32.mrf.mxu0
      %1902 = vmatprep.mubr.bf16.mxu0 0
      %1903 = vmatmul.mubr.bf16.gmra.mxu0 %v1810
      %v1904 = vpop.f32.mrf.mxu0
      %v1905 = vadd.f32 0.0, %v1904
      %v1906 = vpop.f32.mrf.mxu0
      %v1907 = vpop.f32.mrf.mxu0
      %v1908 = vadd.f32 0.0, %v1907
      %v1909 = vpop.f32.mrf.mxu0
      %1910 = vmatprep.mubr.bf16.mxu0 0
      %1911 = vmatmul.mubr.bf16.gmra.mxu0 %v1813
      %v1912 = vpop.f32.mrf.mxu0
      %v1913 = vadd.f32 0.0, %v1912
      %v1914 = vpop.f32.mrf.mxu0
      %v1915 = vpop.f32.mrf.mxu0
      %v1916 = vadd.f32 0.0, %v1915
      %v1917 = vpop.f32.mrf.mxu0
      %1918 = vmatprep.mubr.bf16.mxu0 0
      %1919 = vmatmul.mubr.bf16.gmra.mxu0 %v1816
      %v1920 = vpop.f32.mrf.mxu0
      %v1921 = vadd.f32 0.0, %v1920
      %v1922 = vpop.f32.mrf.mxu0
      %v1923 = vpop.f32.mrf.mxu0
      %v1924 = vadd.f32 0.0, %v1923
      %v1925 = vpop.f32.mrf.mxu0
      %1926 = vmatprep.mubr.bf16.mxu0 0
      %1927 = vmatmul.mubr.bf16.gmra.mxu0 %v1819
      %v1928 = vpop.f32.mrf.mxu0
      %v1929 = vadd.f32 0.0, %v1928
      %v1930 = vpop.f32.mrf.mxu0
      %v1931 = vpop.f32.mrf.mxu0
      %v1932 = vadd.f32 0.0, %v1931
      %v1933 = vpop.f32.mrf.mxu0
      %1934 = vmatprep.mubr.bf16.mxu0 0
      %1935 = vmatmul.mubr.bf16.gmra.mxu0 %v1822
      %v1936 = vpop.f32.mrf.mxu0
      %v1937 = vadd.f32 0.0, %v1936
      %v1938 = vpop.f32.mrf.mxu0
      %v1939 = vpop.f32.mrf.mxu0
      %v1940 = vadd.f32 0.0, %v1939
      %v1941 = vpop.f32.mrf.mxu0
      %1942 = vmatprep.mubr.bf16.mxu0 0
      %1943 = vmatmul.mubr.bf16.gmra.mxu0 %v1825
      %v1944 = vpop.f32.mrf.mxu0
      %v1945 = vadd.f32 0.0, %v1944
      %v1946 = vpop.f32.mrf.mxu0
      %v1947 = vpop.f32.mrf.mxu0
      %v1948 = vadd.f32 0.0, %v1947
      %v1949 = vpop.f32.mrf.mxu0
      %1950 = vmatprep.mubr.bf16.mxu0 0
      %1951 = vmatmul.mubr.bf16.gmra.mxu0 %v1828
      %v1952 = vpop.f32.mrf.mxu0
      %v1953 = vadd.f32 0.0, %v1952
      %v1954 = vpop.f32.mrf.mxu0
      %v1955 = vpop.f32.mrf.mxu0
      %v1956 = vadd.f32 0.0, %v1955
      %v1957 = vpop.f32.mrf.mxu0
      %1958 = vmatprep.mubr.bf16.mxu0 0
      %1959 = vmatmul.mubr.bf16.gmra.mxu0 %v1831
      %v1960 = vpop.f32.mrf.mxu0
      %v1961 = vadd.f32 0.0, %v1960
      %v1962 = vpop.f32.mrf.mxu0
      %v1963 = vpop.f32.mrf.mxu0
      %v1964 = vadd.f32 0.0, %v1963
      %v1965 = vpop.f32.mrf.mxu0
      %1966 = vmatprep.mubr.bf16.mxu0 0
      %1967 = vmatmul.mubr.bf16.gmra.mxu0 %v1834
      %v1968 = vpop.f32.mrf.mxu0
      %v1969 = vadd.f32 0.0, %v1968
      %v1970 = vpop.f32.mrf.mxu0
      %v1971 = vpop.f32.mrf.mxu0
      %v1972 = vadd.f32 0.0, %v1971
      %v1973 = vpop.f32.mrf.mxu0
      %1974 = vmatprep.mubr.bf16.mxu0 0
      %1975 = vmatmul.mubr.bf16.gmra.mxu0 %v1837
      %v1976 = vpop.f32.mrf.mxu0
      %v1977 = vadd.f32 0.0, %v1976
      %v1978 = vpop.f32.mrf.mxu0
      %v1979 = vpop.f32.mrf.mxu0
      %v1980 = vadd.f32 0.0, %v1979
      %v1981 = vpop.f32.mrf.mxu0
      %1982 = vmatprep.mubr.bf16.mxu0 0
      %1983 = vmatmul.mubr.bf16.gmra.mxu0 %v1840
      %v1984 = vpop.f32.mrf.mxu0
      %v1985 = vadd.f32 0.0, %v1984
      %v1986 = vpop.f32.mrf.mxu0
      %v1987 = vpop.f32.mrf.mxu0
      %v1988 = vadd.f32 0.0, %v1987
      %v1989 = vpop.f32.mrf.mxu0
      %1990 = vmatprep.mubr.bf16.mxu0 0
      %1991 = vmatmul.mubr.bf16.gmra.mxu0 %v1843
      %v1992 = vpop.f32.mrf.mxu0
      %v1993 = vadd.f32 0.0, %v1992
      %v1994 = vpop.f32.mrf.mxu0
      %v1995 = vpop.f32.mrf.mxu0
      %v1996 = vadd.f32 0.0, %v1995
      %v1997 = vpop.f32.mrf.mxu0
      %1998 = vmatprep.mubr.bf16.mxu0 0
      %1999 = vmatmul.mubr.bf16.gmra.mxu0 %v1846
      %v2000 = vpop.f32.mrf.mxu0
      %v2001 = vadd.f32 0.0, %v2000
      %v2002 = vpop.f32.mrf.mxu0
      %v2003 = vpop.f32.mrf.mxu0
      %v2004 = vadd.f32 0.0, %v2003
      %v2005 = vpop.f32.mrf.mxu0
      %2006 = vmatprep.mubr.bf16.mxu0 0
      %2007 = vmatmul.mubr.bf16.gmra.mxu0 %v1849
      %v2008 = vpop.f32.mrf.mxu0
      %v2009 = vadd.f32 0.0, %v2008
      %v2010 = vpop.f32.mrf.mxu0
      %v2011 = vpop.f32.mrf.mxu0
      %v2012 = vadd.f32 0.0, %v2011
      %v2013 = vpop.f32.mrf.mxu0
      %2014 = vdwg.mxu0
      %v2015 = vadd.f32 %v1721, %v1889
      %v2016 = vadd.f32 %v1722, %v1892
      %v2017 = vadd.f32 %v1723, %v1897
      %v2018 = vadd.f32 %v1724, %v1900
      %v2019 = vadd.f32 %v1725, %v1905
      %v2020 = vadd.f32 %v1726, %v1908
      %v2021 = vadd.f32 %v1727, %v1913
      %v2022 = vadd.f32 %v1728, %v1916
      %v2023 = vadd.f32 %v1729, %v1921
      %v2024 = vadd.f32 %v1730, %v1924
      %v2025 = vadd.f32 %v1731, %v1929
      %v2026 = vadd.f32 %v1732, %v1932
      %v2027 = vadd.f32 %v1733, %v1937
      %v2028 = vadd.f32 %v1734, %v1940
      %v2029 = vadd.f32 %v1735, %v1945
      %v2030 = vadd.f32 %v1736, %v1948
      %v2031 = vadd.f32 %v1737, %v1953
      %v2032 = vadd.f32 %v1738, %v1956
      %v2033 = vadd.f32 %v1739, %v1961
      %v2034 = vadd.f32 %v1740, %v1964
      %v2035 = vadd.f32 %v1741, %v1969
      %v2036 = vadd.f32 %v1742, %v1972
      %v2037 = vadd.f32 %v1743, %v1977
      %v2038 = vadd.f32 %v1744, %v1980
      %v2039 = vadd.f32 %v1745, %v1985
      %v2040 = vadd.f32 %v1746, %v1988
      %v2041 = vadd.f32 %v1747, %v1993
      %v2042 = vadd.f32 %v1748, %v1996
      %v2043 = vadd.f32 %v1749, %v2001
      %v2044 = vadd.f32 %v1750, %v2004
      %v2045 = vadd.f32 %v1751, %v2009
      %v2046 = vadd.f32 %v1752, %v2012
      %s2047 = scalar_lea.vmem [#allocation2], 48
      %v2048 = vld [vmem:[%s2047] sm:$0xff]
      %v2049 = vld [vmem:[%s2047 + $0x8] sm:$0xff]
      %v2050 = vld [vmem:[%s2047 + $0x18] sm:$0xff]
      %v2051 = vld [vmem:[%s2047 + $0x20] sm:$0xff]
      %v2052 = vld [vmem:[%s2047 + $0x30] sm:$0xff]
      %v2053 = vld [vmem:[%s2047 + $0x38] sm:$0xff]
      %v2054 = vld [vmem:[%s2047 + $0x48] sm:$0xff]
      %v2055 = vld [vmem:[%s2047 + $0x50] sm:$0xff]
      %v2056 = vld [vmem:[%s2047 + $0x60] sm:$0xff]
      %v2057 = vld [vmem:[%s2047 + $0x68] sm:$0xff]
      %v2058 = vld [vmem:[%s2047 + $0x78] sm:$0xff]
      %v2059 = vld [vmem:[%s2047 + $0x80] sm:$0xff]
      %v2060 = vld [vmem:[%s2047 + $0x90] sm:$0xff]
      %v2061 = vld [vmem:[%s2047 + $0x98] sm:$0xff]
      %v2062 = vld [vmem:[%s2047 + $0xa8] sm:$0xff]
      %v2063 = vld [vmem:[%s2047 + $0xb0] sm:$0xff]
      %v2064 = vld [vmem:[%s2047 + $0xc0] sm:$0xff]
      %v2065 = vld [vmem:[%s2047 + $0xc8] sm:$0xff]
      %v2066 = vld [vmem:[%s2047 + $0xd8] sm:$0xff]
      %v2067 = vld [vmem:[%s2047 + $0xe0] sm:$0xff]
      %v2068 = vld [vmem:[%s2047 + $0xf0] sm:$0xff]
      %v2069 = vld [vmem:[%s2047 + $0xf8] sm:$0xff]
      %v2070 = vld [vmem:[%s2047 + $0x108] sm:$0xff]
      %v2071 = vld [vmem:[%s2047 + $0x110] sm:$0xff]
      %v2072 = vld [vmem:[%s2047 + $0x120] sm:$0xff]
      %v2073 = vld [vmem:[%s2047 + $0x128] sm:$0xff]
      %v2074 = vld [vmem:[%s2047 + $0x138] sm:$0xff]
      %v2075 = vld [vmem:[%s2047 + $0x140] sm:$0xff]
      %v2076 = vld [vmem:[%s2047 + $0x150] sm:$0xff]
      %v2077 = vld [vmem:[%s2047 + $0x158] sm:$0xff]
      %v2078 = vld [vmem:[%s2047 + $0x168] sm:$0xff]
      %v2079 = vld [vmem:[%s2047 + $0x170] sm:$0xff]
      %v2080 = vpack.c.bf16 %v2049, %v2048
      %v2081 = vpack.c.bf16 %v2051, %v2050
      %v2082 = vpack.c.bf16 %v2053, %v2052
      %v2083 = vpack.c.bf16 %v2055, %v2054
      %v2084 = vpack.c.bf16 %v2057, %v2056
      %v2085 = vpack.c.bf16 %v2059, %v2058
      %v2086 = vpack.c.bf16 %v2061, %v2060
      %v2087 = vpack.c.bf16 %v2063, %v2062
      %v2088 = vpack.c.bf16 %v2065, %v2064
      %v2089 = vpack.c.bf16 %v2067, %v2066
      %v2090 = vpack.c.bf16 %v2069, %v2068
      %v2091 = vpack.c.bf16 %v2071, %v2070
      %v2092 = vpack.c.bf16 %v2073, %v2072
      %v2093 = vpack.c.bf16 %v2075, %v2074
      %v2094 = vpack.c.bf16 %v2077, %v2076
      %v2095 = vpack.c.bf16 %v2079, %v2078
      %s2096 = scalar_lea.vmem %s1, 12
      %v2097 = vld [vmem:[%s2096] sm:$0x3]
      %v2099 = vsel %vm226, %v2080, 0
      %v2102 = vsel %vm226, %v2081, 0
      %v2105 = vsel %vm226, %v2082, 0
      %v2108 = vsel %vm226, %v2083, 0
      %v2111 = vsel %vm226, %v2084, 0
      %v2114 = vsel %vm226, %v2085, 0
      %v2117 = vsel %vm226, %v2086, 0
      %v2120 = vsel %vm226, %v2087, 0
      %v2123 = vsel %vm226, %v2088, 0
      %v2126 = vsel %vm226, %v2089, 0
      %v2129 = vsel %vm226, %v2090, 0
      %v2132 = vsel %vm226, %v2091, 0
      %v2135 = vsel %vm226, %v2092, 0
      %v2138 = vsel %vm226, %v2093, 0
      %v2141 = vsel %vm226, %v2094, 0
      %v2144 = vsel %vm226, %v2095, 0
      %v2147 = vsel %vm494, %v2097, 0
      %2149 = vmatprep.subr.bf16.mxu0 0
      %2150 = vmatpush1.bf16.msra.mxu0 0
      %2151 = vmatprep.subr.bf16.mxu0 0
      %2152 = vmatpush1.bf16.msra.mxu0 0
      %2153 = vmatprep.subr.bf16.mxu0 0
      %2154 = vmatpush1.bf16.msra.mxu0 0
      %2155 = vmatprep.subr.bf16.mxu0 0
      %2156 = vmatpush1.bf16.msra.mxu0 0
      %2157 = vmatprep.subr.bf16.mxu0 0
      %2158 = vmatpush1.bf16.msra.mxu0 0
      %2159 = vmatprep.subr.bf16.mxu0 0
      %2160 = vmatpush1.bf16.msra.mxu0 0
      %2161 = vmatprep.subr.bf16.mxu0 0
      %2162 = vmatpush1.bf16.msra.mxu0 0
      %2163 = vmatprep.subr.bf16.mxu0 0
      %2164 = vmatpush1.bf16.msra.mxu0 %v2147
      %2165 = vmatprep.subr.bf16.mxu0 0
      %2166 = vmatpush2.bf16.msra.mxu0 0
      %2167 = vmatprep.subr.bf16.mxu0 0
      %2168 = vmatpush2.bf16.msra.mxu0 0
      %2169 = vmatprep.subr.bf16.mxu0 0
      %2170 = vmatpush2.bf16.msra.mxu0 0
      %2171 = vmatprep.subr.bf16.mxu0 0
      %2172 = vmatpush2.bf16.msra.mxu0 0
      %2173 = vmatprep.subr.bf16.mxu0 0
      %2174 = vmatpush2.bf16.msra.mxu0 0
      %2175 = vmatprep.subr.bf16.mxu0 0
      %2176 = vmatpush2.bf16.msra.mxu0 0
      %2177 = vmatprep.subr.bf16.mxu0 0
      %2178 = vmatpush2.bf16.msra.mxu0 0
      %2179 = vmatprep.subr.bf16.mxu0 0
      %2180 = vmatpush2.bf16.msra.mxu0 0
      %2181 = vmatprep.mubr.bf16.mxu0 0
      %2182 = vmatmul.mubr.bf16.gmra.mxu0 %v2099
      %v2183 = vpop.f32.mrf.mxu0
      %v2184 = vadd.f32 0.0, %v2183
      %v2185 = vpop.f32.mrf.mxu0
      %v2186 = vpop.f32.mrf.mxu0
      %v2187 = vadd.f32 0.0, %v2186
      %v2188 = vpop.f32.mrf.mxu0
      %2189 = vmatprep.mubr.bf16.mxu0 0
      %2190 = vmatmul.mubr.bf16.gmra.mxu0 %v2102
      %v2191 = vpop.f32.mrf.mxu0
      %v2192 = vadd.f32 0.0, %v2191
      %v2193 = vpop.f32.mrf.mxu0
      %v2194 = vpop.f32.mrf.mxu0
      %v2195 = vadd.f32 0.0, %v2194
      %v2196 = vpop.f32.mrf.mxu0
      %2197 = vmatprep.mubr.bf16.mxu0 0
      %2198 = vmatmul.mubr.bf16.gmra.mxu0 %v2105
      %v2199 = vpop.f32.mrf.mxu0
      %v2200 = vadd.f32 0.0, %v2199
      %v2201 = vpop.f32.mrf.mxu0
      %v2202 = vpop.f32.mrf.mxu0
      %v2203 = vadd.f32 0.0, %v2202
      %v2204 = vpop.f32.mrf.mxu0
      %2205 = vmatprep.mubr.bf16.mxu0 0
      %2206 = vmatmul.mubr.bf16.gmra.mxu0 %v2108
      %v2207 = vpop.f32.mrf.mxu0
      %v2208 = vadd.f32 0.0, %v2207
      %v2209 = vpop.f32.mrf.mxu0
      %v2210 = vpop.f32.mrf.mxu0
      %v2211 = vadd.f32 0.0, %v2210
      %v2212 = vpop.f32.mrf.mxu0
      %2213 = vmatprep.mubr.bf16.mxu0 0
      %2214 = vmatmul.mubr.bf16.gmra.mxu0 %v2111
      %v2215 = vpop.f32.mrf.mxu0
      %v2216 = vadd.f32 0.0, %v2215
      %v2217 = vpop.f32.mrf.mxu0
      %v2218 = vpop.f32.mrf.mxu0
      %v2219 = vadd.f32 0.0, %v2218
      %v2220 = vpop.f32.mrf.mxu0
      %2221 = vmatprep.mubr.bf16.mxu0 0
      %2222 = vmatmul.mubr.bf16.gmra.mxu0 %v2114
      %v2223 = vpop.f32.mrf.mxu0
      %v2224 = vadd.f32 0.0, %v2223
      %v2225 = vpop.f32.mrf.mxu0
      %v2226 = vpop.f32.mrf.mxu0
      %v2227 = vadd.f32 0.0, %v2226
      %v2228 = vpop.f32.mrf.mxu0
      %2229 = vmatprep.mubr.bf16.mxu0 0
      %2230 = vmatmul.mubr.bf16.gmra.mxu0 %v2117
      %v2231 = vpop.f32.mrf.mxu0
      %v2232 = vadd.f32 0.0, %v2231
      %v2233 = vpop.f32.mrf.mxu0
      %v2234 = vpop.f32.mrf.mxu0
      %v2235 = vadd.f32 0.0, %v2234
      %v2236 = vpop.f32.mrf.mxu0
      %2237 = vmatprep.mubr.bf16.mxu0 0
      %2238 = vmatmul.mubr.bf16.gmra.mxu0 %v2120
      %v2239 = vpop.f32.mrf.mxu0
      %v2240 = vadd.f32 0.0, %v2239
      %v2241 = vpop.f32.mrf.mxu0
      %v2242 = vpop.f32.mrf.mxu0
      %v2243 = vadd.f32 0.0, %v2242
      %v2244 = vpop.f32.mrf.mxu0
      %2245 = vmatprep.mubr.bf16.mxu0 0
      %2246 = vmatmul.mubr.bf16.gmra.mxu0 %v2123
      %v2247 = vpop.f32.mrf.mxu0
      %v2248 = vadd.f32 0.0, %v2247
      %v2249 = vpop.f32.mrf.mxu0
      %v2250 = vpop.f32.mrf.mxu0
      %v2251 = vadd.f32 0.0, %v2250
      %v2252 = vpop.f32.mrf.mxu0
      %2253 = vmatprep.mubr.bf16.mxu0 0
      %2254 = vmatmul.mubr.bf16.gmra.mxu0 %v2126
      %v2255 = vpop.f32.mrf.mxu0
      %v2256 = vadd.f32 0.0, %v2255
      %v2257 = vpop.f32.mrf.mxu0
      %v2258 = vpop.f32.mrf.mxu0
      %v2259 = vadd.f32 0.0, %v2258
      %v2260 = vpop.f32.mrf.mxu0
      %2261 = vmatprep.mubr.bf16.mxu0 0
      %2262 = vmatmul.mubr.bf16.gmra.mxu0 %v2129
      %v2263 = vpop.f32.mrf.mxu0
      %v2264 = vadd.f32 0.0, %v2263
      %v2265 = vpop.f32.mrf.mxu0
      %v2266 = vpop.f32.mrf.mxu0
      %v2267 = vadd.f32 0.0, %v2266
      %v2268 = vpop.f32.mrf.mxu0
      %2269 = vmatprep.mubr.bf16.mxu0 0
      %2270 = vmatmul.mubr.bf16.gmra.mxu0 %v2132
      %v2271 = vpop.f32.mrf.mxu0
      %v2272 = vadd.f32 0.0, %v2271
      %v2273 = vpop.f32.mrf.mxu0
      %v2274 = vpop.f32.mrf.mxu0
      %v2275 = vadd.f32 0.0, %v2274
      %v2276 = vpop.f32.mrf.mxu0
      %2277 = vmatprep.mubr.bf16.mxu0 0
      %2278 = vmatmul.mubr.bf16.gmra.mxu0 %v2135
      %v2279 = vpop.f32.mrf.mxu0
      %v2280 = vadd.f32 0.0, %v2279
      %v2281 = vpop.f32.mrf.mxu0
      %v2282 = vpop.f32.mrf.mxu0
      %v2283 = vadd.f32 0.0, %v2282
      %v2284 = vpop.f32.mrf.mxu0
      %2285 = vmatprep.mubr.bf16.mxu0 0
      %2286 = vmatmul.mubr.bf16.gmra.mxu0 %v2138
      %v2287 = vpop.f32.mrf.mxu0
      %v2288 = vadd.f32 0.0, %v2287
      %v2289 = vpop.f32.mrf.mxu0
      %v2290 = vpop.f32.mrf.mxu0
      %v2291 = vadd.f32 0.0, %v2290
      %v2292 = vpop.f32.mrf.mxu0
      %2293 = vmatprep.mubr.bf16.mxu0 0
      %2294 = vmatmul.mubr.bf16.gmra.mxu0 %v2141
      %v2295 = vpop.f32.mrf.mxu0
      %v2296 = vadd.f32 0.0, %v2295
      %v2297 = vpop.f32.mrf.mxu0
      %v2298 = vpop.f32.mrf.mxu0
      %v2299 = vadd.f32 0.0, %v2298
      %v2300 = vpop.f32.mrf.mxu0
      %2301 = vmatprep.mubr.bf16.mxu0 0
      %2302 = vmatmul.mubr.bf16.gmra.mxu0 %v2144
      %v2303 = vpop.f32.mrf.mxu0
      %v2304 = vadd.f32 0.0, %v2303
      %v2305 = vpop.f32.mrf.mxu0
      %v2306 = vpop.f32.mrf.mxu0
      %v2307 = vadd.f32 0.0, %v2306
      %v2308 = vpop.f32.mrf.mxu0
      %2309 = vdwg.mxu0
      %v2310 = vadd.f32 %v2015, %v2184
      %v2311 = vadd.f32 %v2016, %v2187
      %v2312 = vadd.f32 %v2017, %v2192
      %v2313 = vadd.f32 %v2018, %v2195
      %v2314 = vadd.f32 %v2019, %v2200
      %v2315 = vadd.f32 %v2020, %v2203
      %v2316 = vadd.f32 %v2021, %v2208
      %v2317 = vadd.f32 %v2022, %v2211
      %v2318 = vadd.f32 %v2023, %v2216
      %v2319 = vadd.f32 %v2024, %v2219
      %v2320 = vadd.f32 %v2025, %v2224
      %v2321 = vadd.f32 %v2026, %v2227
      %v2322 = vadd.f32 %v2027, %v2232
      %v2323 = vadd.f32 %v2028, %v2235
      %v2324 = vadd.f32 %v2029, %v2240
      %v2325 = vadd.f32 %v2030, %v2243
      %v2326 = vadd.f32 %v2031, %v2248
      %v2327 = vadd.f32 %v2032, %v2251
      %v2328 = vadd.f32 %v2033, %v2256
      %v2329 = vadd.f32 %v2034, %v2259
      %v2330 = vadd.f32 %v2035, %v2264
      %v2331 = vadd.f32 %v2036, %v2267
      %v2332 = vadd.f32 %v2037, %v2272
      %v2333 = vadd.f32 %v2038, %v2275
      %v2334 = vadd.f32 %v2039, %v2280
      %v2335 = vadd.f32 %v2040, %v2283
      %v2336 = vadd.f32 %v2041, %v2288
      %v2337 = vadd.f32 %v2042, %v2291
      %v2338 = vadd.f32 %v2043, %v2296
      %v2339 = vadd.f32 %v2044, %v2299
      %v2340 = vadd.f32 %v2045, %v2304
      %v2341 = vadd.f32 %v2046, %v2307
      %v2342 = vld [vmem:[%s2047 + $0x1] sm:$0xff]
      %v2343 = vld [vmem:[%s2047 + $0x9] sm:$0xff]
      %v2344 = vld [vmem:[%s2047 + $0x19] sm:$0xff]
      %v2345 = vld [vmem:[%s2047 + $0x21] sm:$0xff]
      %v2346 = vld [vmem:[%s2047 + $0x31] sm:$0xff]
      %v2347 = vld [vmem:[%s2047 + $0x39] sm:$0xff]
      %v2348 = vld [vmem:[%s2047 + $0x49] sm:$0xff]
      %v2349 = vld [vmem:[%s2047 + $0x51] sm:$0xff]
      %v2350 = vld [vmem:[%s2047 + $0x61] sm:$0xff]
      %v2351 = vld [vmem:[%s2047 + $0x69] sm:$0xff]
      %v2352 = vld [vmem:[%s2047 + $0x79] sm:$0xff]
      %v2353 = vld [vmem:[%s2047 + $0x81] sm:$0xff]
      %v2354 = vld [vmem:[%s2047 + $0x91] sm:$0xff]
      %v2355 = vld [vmem:[%s2047 + $0x99] sm:$0xff]
      %v2356 = vld [vmem:[%s2047 + $0xa9] sm:$0xff]
      %v2357 = vld [vmem:[%s2047 + $0xb1] sm:$0xff]
      %v2358 = vld [vmem:[%s2047 + $0xc1] sm:$0xff]
      %v2359 = vld [vmem:[%s2047 + $0xc9] sm:$0xff]
      %v2360 = vld [vmem:[%s2047 + $0xd9] sm:$0xff]
      %v2361 = vld [vmem:[%s2047 + $0xe1] sm:$0xff]
      %v2362 = vld [vmem:[%s2047 + $0xf1] sm:$0xff]
      %v2363 = vld [vmem:[%s2047 + $0xf9] sm:$0xff]
      %v2364 = vld [vmem:[%s2047 + $0x109] sm:$0xff]
      %v2365 = vld [vmem:[%s2047 + $0x111] sm:$0xff]
      %v2366 = vld [vmem:[%s2047 + $0x121] sm:$0xff]
      %v2367 = vld [vmem:[%s2047 + $0x129] sm:$0xff]
      %v2368 = vld [vmem:[%s2047 + $0x139] sm:$0xff]
      %v2369 = vld [vmem:[%s2047 + $0x141] sm:$0xff]
      %v2370 = vld [vmem:[%s2047 + $0x151] sm:$0xff]
      %v2371 = vld [vmem:[%s2047 + $0x159] sm:$0xff]
      %v2372 = vld [vmem:[%s2047 + $0x169] sm:$0xff]
      %v2373 = vld [vmem:[%s2047 + $0x171] sm:$0xff]
      %v2374 = vpack.c.bf16 %v2343, %v2342
      %v2375 = vpack.c.bf16 %v2345, %v2344
      %v2376 = vpack.c.bf16 %v2347, %v2346
      %v2377 = vpack.c.bf16 %v2349, %v2348
      %v2378 = vpack.c.bf16 %v2351, %v2350
      %v2379 = vpack.c.bf16 %v2353, %v2352
      %v2380 = vpack.c.bf16 %v2355, %v2354
      %v2381 = vpack.c.bf16 %v2357, %v2356
      %v2382 = vpack.c.bf16 %v2359, %v2358
      %v2383 = vpack.c.bf16 %v2361, %v2360
      %v2384 = vpack.c.bf16 %v2363, %v2362
      %v2385 = vpack.c.bf16 %v2365, %v2364
      %v2386 = vpack.c.bf16 %v2367, %v2366
      %v2387 = vpack.c.bf16 %v2369, %v2368
      %v2388 = vpack.c.bf16 %v2371, %v2370
      %v2389 = vpack.c.bf16 %v2373, %v2372
      %s2390 = scalar_lea.vmem %s1, 14
      %v2391 = vld [vmem:[%s2390] sm:$0x3]
      %v2393 = vsel %vm226, %v2374, 0
      %v2396 = vsel %vm226, %v2375, 0
      %v2399 = vsel %vm226, %v2376, 0
      %v2402 = vsel %vm226, %v2377, 0
      %v2405 = vsel %vm226, %v2378, 0
      %v2408 = vsel %vm226, %v2379, 0
      %v2411 = vsel %vm226, %v2380, 0
      %v2414 = vsel %vm226, %v2381, 0
      %v2417 = vsel %vm226, %v2382, 0
      %v2420 = vsel %vm226, %v2383, 0
      %v2423 = vsel %vm226, %v2384, 0
      %v2426 = vsel %vm226, %v2385, 0
      %v2429 = vsel %vm226, %v2386, 0
      %v2432 = vsel %vm226, %v2387, 0
      %v2435 = vsel %vm226, %v2388, 0
      %v2438 = vsel %vm226, %v2389, 0
      %v2441 = vsel %vm494, %v2391, 0
      %2443 = vmatprep.subr.bf16.mxu0 0
      %2444 = vmatpush1.bf16.msra.mxu0 0
      %2445 = vmatprep.subr.bf16.mxu0 0
      %2446 = vmatpush1.bf16.msra.mxu0 0
      %2447 = vmatprep.subr.bf16.mxu0 0
      %2448 = vmatpush1.bf16.msra.mxu0 0
      %2449 = vmatprep.subr.bf16.mxu0 0
      %2450 = vmatpush1.bf16.msra.mxu0 0
      %2451 = vmatprep.subr.bf16.mxu0 0
      %2452 = vmatpush1.bf16.msra.mxu0 0
      %2453 = vmatprep.subr.bf16.mxu0 0
      %2454 = vmatpush1.bf16.msra.mxu0 0
      %2455 = vmatprep.subr.bf16.mxu0 0
      %2456 = vmatpush1.bf16.msra.mxu0 0
      %2457 = vmatprep.subr.bf16.mxu0 0
      %2458 = vmatpush1.bf16.msra.mxu0 %v2441
      %2459 = vmatprep.subr.bf16.mxu0 0
      %2460 = vmatpush2.bf16.msra.mxu0 0
      %2461 = vmatprep.subr.bf16.mxu0 0
      %2462 = vmatpush2.bf16.msra.mxu0 0
      %2463 = vmatprep.subr.bf16.mxu0 0
      %2464 = vmatpush2.bf16.msra.mxu0 0
      %2465 = vmatprep.subr.bf16.mxu0 0
      %2466 = vmatpush2.bf16.msra.mxu0 0
      %2467 = vmatprep.subr.bf16.mxu0 0
      %2468 = vmatpush2.bf16.msra.mxu0 0
      %2469 = vmatprep.subr.bf16.mxu0 0
      %2470 = vmatpush2.bf16.msra.mxu0 0
      %2471 = vmatprep.subr.bf16.mxu0 0
      %2472 = vmatpush2.bf16.msra.mxu0 0
      %2473 = vmatprep.subr.bf16.mxu0 0
      %2474 = vmatpush2.bf16.msra.mxu0 0
      %2475 = vmatprep.mubr.bf16.mxu0 0
      %2476 = vmatmul.mubr.bf16.gmra.mxu0 %v2393
      %v2477 = vpop.f32.mrf.mxu0
      %v2478 = vadd.f32 0.0, %v2477
      %v2479 = vpop.f32.mrf.mxu0
      %v2480 = vpop.f32.mrf.mxu0
      %v2481 = vadd.f32 0.0, %v2480
      %v2482 = vpop.f32.mrf.mxu0
      %2483 = vmatprep.mubr.bf16.mxu0 0
      %2484 = vmatmul.mubr.bf16.gmra.mxu0 %v2396
      %v2485 = vpop.f32.mrf.mxu0
      %v2486 = vadd.f32 0.0, %v2485
      %v2487 = vpop.f32.mrf.mxu0
      %v2488 = vpop.f32.mrf.mxu0
      %v2489 = vadd.f32 0.0, %v2488
      %v2490 = vpop.f32.mrf.mxu0
      %2491 = vmatprep.mubr.bf16.mxu0 0
      %2492 = vmatmul.mubr.bf16.gmra.mxu0 %v2399
      %v2493 = vpop.f32.mrf.mxu0
      %v2494 = vadd.f32 0.0, %v2493
      %v2495 = vpop.f32.mrf.mxu0
      %v2496 = vpop.f32.mrf.mxu0
      %v2497 = vadd.f32 0.0, %v2496
      %v2498 = vpop.f32.mrf.mxu0
      %2499 = vmatprep.mubr.bf16.mxu0 0
      %2500 = vmatmul.mubr.bf16.gmra.mxu0 %v2402
      %v2501 = vpop.f32.mrf.mxu0
      %v2502 = vadd.f32 0.0, %v2501
      %v2503 = vpop.f32.mrf.mxu0
      %v2504 = vpop.f32.mrf.mxu0
      %v2505 = vadd.f32 0.0, %v2504
      %v2506 = vpop.f32.mrf.mxu0
      %2507 = vmatprep.mubr.bf16.mxu0 0
      %2508 = vmatmul.mubr.bf16.gmra.mxu0 %v2405
      %v2509 = vpop.f32.mrf.mxu0
      %v2510 = vadd.f32 0.0, %v2509
      %v2511 = vpop.f32.mrf.mxu0
      %v2512 = vpop.f32.mrf.mxu0
      %v2513 = vadd.f32 0.0, %v2512
      %v2514 = vpop.f32.mrf.mxu0
      %2515 = vmatprep.mubr.bf16.mxu0 0
      %2516 = vmatmul.mubr.bf16.gmra.mxu0 %v2408
      %v2517 = vpop.f32.mrf.mxu0
      %v2518 = vadd.f32 0.0, %v2517
      %v2519 = vpop.f32.mrf.mxu0
      %v2520 = vpop.f32.mrf.mxu0
      %v2521 = vadd.f32 0.0, %v2520
      %v2522 = vpop.f32.mrf.mxu0
      %2523 = vmatprep.mubr.bf16.mxu0 0
      %2524 = vmatmul.mubr.bf16.gmra.mxu0 %v2411
      %v2525 = vpop.f32.mrf.mxu0
      %v2526 = vadd.f32 0.0, %v2525
      %v2527 = vpop.f32.mrf.mxu0
      %v2528 = vpop.f32.mrf.mxu0
      %v2529 = vadd.f32 0.0, %v2528
      %v2530 = vpop.f32.mrf.mxu0
      %2531 = vmatprep.mubr.bf16.mxu0 0
      %2532 = vmatmul.mubr.bf16.gmra.mxu0 %v2414
      %v2533 = vpop.f32.mrf.mxu0
      %v2534 = vadd.f32 0.0, %v2533
      %v2535 = vpop.f32.mrf.mxu0
      %v2536 = vpop.f32.mrf.mxu0
      %v2537 = vadd.f32 0.0, %v2536
      %v2538 = vpop.f32.mrf.mxu0
      %2539 = vmatprep.mubr.bf16.mxu0 0
      %2540 = vmatmul.mubr.bf16.gmra.mxu0 %v2417
      %v2541 = vpop.f32.mrf.mxu0
      %v2542 = vadd.f32 0.0, %v2541
      %v2543 = vpop.f32.mrf.mxu0
      %v2544 = vpop.f32.mrf.mxu0
      %v2545 = vadd.f32 0.0, %v2544
      %v2546 = vpop.f32.mrf.mxu0
      %2547 = vmatprep.mubr.bf16.mxu0 0
      %2548 = vmatmul.mubr.bf16.gmra.mxu0 %v2420
      %v2549 = vpop.f32.mrf.mxu0
      %v2550 = vadd.f32 0.0, %v2549
      %v2551 = vpop.f32.mrf.mxu0
      %v2552 = vpop.f32.mrf.mxu0
      %v2553 = vadd.f32 0.0, %v2552
      %v2554 = vpop.f32.mrf.mxu0
      %2555 = vmatprep.mubr.bf16.mxu0 0
      %2556 = vmatmul.mubr.bf16.gmra.mxu0 %v2423
      %v2557 = vpop.f32.mrf.mxu0
      %v2558 = vadd.f32 0.0, %v2557
      %v2559 = vpop.f32.mrf.mxu0
      %v2560 = vpop.f32.mrf.mxu0
      %v2561 = vadd.f32 0.0, %v2560
      %v2562 = vpop.f32.mrf.mxu0
      %2563 = vmatprep.mubr.bf16.mxu0 0
      %2564 = vmatmul.mubr.bf16.gmra.mxu0 %v2426
      %v2565 = vpop.f32.mrf.mxu0
      %v2566 = vadd.f32 0.0, %v2565
      %v2567 = vpop.f32.mrf.mxu0
      %v2568 = vpop.f32.mrf.mxu0
      %v2569 = vadd.f32 0.0, %v2568
      %v2570 = vpop.f32.mrf.mxu0
      %2571 = vmatprep.mubr.bf16.mxu0 0
      %2572 = vmatmul.mubr.bf16.gmra.mxu0 %v2429
      %v2573 = vpop.f32.mrf.mxu0
      %v2574 = vadd.f32 0.0, %v2573
      %v2575 = vpop.f32.mrf.mxu0
      %v2576 = vpop.f32.mrf.mxu0
      %v2577 = vadd.f32 0.0, %v2576
      %v2578 = vpop.f32.mrf.mxu0
      %2579 = vmatprep.mubr.bf16.mxu0 0
      %2580 = vmatmul.mubr.bf16.gmra.mxu0 %v2432
      %v2581 = vpop.f32.mrf.mxu0
      %v2582 = vadd.f32 0.0, %v2581
      %v2583 = vpop.f32.mrf.mxu0
      %v2584 = vpop.f32.mrf.mxu0
      %v2585 = vadd.f32 0.0, %v2584
      %v2586 = vpop.f32.mrf.mxu0
      %2587 = vmatprep.mubr.bf16.mxu0 0
      %2588 = vmatmul.mubr.bf16.gmra.mxu0 %v2435
      %v2589 = vpop.f32.mrf.mxu0
      %v2590 = vadd.f32 0.0, %v2589
      %v2591 = vpop.f32.mrf.mxu0
      %v2592 = vpop.f32.mrf.mxu0
      %v2593 = vadd.f32 0.0, %v2592
      %v2594 = vpop.f32.mrf.mxu0
      %2595 = vmatprep.mubr.bf16.mxu0 0
      %2596 = vmatmul.mubr.bf16.gmra.mxu0 %v2438
      %v2597 = vpop.f32.mrf.mxu0
      %v2598 = vadd.f32 0.0, %v2597
      %v2599 = vpop.f32.mrf.mxu0
      %v2600 = vpop.f32.mrf.mxu0
      %v2601 = vadd.f32 0.0, %v2600
      %v2602 = vpop.f32.mrf.mxu0
      %2603 = vdwg.mxu0
      %v2604 = vadd.f32 %v2310, %v2478
      %v2605 = vadd.f32 %v2311, %v2481
      %v2606 = vadd.f32 %v2312, %v2486
      %v2607 = vadd.f32 %v2313, %v2489
      %v2608 = vadd.f32 %v2314, %v2494
      %v2609 = vadd.f32 %v2315, %v2497
      %v2610 = vadd.f32 %v2316, %v2502
      %v2611 = vadd.f32 %v2317, %v2505
      %v2612 = vadd.f32 %v2318, %v2510
      %v2613 = vadd.f32 %v2319, %v2513
      %v2614 = vadd.f32 %v2320, %v2518
      %v2615 = vadd.f32 %v2321, %v2521
      %v2616 = vadd.f32 %v2322, %v2526
      %v2617 = vadd.f32 %v2323, %v2529
      %v2618 = vadd.f32 %v2324, %v2534
      %v2619 = vadd.f32 %v2325, %v2537
      %v2620 = vadd.f32 %v2326, %v2542
      %v2621 = vadd.f32 %v2327, %v2545
      %v2622 = vadd.f32 %v2328, %v2550
      %v2623 = vadd.f32 %v2329, %v2553
      %v2624 = vadd.f32 %v2330, %v2558
      %v2625 = vadd.f32 %v2331, %v2561
      %v2626 = vadd.f32 %v2332, %v2566
      %v2627 = vadd.f32 %v2333, %v2569
      %v2628 = vadd.f32 %v2334, %v2574
      %v2629 = vadd.f32 %v2335, %v2577
      %v2630 = vadd.f32 %v2336, %v2582
      %v2631 = vadd.f32 %v2337, %v2585
      %v2632 = vadd.f32 %v2338, %v2590
      %v2633 = vadd.f32 %v2339, %v2593
      %v2634 = vadd.f32 %v2340, %v2598
      %v2635 = vadd.f32 %v2341, %v2601
      %v2636 = vld [vmem:[%s2047 + $0x2] sm:$0xff]
      %v2637 = vld [vmem:[%s2047 + $0xa] sm:$0xff]
      %v2638 = vld [vmem:[%s2047 + $0x1a] sm:$0xff]
      %v2639 = vld [vmem:[%s2047 + $0x22] sm:$0xff]
      %v2640 = vld [vmem:[%s2047 + $0x32] sm:$0xff]
      %v2641 = vld [vmem:[%s2047 + $0x3a] sm:$0xff]
      %v2642 = vld [vmem:[%s2047 + $0x4a] sm:$0xff]
      %v2643 = vld [vmem:[%s2047 + $0x52] sm:$0xff]
      %v2644 = vld [vmem:[%s2047 + $0x62] sm:$0xff]
      %v2645 = vld [vmem:[%s2047 + $0x6a] sm:$0xff]
      %v2646 = vld [vmem:[%s2047 + $0x7a] sm:$0xff]
      %v2647 = vld [vmem:[%s2047 + $0x82] sm:$0xff]
      %v2648 = vld [vmem:[%s2047 + $0x92] sm:$0xff]
      %v2649 = vld [vmem:[%s2047 + $0x9a] sm:$0xff]
      %v2650 = vld [vmem:[%s2047 + $0xaa] sm:$0xff]
      %v2651 = vld [vmem:[%s2047 + $0xb2] sm:$0xff]
      %v2652 = vld [vmem:[%s2047 + $0xc2] sm:$0xff]
      %v2653 = vld [vmem:[%s2047 + $0xca] sm:$0xff]
      %v2654 = vld [vmem:[%s2047 + $0xda] sm:$0xff]
      %v2655 = vld [vmem:[%s2047 + $0xe2] sm:$0xff]
      %v2656 = vld [vmem:[%s2047 + $0xf2] sm:$0xff]
      %v2657 = vld [vmem:[%s2047 + $0xfa] sm:$0xff]
      %v2658 = vld [vmem:[%s2047 + $0x10a] sm:$0xff]
      %v2659 = vld [vmem:[%s2047 + $0x112] sm:$0xff]
      %v2660 = vld [vmem:[%s2047 + $0x122] sm:$0xff]
      %v2661 = vld [vmem:[%s2047 + $0x12a] sm:$0xff]
      %v2662 = vld [vmem:[%s2047 + $0x13a] sm:$0xff]
      %v2663 = vld [vmem:[%s2047 + $0x142] sm:$0xff]
      %v2664 = vld [vmem:[%s2047 + $0x152] sm:$0xff]
      %v2665 = vld [vmem:[%s2047 + $0x15a] sm:$0xff]
      %v2666 = vld [vmem:[%s2047 + $0x16a] sm:$0xff]
      %v2667 = vld [vmem:[%s2047 + $0x172] sm:$0xff]
      %v2668 = vpack.c.bf16 %v2637, %v2636
      %v2669 = vpack.c.bf16 %v2639, %v2638
      %v2670 = vpack.c.bf16 %v2641, %v2640
      %v2671 = vpack.c.bf16 %v2643, %v2642
      %v2672 = vpack.c.bf16 %v2645, %v2644
      %v2673 = vpack.c.bf16 %v2647, %v2646
      %v2674 = vpack.c.bf16 %v2649, %v2648
      %v2675 = vpack.c.bf16 %v2651, %v2650
      %v2676 = vpack.c.bf16 %v2653, %v2652
      %v2677 = vpack.c.bf16 %v2655, %v2654
      %v2678 = vpack.c.bf16 %v2657, %v2656
      %v2679 = vpack.c.bf16 %v2659, %v2658
      %v2680 = vpack.c.bf16 %v2661, %v2660
      %v2681 = vpack.c.bf16 %v2663, %v2662
      %v2682 = vpack.c.bf16 %v2665, %v2664
      %v2683 = vpack.c.bf16 %v2667, %v2666
      %s2684 = scalar_lea.vmem %s1, 16
      %v2685 = vld [vmem:[%s2684] sm:$0x3]
      %v2687 = vsel %vm226, %v2668, 0
      %v2690 = vsel %vm226, %v2669, 0
      %v2693 = vsel %vm226, %v2670, 0
      %v2696 = vsel %vm226, %v2671, 0
      %v2699 = vsel %vm226, %v2672, 0
      %v2702 = vsel %vm226, %v2673, 0
      %v2705 = vsel %vm226, %v2674, 0
      %v2708 = vsel %vm226, %v2675, 0
      %v2711 = vsel %vm226, %v2676, 0
      %v2714 = vsel %vm226, %v2677, 0
      %v2717 = vsel %vm226, %v2678, 0
      %v2720 = vsel %vm226, %v2679, 0
      %v2723 = vsel %vm226, %v2680, 0
      %v2726 = vsel %vm226, %v2681, 0
      %v2729 = vsel %vm226, %v2682, 0
      %v2732 = vsel %vm226, %v2683, 0
      %v2735 = vsel %vm494, %v2685, 0
      %2737 = vmatprep.subr.bf16.mxu0 0
      %2738 = vmatpush1.bf16.msra.mxu0 0
      %2739 = vmatprep.subr.bf16.mxu0 0
      %2740 = vmatpush1.bf16.msra.mxu0 0
      %2741 = vmatprep.subr.bf16.mxu0 0
      %2742 = vmatpush1.bf16.msra.mxu0 0
      %2743 = vmatprep.subr.bf16.mxu0 0
      %2744 = vmatpush1.bf16.msra.mxu0 0
      %2745 = vmatprep.subr.bf16.mxu0 0
      %2746 = vmatpush1.bf16.msra.mxu0 0
      %2747 = vmatprep.subr.bf16.mxu0 0
      %2748 = vmatpush1.bf16.msra.mxu0 0
      %2749 = vmatprep.subr.bf16.mxu0 0
      %2750 = vmatpush1.bf16.msra.mxu0 0
      %2751 = vmatprep.subr.bf16.mxu0 0
      %2752 = vmatpush1.bf16.msra.mxu0 %v2735
      %2753 = vmatprep.subr.bf16.mxu0 0
      %2754 = vmatpush2.bf16.msra.mxu0 0
      %2755 = vmatprep.subr.bf16.mxu0 0
      %2756 = vmatpush2.bf16.msra.mxu0 0
      %2757 = vmatprep.subr.bf16.mxu0 0
      %2758 = vmatpush2.bf16.msra.mxu0 0
      %2759 = vmatprep.subr.bf16.mxu0 0
      %2760 = vmatpush2.bf16.msra.mxu0 0
      %2761 = vmatprep.subr.bf16.mxu0 0
      %2762 = vmatpush2.bf16.msra.mxu0 0
      %2763 = vmatprep.subr.bf16.mxu0 0
      %2764 = vmatpush2.bf16.msra.mxu0 0
      %2765 = vmatprep.subr.bf16.mxu0 0
      %2766 = vmatpush2.bf16.msra.mxu0 0
      %2767 = vmatprep.subr.bf16.mxu0 0
      %2768 = vmatpush2.bf16.msra.mxu0 0
      %2769 = vmatprep.mubr.bf16.mxu0 0
      %2770 = vmatmul.mubr.bf16.gmra.mxu0 %v2687
      %v2771 = vpop.f32.mrf.mxu0
      %v2772 = vadd.f32 0.0, %v2771
      %v2773 = vpop.f32.mrf.mxu0
      %v2774 = vpop.f32.mrf.mxu0
      %v2775 = vadd.f32 0.0, %v2774
      %v2776 = vpop.f32.mrf.mxu0
      %2777 = vmatprep.mubr.bf16.mxu0 0
      %2778 = vmatmul.mubr.bf16.gmra.mxu0 %v2690
      %v2779 = vpop.f32.mrf.mxu0
      %v2780 = vadd.f32 0.0, %v2779
      %v2781 = vpop.f32.mrf.mxu0
      %v2782 = vpop.f32.mrf.mxu0
      %v2783 = vadd.f32 0.0, %v2782
      %v2784 = vpop.f32.mrf.mxu0
      %2785 = vmatprep.mubr.bf16.mxu0 0
      %2786 = vmatmul.mubr.bf16.gmra.mxu0 %v2693
      %v2787 = vpop.f32.mrf.mxu0
      %v2788 = vadd.f32 0.0, %v2787
      %v2789 = vpop.f32.mrf.mxu0
      %v2790 = vpop.f32.mrf.mxu0
      %v2791 = vadd.f32 0.0, %v2790
      %v2792 = vpop.f32.mrf.mxu0
      %2793 = vmatprep.mubr.bf16.mxu0 0
      %2794 = vmatmul.mubr.bf16.gmra.mxu0 %v2696
      %v2795 = vpop.f32.mrf.mxu0
      %v2796 = vadd.f32 0.0, %v2795
      %v2797 = vpop.f32.mrf.mxu0
      %v2798 = vpop.f32.mrf.mxu0
      %v2799 = vadd.f32 0.0, %v2798
      %v2800 = vpop.f32.mrf.mxu0
      %2801 = vmatprep.mubr.bf16.mxu0 0
      %2802 = vmatmul.mubr.bf16.gmra.mxu0 %v2699
      %v2803 = vpop.f32.mrf.mxu0
      %v2804 = vadd.f32 0.0, %v2803
      %v2805 = vpop.f32.mrf.mxu0
      %v2806 = vpop.f32.mrf.mxu0
      %v2807 = vadd.f32 0.0, %v2806
      %v2808 = vpop.f32.mrf.mxu0
      %2809 = vmatprep.mubr.bf16.mxu0 0
      %2810 = vmatmul.mubr.bf16.gmra.mxu0 %v2702
      %v2811 = vpop.f32.mrf.mxu0
      %v2812 = vadd.f32 0.0, %v2811
      %v2813 = vpop.f32.mrf.mxu0
      %v2814 = vpop.f32.mrf.mxu0
      %v2815 = vadd.f32 0.0, %v2814
      %v2816 = vpop.f32.mrf.mxu0
      %2817 = vmatprep.mubr.bf16.mxu0 0
      %2818 = vmatmul.mubr.bf16.gmra.mxu0 %v2705
      %v2819 = vpop.f32.mrf.mxu0
      %v2820 = vadd.f32 0.0, %v2819
      %v2821 = vpop.f32.mrf.mxu0
      %v2822 = vpop.f32.mrf.mxu0
      %v2823 = vadd.f32 0.0, %v2822
      %v2824 = vpop.f32.mrf.mxu0
      %2825 = vmatprep.mubr.bf16.mxu0 0
      %2826 = vmatmul.mubr.bf16.gmra.mxu0 %v2708
      %v2827 = vpop.f32.mrf.mxu0
      %v2828 = vadd.f32 0.0, %v2827
      %v2829 = vpop.f32.mrf.mxu0
      %v2830 = vpop.f32.mrf.mxu0
      %v2831 = vadd.f32 0.0, %v2830
      %v2832 = vpop.f32.mrf.mxu0
      %2833 = vmatprep.mubr.bf16.mxu0 0
      %2834 = vmatmul.mubr.bf16.gmra.mxu0 %v2711
      %v2835 = vpop.f32.mrf.mxu0
      %v2836 = vadd.f32 0.0, %v2835
      %v2837 = vpop.f32.mrf.mxu0
      %v2838 = vpop.f32.mrf.mxu0
      %v2839 = vadd.f32 0.0, %v2838
      %v2840 = vpop.f32.mrf.mxu0
      %2841 = vmatprep.mubr.bf16.mxu0 0
      %2842 = vmatmul.mubr.bf16.gmra.mxu0 %v2714
      %v2843 = vpop.f32.mrf.mxu0
      %v2844 = vadd.f32 0.0, %v2843
      %v2845 = vpop.f32.mrf.mxu0
      %v2846 = vpop.f32.mrf.mxu0
      %v2847 = vadd.f32 0.0, %v2846
      %v2848 = vpop.f32.mrf.mxu0
      %2849 = vmatprep.mubr.bf16.mxu0 0
      %2850 = vmatmul.mubr.bf16.gmra.mxu0 %v2717
      %v2851 = vpop.f32.mrf.mxu0
      %v2852 = vadd.f32 0.0, %v2851
      %v2853 = vpop.f32.mrf.mxu0
      %v2854 = vpop.f32.mrf.mxu0
      %v2855 = vadd.f32 0.0, %v2854
      %v2856 = vpop.f32.mrf.mxu0
      %2857 = vmatprep.mubr.bf16.mxu0 0
      %2858 = vmatmul.mubr.bf16.gmra.mxu0 %v2720
      %v2859 = vpop.f32.mrf.mxu0
      %v2860 = vadd.f32 0.0, %v2859
      %v2861 = vpop.f32.mrf.mxu0
      %v2862 = vpop.f32.mrf.mxu0
      %v2863 = vadd.f32 0.0, %v2862
      %v2864 = vpop.f32.mrf.mxu0
      %2865 = vmatprep.mubr.bf16.mxu0 0
      %2866 = vmatmul.mubr.bf16.gmra.mxu0 %v2723
      %v2867 = vpop.f32.mrf.mxu0
      %v2868 = vadd.f32 0.0, %v2867
      %v2869 = vpop.f32.mrf.mxu0
      %v2870 = vpop.f32.mrf.mxu0
      %v2871 = vadd.f32 0.0, %v2870
      %v2872 = vpop.f32.mrf.mxu0
      %2873 = vmatprep.mubr.bf16.mxu0 0
      %2874 = vmatmul.mubr.bf16.gmra.mxu0 %v2726
      %v2875 = vpop.f32.mrf.mxu0
      %v2876 = vadd.f32 0.0, %v2875
      %v2877 = vpop.f32.mrf.mxu0
      %v2878 = vpop.f32.mrf.mxu0
      %v2879 = vadd.f32 0.0, %v2878
      %v2880 = vpop.f32.mrf.mxu0
      %2881 = vmatprep.mubr.bf16.mxu0 0
      %2882 = vmatmul.mubr.bf16.gmra.mxu0 %v2729
      %v2883 = vpop.f32.mrf.mxu0
      %v2884 = vadd.f32 0.0, %v2883
      %v2885 = vpop.f32.mrf.mxu0
      %v2886 = vpop.f32.mrf.mxu0
      %v2887 = vadd.f32 0.0, %v2886
      %v2888 = vpop.f32.mrf.mxu0
      %2889 = vmatprep.mubr.bf16.mxu0 0
      %2890 = vmatmul.mubr.bf16.gmra.mxu0 %v2732
      %v2891 = vpop.f32.mrf.mxu0
      %v2892 = vadd.f32 0.0, %v2891
      %v2893 = vpop.f32.mrf.mxu0
      %v2894 = vpop.f32.mrf.mxu0
      %v2895 = vadd.f32 0.0, %v2894
      %v2896 = vpop.f32.mrf.mxu0
      %2897 = vdwg.mxu0
      %v2898 = vadd.f32 %v2604, %v2772
      %v2899 = vadd.f32 %v2605, %v2775
      %v2900 = vadd.f32 %v2606, %v2780
      %v2901 = vadd.f32 %v2607, %v2783
      %v2902 = vadd.f32 %v2608, %v2788
      %v2903 = vadd.f32 %v2609, %v2791
      %v2904 = vadd.f32 %v2610, %v2796
      %v2905 = vadd.f32 %v2611, %v2799
      %v2906 = vadd.f32 %v2612, %v2804
      %v2907 = vadd.f32 %v2613, %v2807
      %v2908 = vadd.f32 %v2614, %v2812
      %v2909 = vadd.f32 %v2615, %v2815
      %v2910 = vadd.f32 %v2616, %v2820
      %v2911 = vadd.f32 %v2617, %v2823
      %v2912 = vadd.f32 %v2618, %v2828
      %v2913 = vadd.f32 %v2619, %v2831
      %v2914 = vadd.f32 %v2620, %v2836
      %v2915 = vadd.f32 %v2621, %v2839
      %v2916 = vadd.f32 %v2622, %v2844
      %v2917 = vadd.f32 %v2623, %v2847
      %v2918 = vadd.f32 %v2624, %v2852
      %v2919 = vadd.f32 %v2625, %v2855
      %v2920 = vadd.f32 %v2626, %v2860
      %v2921 = vadd.f32 %v2627, %v2863
      %v2922 = vadd.f32 %v2628, %v2868
      %v2923 = vadd.f32 %v2629, %v2871
      %v2924 = vadd.f32 %v2630, %v2876
      %v2925 = vadd.f32 %v2631, %v2879
      %v2926 = vadd.f32 %v2632, %v2884
      %v2927 = vadd.f32 %v2633, %v2887
      %v2928 = vadd.f32 %v2634, %v2892
      %v2929 = vadd.f32 %v2635, %v2895
      %v2930 = vld [vmem:[%s3] sm:$0x1]
      %v2932 = vlaneseq
      %v2933 = vshrl.u32 %v2932, 7
      %v2934 = vsub.s32 0, %v2933
      %v2935 = vrot.slane %v2930, %v2934
      %v2937 = vadd.f32 %v2898, %v2935
      %v2938 = vadd.f32 %v2899, %v2935
      %v2939 = vadd.f32 %v2900, %v2935
      %v2940 = vadd.f32 %v2901, %v2935
      %v2941 = vadd.f32 %v2902, %v2935
      %v2942 = vadd.f32 %v2903, %v2935
      %v2943 = vadd.f32 %v2904, %v2935
      %v2944 = vadd.f32 %v2905, %v2935
      %v2945 = vadd.f32 %v2906, %v2935
      %v2946 = vadd.f32 %v2907, %v2935
      %v2947 = vadd.f32 %v2908, %v2935
      %v2948 = vadd.f32 %v2909, %v2935
      %v2949 = vadd.f32 %v2910, %v2935
      %v2950 = vadd.f32 %v2911, %v2935
      %v2951 = vadd.f32 %v2912, %v2935
      %v2952 = vadd.f32 %v2913, %v2935
      %v2953 = vadd.f32 %v2914, %v2935
      %v2954 = vadd.f32 %v2915, %v2935
      %v2955 = vadd.f32 %v2916, %v2935
      %v2956 = vadd.f32 %v2917, %v2935
      %v2957 = vadd.f32 %v2918, %v2935
      %v2958 = vadd.f32 %v2919, %v2935
      %v2959 = vadd.f32 %v2920, %v2935
      %v2960 = vadd.f32 %v2921, %v2935
      %v2961 = vadd.f32 %v2922, %v2935
      %v2962 = vadd.f32 %v2923, %v2935
      %v2963 = vadd.f32 %v2924, %v2935
      %v2964 = vadd.f32 %v2925, %v2935
      %v2965 = vadd.f32 %v2926, %v2935
      %v2966 = vadd.f32 %v2927, %v2935
      %v2967 = vadd.f32 %v2928, %v2935
      %v2968 = vadd.f32 %v2929, %v2935
      %v2969 = vmax.f32 %v2937, 0.0
      %v2970 = vmax.f32 %v2938, 0.0
      %v2971 = vmax.f32 %v2939, 0.0
      %v2972 = vmax.f32 %v2940, 0.0
      %v2973 = vmax.f32 %v2941, 0.0
      %v2974 = vmax.f32 %v2942, 0.0
      %v2975 = vmax.f32 %v2943, 0.0
      %v2976 = vmax.f32 %v2944, 0.0
      %v2977 = vmax.f32 %v2945, 0.0
      %v2978 = vmax.f32 %v2946, 0.0
      %v2979 = vmax.f32 %v2947, 0.0
      %v2980 = vmax.f32 %v2948, 0.0
      %v2981 = vmax.f32 %v2949, 0.0
      %v2982 = vmax.f32 %v2950, 0.0
      %v2983 = vmax.f32 %v2951, 0.0
      %v2984 = vmax.f32 %v2952, 0.0
      %v2985 = vmax.f32 %v2953, 0.0
      %v2986 = vmax.f32 %v2954, 0.0
      %v2987 = vmax.f32 %v2955, 0.0
      %v2988 = vmax.f32 %v2956, 0.0
      %v2989 = vmax.f32 %v2957, 0.0
      %v2990 = vmax.f32 %v2958, 0.0
      %v2991 = vmax.f32 %v2959, 0.0
      %v2992 = vmax.f32 %v2960, 0.0
      %v2993 = vmax.f32 %v2961, 0.0
      %v2994 = vmax.f32 %v2962, 0.0
      %v2995 = vmax.f32 %v2963, 0.0
      %v2996 = vmax.f32 %v2964, 0.0
      %v2997 = vmax.f32 %v2965, 0.0
      %v2998 = vmax.f32 %v2966, 0.0
      %v2999 = vmax.f32 %v2967, 0.0
      %v3000 = vmax.f32 %v2968, 0.0
      %3001 = vst.msk [vmem:[#allocation3] sm:$0xff] %vm226, 0.0
      %3002 = vst.msk [vmem:[#allocation3 + $0x8] sm:$0xff] %vm226, 0.0
      %3003 = vst.msk [vmem:[#allocation3 + $0x10] sm:$0x3] %vm229, 0.0
      %3004 = vst.msk [vmem:[#allocation3 + $0x18] sm:$0xff] %vm226, 0.0
      %3005 = vst.msk [vmem:[#allocation3 + $0x20] sm:$0xff] %vm226, 0.0
      %3006 = vst.msk [vmem:[#allocation3 + $0x28] sm:$0x3] %vm229, 0.0
      %3007 = vst.msk [vmem:[#allocation3 + $0x30] sm:$0xff] %vm226, 0.0
      %3008 = vst.msk [vmem:[#allocation3 + $0x38] sm:$0xff] %vm226, 0.0
      %3009 = vst.msk [vmem:[#allocation3 + $0x40] sm:$0x3] %vm229, 0.0
      %3010 = vst.msk [vmem:[#allocation3 + $0x48] sm:$0xff] %vm226, 0.0
      %3011 = vst.msk [vmem:[#allocation3 + $0x50] sm:$0xff] %vm226, 0.0
      %3012 = vst.msk [vmem:[#allocation3 + $0x58] sm:$0x3] %vm229, 0.0
      %3013 = vst.msk [vmem:[#allocation3 + $0x60] sm:$0xff] %vm226, 0.0
      %3014 = vst.msk [vmem:[#allocation3 + $0x68] sm:$0xff] %vm226, 0.0
      %3015 = vst.msk [vmem:[#allocation3 + $0x70] sm:$0x3] %vm229, 0.0
      %3016 = vst.msk [vmem:[#allocation3 + $0x78] sm:$0xff] %vm226, 0.0
      %3017 = vst.msk [vmem:[#allocation3 + $0x80] sm:$0xff] %vm226, 0.0
      %3018 = vst.msk [vmem:[#allocation3 + $0x88] sm:$0x3] %vm229, 0.0
      %3019 = vst.msk [vmem:[#allocation3 + $0x90] sm:$0xff] %vm226, 0.0
      %3020 = vst.msk [vmem:[#allocation3 + $0x98] sm:$0xff] %vm226, 0.0
      %3021 = vst.msk [vmem:[#allocation3 + $0xa0] sm:$0x3] %vm229, 0.0
      %3022 = vst.msk [vmem:[#allocation3 + $0xa8] sm:$0xff] %vm226, 0.0
      %3023 = vst.msk [vmem:[#allocation3 + $0xb0] sm:$0xff] %vm226, 0.0
      %3024 = vst.msk [vmem:[#allocation3 + $0xb8] sm:$0x3] %vm229, 0.0
      %3025 = vst.msk [vmem:[#allocation3 + $0xc0] sm:$0xff] %vm226, 0.0
      %3026 = vst.msk [vmem:[#allocation3 + $0xc8] sm:$0xff] %vm226, 0.0
      %3027 = vst.msk [vmem:[#allocation3 + $0xd0] sm:$0x3] %vm229, 0.0
      %3028 = vst.msk [vmem:[#allocation3 + $0xd8] sm:$0xff] %vm226, 0.0
      %3029 = vst.msk [vmem:[#allocation3 + $0xe0] sm:$0xff] %vm226, 0.0
      %3030 = vst.msk [vmem:[#allocation3 + $0xe8] sm:$0x3] %vm229, 0.0
      %3031 = vst.msk [vmem:[#allocation3 + $0xf0] sm:$0xff] %vm226, 0.0
      %3032 = vst.msk [vmem:[#allocation3 + $0xf8] sm:$0xff] %vm226, 0.0
      %3033 = vst.msk [vmem:[#allocation3 + $0x100] sm:$0x3] %vm229, 0.0
      %3034 = vst.msk [vmem:[#allocation3 + $0x108] sm:$0xff] %vm226, 0.0
      %3035 = vst.msk [vmem:[#allocation3 + $0x110] sm:$0xff] %vm226, 0.0
      %3036 = vst.msk [vmem:[#allocation3 + $0x118] sm:$0x3] %vm229, 0.0
      %3037 = vst.msk [vmem:[#allocation3 + $0x120] sm:$0xff] %vm226, 0.0
      %3038 = vst.msk [vmem:[#allocation3 + $0x128] sm:$0xff] %vm226, 0.0
      %3039 = vst.msk [vmem:[#allocation3 + $0x130] sm:$0x3] %vm229, 0.0
      %3040 = vst.msk [vmem:[#allocation3 + $0x138] sm:$0xff] %vm226, 0.0
      %3041 = vst.msk [vmem:[#allocation3 + $0x140] sm:$0xff] %vm226, 0.0
      %3042 = vst.msk [vmem:[#allocation3 + $0x148] sm:$0x3] %vm229, 0.0
      %3043 = vst.msk [vmem:[#allocation3 + $0x150] sm:$0xff] %vm226, 0.0
      %3044 = vst.msk [vmem:[#allocation3 + $0x158] sm:$0xff] %vm226, 0.0
      %3045 = vst.msk [vmem:[#allocation3 + $0x160] sm:$0x3] %vm229, 0.0
      %3046 = vst.msk [vmem:[#allocation3 + $0x168] sm:$0xff] %vm226, 0.0
      %3047 = vst.msk [vmem:[#allocation3 + $0x170] sm:$0xff] %vm226, 0.0
      %3048 = vst.msk [vmem:[#allocation3 + $0x178] sm:$0x3] %vm229, 0.0
      %3049 = vst.msk [vmem:[#allocation3 + $0x180] sm:$0xff] %vm226, 0.0
      %3050 = vst.msk [vmem:[#allocation3 + $0x188] sm:$0xff] %vm226, 0.0
      %3051 = vst.msk [vmem:[#allocation3 + $0x190] sm:$0x3] %vm229, 0.0
      %3052 = vst.msk [vmem:[#allocation3 + $0x198] sm:$0xff] %vm226, 0.0
      %3053 = vst.msk [vmem:[#allocation3 + $0x1a0] sm:$0xff] %vm226, 0.0
      %3054 = vst.msk [vmem:[#allocation3 + $0x1a8] sm:$0x3] %vm229, 0.0
      %s3055 = scalar_lea.vmem [#allocation3], 24
      %3056 = vst.msk [vmem:[%s3055 + $0x1] sm:$0xff] %vm226, %v2969
      %3057 = vst.msk [vmem:[%s3055 + $0x9] sm:$0xff] %vm226, %v2970
      %3058 = vst.msk [vmem:[%s3055 + $0x19] sm:$0xff] %vm226, %v2971
      %3059 = vst.msk [vmem:[%s3055 + $0x21] sm:$0xff] %vm226, %v2972
      %3060 = vst.msk [vmem:[%s3055 + $0x31] sm:$0xff] %vm226, %v2973
      %3061 = vst.msk [vmem:[%s3055 + $0x39] sm:$0xff] %vm226, %v2974
      %3062 = vst.msk [vmem:[%s3055 + $0x49] sm:$0xff] %vm226, %v2975
      %3063 = vst.msk [vmem:[%s3055 + $0x51] sm:$0xff] %vm226, %v2976
      %3064 = vst.msk [vmem:[%s3055 + $0x61] sm:$0xff] %vm226, %v2977
      %3065 = vst.msk [vmem:[%s3055 + $0x69] sm:$0xff] %vm226, %v2978
      %3066 = vst.msk [vmem:[%s3055 + $0x79] sm:$0xff] %vm226, %v2979
      %3067 = vst.msk [vmem:[%s3055 + $0x81] sm:$0xff] %vm226, %v2980
      %3068 = vst.msk [vmem:[%s3055 + $0x91] sm:$0xff] %vm226, %v2981
      %3069 = vst.msk [vmem:[%s3055 + $0x99] sm:$0xff] %vm226, %v2982
      %3070 = vst.msk [vmem:[%s3055 + $0xa9] sm:$0xff] %vm226, %v2983
      %3071 = vst.msk [vmem:[%s3055 + $0xb1] sm:$0xff] %vm226, %v2984
      %3072 = vst.msk [vmem:[%s3055 + $0xc1] sm:$0xff] %vm226, %v2985
      %3073 = vst.msk [vmem:[%s3055 + $0xc9] sm:$0xff] %vm226, %v2986
      %3074 = vst.msk [vmem:[%s3055 + $0xd9] sm:$0xff] %vm226, %v2987
      %3075 = vst.msk [vmem:[%s3055 + $0xe1] sm:$0xff] %vm226, %v2988
      %3076 = vst.msk [vmem:[%s3055 + $0xf1] sm:$0xff] %vm226, %v2989
      %3077 = vst.msk [vmem:[%s3055 + $0xf9] sm:$0xff] %vm226, %v2990
      %3078 = vst.msk [vmem:[%s3055 + $0x109] sm:$0xff] %vm226, %v2991
      %3079 = vst.msk [vmem:[%s3055 + $0x111] sm:$0xff] %vm226, %v2992
      %3080 = vst.msk [vmem:[%s3055 + $0x121] sm:$0xff] %vm226, %v2993
      %3081 = vst.msk [vmem:[%s3055 + $0x129] sm:$0xff] %vm226, %v2994
      %3082 = vst.msk [vmem:[%s3055 + $0x139] sm:$0xff] %vm226, %v2995
      %3083 = vst.msk [vmem:[%s3055 + $0x141] sm:$0xff] %vm226, %v2996
      %3084 = vst.msk [vmem:[%s3055 + $0x151] sm:$0xff] %vm226, %v2997
      %3085 = vst.msk [vmem:[%s3055 + $0x159] sm:$0xff] %vm226, %v2998
      %3086 = vst.msk [vmem:[%s3055 + $0x169] sm:$0xff] %vm226, %v2999
      %3087 = vst.msk [vmem:[%s3055 + $0x171] sm:$0xff] %vm226, %v3000
      %v3088 = vld [vmem:[#allocation3] sm:$0xff]
      %v3089 = vld [vmem:[#allocation3 + $0x8] sm:$0xff]
      %v3090 = vld [vmem:[#allocation3 + $0x18] sm:$0xff]
      %v3091 = vld [vmem:[#allocation3 + $0x20] sm:$0xff]
      %v3092 = vld [vmem:[#allocation3 + $0x30] sm:$0xff]
      %v3093 = vld [vmem:[#allocation3 + $0x38] sm:$0xff]
      %v3094 = vld [vmem:[#allocation3 + $0x48] sm:$0xff]
      %v3095 = vld [vmem:[#allocation3 + $0x50] sm:$0xff]
      %v3096 = vld [vmem:[#allocation3 + $0x60] sm:$0xff]
      %v3097 = vld [vmem:[#allocation3 + $0x68] sm:$0xff]
      %v3098 = vld [vmem:[#allocation3 + $0x78] sm:$0xff]
      %v3099 = vld [vmem:[#allocation3 + $0x80] sm:$0xff]
      %v3100 = vld [vmem:[#allocation3 + $0x90] sm:$0xff]
      %v3101 = vld [vmem:[#allocation3 + $0x98] sm:$0xff]
      %v3102 = vld [vmem:[#allocation3 + $0xa8] sm:$0xff]
      %v3103 = vld [vmem:[#allocation3 + $0xb0] sm:$0xff]
      %v3104 = vld [vmem:[#allocation3 + $0xc0] sm:$0xff]
      %v3105 = vld [vmem:[#allocation3 + $0xc8] sm:$0xff]
      %v3106 = vld [vmem:[#allocation3 + $0xd8] sm:$0xff]
      %v3107 = vld [vmem:[#allocation3 + $0xe0] sm:$0xff]
      %v3108 = vld [vmem:[#allocation3 + $0xf0] sm:$0xff]
      %v3109 = vld [vmem:[#allocation3 + $0xf8] sm:$0xff]
      %v3110 = vld [vmem:[#allocation3 + $0x108] sm:$0xff]
      %v3111 = vld [vmem:[#allocation3 + $0x110] sm:$0xff]
      %v3112 = vld [vmem:[#allocation3 + $0x120] sm:$0xff]
      %v3113 = vld [vmem:[#allocation3 + $0x128] sm:$0xff]
      %v3114 = vld [vmem:[#allocation3 + $0x138] sm:$0xff]
      %v3115 = vld [vmem:[#allocation3 + $0x140] sm:$0xff]
      %v3116 = vld [vmem:[#allocation3 + $0x150] sm:$0xff]
      %v3117 = vld [vmem:[#allocation3 + $0x158] sm:$0xff]
      %v3118 = vld [vmem:[#allocation3 + $0x168] sm:$0xff]
      %v3119 = vld [vmem:[#allocation3 + $0x170] sm:$0xff]
      %v3120 = vpack.c.bf16 %v3089, %v3088
      %v3121 = vpack.c.bf16 %v3091, %v3090
      %v3122 = vpack.c.bf16 %v3093, %v3092
      %v3123 = vpack.c.bf16 %v3095, %v3094
      %v3124 = vpack.c.bf16 %v3097, %v3096
      %v3125 = vpack.c.bf16 %v3099, %v3098
      %v3126 = vpack.c.bf16 %v3101, %v3100
      %v3127 = vpack.c.bf16 %v3103, %v3102
      %v3128 = vpack.c.bf16 %v3105, %v3104
      %v3129 = vpack.c.bf16 %v3107, %v3106
      %v3130 = vpack.c.bf16 %v3109, %v3108
      %v3131 = vpack.c.bf16 %v3111, %v3110
      %v3132 = vpack.c.bf16 %v3113, %v3112
      %v3133 = vpack.c.bf16 %v3115, %v3114
      %v3134 = vpack.c.bf16 %v3117, %v3116
      %v3135 = vpack.c.bf16 %v3119, %v3118
      %v3136 = vld [vmem:[%s2] sm:$0x3]
      %v3137 = vld [vmem:[#allocation3 + $0x1] sm:$0xff]
      %v3138 = vld [vmem:[#allocation3 + $0x9] sm:$0xff]
      %v3139 = vld [vmem:[#allocation3 + $0x19] sm:$0xff]
      %v3140 = vld [vmem:[#allocation3 + $0x21] sm:$0xff]
      %v3141 = vld [vmem:[#allocation3 + $0x31] sm:$0xff]
      %v3142 = vld [vmem:[#allocation3 + $0x39] sm:$0xff]
      %v3143 = vld [vmem:[#allocation3 + $0x49] sm:$0xff]
      %v3144 = vld [vmem:[#allocation3 + $0x51] sm:$0xff]
      %v3145 = vld [vmem:[#allocation3 + $0x61] sm:$0xff]
      %v3146 = vld [vmem:[#allocation3 + $0x69] sm:$0xff]
      %v3147 = vld [vmem:[#allocation3 + $0x79] sm:$0xff]
      %v3148 = vld [vmem:[#allocation3 + $0x81] sm:$0xff]
      %v3149 = vld [vmem:[#allocation3 + $0x91] sm:$0xff]
      %v3150 = vld [vmem:[#allocation3 + $0x99] sm:$0xff]
      %v3151 = vld [vmem:[#allocation3 + $0xa9] sm:$0xff]
      %v3152 = vld [vmem:[#allocation3 + $0xb1] sm:$0xff]
      %v3153 = vld [vmem:[#allocation3 + $0xc1] sm:$0xff]
      %v3154 = vld [vmem:[#allocation3 + $0xc9] sm:$0xff]
      %v3155 = vld [vmem:[#allocation3 + $0xd9] sm:$0xff]
      %v3156 = vld [vmem:[#allocation3 + $0xe1] sm:$0xff]
      %v3157 = vld [vmem:[#allocation3 + $0xf1] sm:$0xff]
      %v3158 = vld [vmem:[#allocation3 + $0xf9] sm:$0xff]
      %v3159 = vld [vmem:[#allocation3 + $0x109] sm:$0xff]
      %v3160 = vld [vmem:[#allocation3 + $0x111] sm:$0xff]
      %v3161 = vld [vmem:[#allocation3 + $0x121] sm:$0xff]
      %v3162 = vld [vmem:[#allocation3 + $0x129] sm:$0xff]
      %v3163 = vld [vmem:[#allocation3 + $0x139] sm:$0xff]
      %v3164 = vld [vmem:[#allocation3 + $0x141] sm:$0xff]
      %v3165 = vld [vmem:[#allocation3 + $0x151] sm:$0xff]
      %v3166 = vld [vmem:[#allocation3 + $0x159] sm:$0xff]
      %v3167 = vld [vmem:[#allocation3 + $0x169] sm:$0xff]
      %v3168 = vld [vmem:[#allocation3 + $0x171] sm:$0xff]
      %v3169 = vpack.c.bf16 %v3138, %v3137
      %v3170 = vpack.c.bf16 %v3140, %v3139
      %v3171 = vpack.c.bf16 %v3142, %v3141
      %v3172 = vpack.c.bf16 %v3144, %v3143
      %v3173 = vpack.c.bf16 %v3146, %v3145
      %v3174 = vpack.c.bf16 %v3148, %v3147
      %v3175 = vpack.c.bf16 %v3150, %v3149
      %v3176 = vpack.c.bf16 %v3152, %v3151
      %v3177 = vpack.c.bf16 %v3154, %v3153
      %v3178 = vpack.c.bf16 %v3156, %v3155
      %v3179 = vpack.c.bf16 %v3158, %v3157
      %v3180 = vpack.c.bf16 %v3160, %v3159
      %v3181 = vpack.c.bf16 %v3162, %v3161
      %v3182 = vpack.c.bf16 %v3164, %v3163
      %v3183 = vpack.c.bf16 %v3166, %v3165
      %v3184 = vpack.c.bf16 %v3168, %v3167
      %s3185 = scalar_lea.vmem %s2, 2
      %v3186 = vld [vmem:[%s3185] sm:$0x3]
      %v3188 = vsel %vm226, %v3169, 0
      %v3191 = vsel %vm226, %v3170, 0
      %v3194 = vsel %vm226, %v3171, 0
      %v3197 = vsel %vm226, %v3172, 0
      %v3200 = vsel %vm226, %v3173, 0
      %v3203 = vsel %vm226, %v3174, 0
      %v3206 = vsel %vm226, %v3175, 0
      %v3209 = vsel %vm226, %v3176, 0
      %v3212 = vsel %vm226, %v3177, 0
      %v3215 = vsel %vm226, %v3178, 0
      %v3218 = vsel %vm226, %v3179, 0
      %v3221 = vsel %vm226, %v3180, 0
      %v3224 = vsel %vm226, %v3181, 0
      %v3227 = vsel %vm226, %v3182, 0
      %v3230 = vsel %vm226, %v3183, 0
      %v3233 = vsel %vm226, %v3184, 0
      %v3236 = vsel %vm494, %v3186, 0
      %3238 = vmatprep.subr.bf16.mxu0 0
      %3239 = vmatpush1.bf16.msra.mxu0 0
      %3240 = vmatprep.subr.bf16.mxu0 0
      %3241 = vmatpush1.bf16.msra.mxu0 0
      %3242 = vmatprep.subr.bf16.mxu0 0
      %3243 = vmatpush1.bf16.msra.mxu0 0
      %3244 = vmatprep.subr.bf16.mxu0 0
      %3245 = vmatpush1.bf16.msra.mxu0 0
      %3246 = vmatprep.subr.bf16.mxu0 0
      %3247 = vmatpush1.bf16.msra.mxu0 0
      %3248 = vmatprep.subr.bf16.mxu0 0
      %3249 = vmatpush1.bf16.msra.mxu0 0
      %3250 = vmatprep.subr.bf16.mxu0 0
      %3251 = vmatpush1.bf16.msra.mxu0 0
      %3252 = vmatprep.subr.bf16.mxu0 0
      %3253 = vmatpush1.bf16.msra.mxu0 %v3236
      %3254 = vmatprep.subr.bf16.mxu0 0
      %3255 = vmatpush2.bf16.msra.mxu0 0
      %3256 = vmatprep.subr.bf16.mxu0 0
      %3257 = vmatpush2.bf16.msra.mxu0 0
      %3258 = vmatprep.subr.bf16.mxu0 0
      %3259 = vmatpush2.bf16.msra.mxu0 0
      %3260 = vmatprep.subr.bf16.mxu0 0
      %3261 = vmatpush2.bf16.msra.mxu0 0
      %3262 = vmatprep.subr.bf16.mxu0 0
      %3263 = vmatpush2.bf16.msra.mxu0 0
      %3264 = vmatprep.subr.bf16.mxu0 0
      %3265 = vmatpush2.bf16.msra.mxu0 0
      %3266 = vmatprep.subr.bf16.mxu0 0
      %3267 = vmatpush2.bf16.msra.mxu0 0
      %3268 = vmatprep.subr.bf16.mxu0 0
      %3269 = vmatpush2.bf16.msra.mxu0 0
      %3270 = vmatprep.mubr.bf16.mxu0 0
      %3271 = vmatmul.mubr.bf16.gmra.mxu0 %v3188
      %v3272 = vpop.f32.mrf.mxu0
      %v3273 = vadd.f32 0.0, %v3272
      %v3274 = vpop.f32.mrf.mxu0
      %v3275 = vpop.f32.mrf.mxu0
      %v3276 = vadd.f32 0.0, %v3275
      %v3277 = vpop.f32.mrf.mxu0
      %3278 = vmatprep.mubr.bf16.mxu0 0
      %3279 = vmatmul.mubr.bf16.gmra.mxu0 %v3191
      %v3280 = vpop.f32.mrf.mxu0
      %v3281 = vadd.f32 0.0, %v3280
      %v3282 = vpop.f32.mrf.mxu0
      %v3283 = vpop.f32.mrf.mxu0
      %v3284 = vadd.f32 0.0, %v3283
      %v3285 = vpop.f32.mrf.mxu0
      %3286 = vmatprep.mubr.bf16.mxu0 0
      %3287 = vmatmul.mubr.bf16.gmra.mxu0 %v3194
      %v3288 = vpop.f32.mrf.mxu0
      %v3289 = vadd.f32 0.0, %v3288
      %v3290 = vpop.f32.mrf.mxu0
      %v3291 = vpop.f32.mrf.mxu0
      %v3292 = vadd.f32 0.0, %v3291
      %v3293 = vpop.f32.mrf.mxu0
      %3294 = vmatprep.mubr.bf16.mxu0 0
      %3295 = vmatmul.mubr.bf16.gmra.mxu0 %v3197
      %v3296 = vpop.f32.mrf.mxu0
      %v3297 = vadd.f32 0.0, %v3296
      %v3298 = vpop.f32.mrf.mxu0
      %v3299 = vpop.f32.mrf.mxu0
      %v3300 = vadd.f32 0.0, %v3299
      %v3301 = vpop.f32.mrf.mxu0
      %3302 = vmatprep.mubr.bf16.mxu0 0
      %3303 = vmatmul.mubr.bf16.gmra.mxu0 %v3200
      %v3304 = vpop.f32.mrf.mxu0
      %v3305 = vadd.f32 0.0, %v3304
      %v3306 = vpop.f32.mrf.mxu0
      %v3307 = vpop.f32.mrf.mxu0
      %v3308 = vadd.f32 0.0, %v3307
      %v3309 = vpop.f32.mrf.mxu0
      %3310 = vmatprep.mubr.bf16.mxu0 0
      %3311 = vmatmul.mubr.bf16.gmra.mxu0 %v3203
      %v3312 = vpop.f32.mrf.mxu0
      %v3313 = vadd.f32 0.0, %v3312
      %v3314 = vpop.f32.mrf.mxu0
      %v3315 = vpop.f32.mrf.mxu0
      %v3316 = vadd.f32 0.0, %v3315
      %v3317 = vpop.f32.mrf.mxu0
      %3318 = vmatprep.mubr.bf16.mxu0 0
      %3319 = vmatmul.mubr.bf16.gmra.mxu0 %v3206
      %v3320 = vpop.f32.mrf.mxu0
      %v3321 = vadd.f32 0.0, %v3320
      %v3322 = vpop.f32.mrf.mxu0
      %v3323 = vpop.f32.mrf.mxu0
      %v3324 = vadd.f32 0.0, %v3323
      %v3325 = vpop.f32.mrf.mxu0
      %3326 = vmatprep.mubr.bf16.mxu0 0
      %3327 = vmatmul.mubr.bf16.gmra.mxu0 %v3209
      %v3328 = vpop.f32.mrf.mxu0
      %v3329 = vadd.f32 0.0, %v3328
      %v3330 = vpop.f32.mrf.mxu0
      %v3331 = vpop.f32.mrf.mxu0
      %v3332 = vadd.f32 0.0, %v3331
      %v3333 = vpop.f32.mrf.mxu0
      %3334 = vmatprep.mubr.bf16.mxu0 0
      %3335 = vmatmul.mubr.bf16.gmra.mxu0 %v3212
      %v3336 = vpop.f32.mrf.mxu0
      %v3337 = vadd.f32 0.0, %v3336
      %v3338 = vpop.f32.mrf.mxu0
      %v3339 = vpop.f32.mrf.mxu0
      %v3340 = vadd.f32 0.0, %v3339
      %v3341 = vpop.f32.mrf.mxu0
      %3342 = vmatprep.mubr.bf16.mxu0 0
      %3343 = vmatmul.mubr.bf16.gmra.mxu0 %v3215
      %v3344 = vpop.f32.mrf.mxu0
      %v3345 = vadd.f32 0.0, %v3344
      %v3346 = vpop.f32.mrf.mxu0
      %v3347 = vpop.f32.mrf.mxu0
      %v3348 = vadd.f32 0.0, %v3347
      %v3349 = vpop.f32.mrf.mxu0
      %3350 = vmatprep.mubr.bf16.mxu0 0
      %3351 = vmatmul.mubr.bf16.gmra.mxu0 %v3218
      %v3352 = vpop.f32.mrf.mxu0
      %v3353 = vadd.f32 0.0, %v3352
      %v3354 = vpop.f32.mrf.mxu0
      %v3355 = vpop.f32.mrf.mxu0
      %v3356 = vadd.f32 0.0, %v3355
      %v3357 = vpop.f32.mrf.mxu0
      %3358 = vmatprep.mubr.bf16.mxu0 0
      %3359 = vmatmul.mubr.bf16.gmra.mxu0 %v3221
      %v3360 = vpop.f32.mrf.mxu0
      %v3361 = vadd.f32 0.0, %v3360
      %v3362 = vpop.f32.mrf.mxu0
      %v3363 = vpop.f32.mrf.mxu0
      %v3364 = vadd.f32 0.0, %v3363
      %v3365 = vpop.f32.mrf.mxu0
      %3366 = vmatprep.mubr.bf16.mxu0 0
      %3367 = vmatmul.mubr.bf16.gmra.mxu0 %v3224
      %v3368 = vpop.f32.mrf.mxu0
      %v3369 = vadd.f32 0.0, %v3368
      %v3370 = vpop.f32.mrf.mxu0
      %v3371 = vpop.f32.mrf.mxu0
      %v3372 = vadd.f32 0.0, %v3371
      %v3373 = vpop.f32.mrf.mxu0
      %3374 = vmatprep.mubr.bf16.mxu0 0
      %3375 = vmatmul.mubr.bf16.gmra.mxu0 %v3227
      %v3376 = vpop.f32.mrf.mxu0
      %v3377 = vadd.f32 0.0, %v3376
      %v3378 = vpop.f32.mrf.mxu0
      %v3379 = vpop.f32.mrf.mxu0
      %v3380 = vadd.f32 0.0, %v3379
      %v3381 = vpop.f32.mrf.mxu0
      %3382 = vmatprep.mubr.bf16.mxu0 0
      %3383 = vmatmul.mubr.bf16.gmra.mxu0 %v3230
      %v3384 = vpop.f32.mrf.mxu0
      %v3385 = vadd.f32 0.0, %v3384
      %v3386 = vpop.f32.mrf.mxu0
      %v3387 = vpop.f32.mrf.mxu0
      %v3388 = vadd.f32 0.0, %v3387
      %v3389 = vpop.f32.mrf.mxu0
      %3390 = vmatprep.mubr.bf16.mxu0 0
      %3391 = vmatmul.mubr.bf16.gmra.mxu0 %v3233
      %v3392 = vpop.f32.mrf.mxu0
      %v3393 = vadd.f32 0.0, %v3392
      %v3394 = vpop.f32.mrf.mxu0
      %v3395 = vpop.f32.mrf.mxu0
      %v3396 = vadd.f32 0.0, %v3395
      %v3397 = vpop.f32.mrf.mxu0
      %3398 = vdwg.mxu0
      %v3400 = vsel %vm226, %v3120, 0
      %v3403 = vsel %vm226, %v3121, 0
      %v3406 = vsel %vm226, %v3122, 0
      %v3409 = vsel %vm226, %v3123, 0
      %v3412 = vsel %vm226, %v3124, 0
      %v3415 = vsel %vm226, %v3125, 0
      %v3418 = vsel %vm226, %v3126, 0
      %v3421 = vsel %vm226, %v3127, 0
      %v3424 = vsel %vm226, %v3128, 0
      %v3427 = vsel %vm226, %v3129, 0
      %v3430 = vsel %vm226, %v3130, 0
      %v3433 = vsel %vm226, %v3131, 0
      %v3436 = vsel %vm226, %v3132, 0
      %v3439 = vsel %vm226, %v3133, 0
      %v3442 = vsel %vm226, %v3134, 0
      %v3445 = vsel %vm226, %v3135, 0
      %v3448 = vsel %vm494, %v3136, 0
      %3450 = vmatprep.subr.bf16.mxu0 0
      %3451 = vmatpush1.bf16.msra.mxu0 0
      %3452 = vmatprep.subr.bf16.mxu0 0
      %3453 = vmatpush1.bf16.msra.mxu0 0
      %3454 = vmatprep.subr.bf16.mxu0 0
      %3455 = vmatpush1.bf16.msra.mxu0 0
      %3456 = vmatprep.subr.bf16.mxu0 0
      %3457 = vmatpush1.bf16.msra.mxu0 0
      %3458 = vmatprep.subr.bf16.mxu0 0
      %3459 = vmatpush1.bf16.msra.mxu0 0
      %3460 = vmatprep.subr.bf16.mxu0 0
      %3461 = vmatpush1.bf16.msra.mxu0 0
      %3462 = vmatprep.subr.bf16.mxu0 0
      %3463 = vmatpush1.bf16.msra.mxu0 0
      %3464 = vmatprep.subr.bf16.mxu0 0
      %3465 = vmatpush1.bf16.msra.mxu0 %v3448
      %3466 = vmatprep.subr.bf16.mxu0 0
      %3467 = vmatpush2.bf16.msra.mxu0 0
      %3468 = vmatprep.subr.bf16.mxu0 0
      %3469 = vmatpush2.bf16.msra.mxu0 0
      %3470 = vmatprep.subr.bf16.mxu0 0
      %3471 = vmatpush2.bf16.msra.mxu0 0
      %3472 = vmatprep.subr.bf16.mxu0 0
      %3473 = vmatpush2.bf16.msra.mxu0 0
      %3474 = vmatprep.subr.bf16.mxu0 0
      %3475 = vmatpush2.bf16.msra.mxu0 0
      %3476 = vmatprep.subr.bf16.mxu0 0
      %3477 = vmatpush2.bf16.msra.mxu0 0
      %3478 = vmatprep.subr.bf16.mxu0 0
      %3479 = vmatpush2.bf16.msra.mxu0 0
      %3480 = vmatprep.subr.bf16.mxu0 0
      %3481 = vmatpush2.bf16.msra.mxu0 0
      %3482 = vmatprep.mubr.bf16.mxu0 0
      %3483 = vmatmul.mubr.bf16.gmra.mxu0 %v3400
      %v3484 = vpop.f32.mrf.mxu0
      %v3485 = vadd.f32 %v3273, %v3484
      %v3486 = vpop.f32.mrf.mxu0
      %v3487 = vpop.f32.mrf.mxu0
      %v3488 = vadd.f32 %v3276, %v3487
      %v3489 = vpop.f32.mrf.mxu0
      %3490 = vmatprep.mubr.bf16.mxu0 0
      %3491 = vmatmul.mubr.bf16.gmra.mxu0 %v3403
      %v3492 = vpop.f32.mrf.mxu0
      %v3493 = vadd.f32 %v3281, %v3492
      %v3494 = vpop.f32.mrf.mxu0
      %v3495 = vpop.f32.mrf.mxu0
      %v3496 = vadd.f32 %v3284, %v3495
      %v3497 = vpop.f32.mrf.mxu0
      %3498 = vmatprep.mubr.bf16.mxu0 0
      %3499 = vmatmul.mubr.bf16.gmra.mxu0 %v3406
      %v3500 = vpop.f32.mrf.mxu0
      %v3501 = vadd.f32 %v3289, %v3500
      %v3502 = vpop.f32.mrf.mxu0
      %v3503 = vpop.f32.mrf.mxu0
      %v3504 = vadd.f32 %v3292, %v3503
      %v3505 = vpop.f32.mrf.mxu0
      %3506 = vmatprep.mubr.bf16.mxu0 0
      %3507 = vmatmul.mubr.bf16.gmra.mxu0 %v3409
      %v3508 = vpop.f32.mrf.mxu0
      %v3509 = vadd.f32 %v3297, %v3508
      %v3510 = vpop.f32.mrf.mxu0
      %v3511 = vpop.f32.mrf.mxu0
      %v3512 = vadd.f32 %v3300, %v3511
      %v3513 = vpop.f32.mrf.mxu0
      %3514 = vmatprep.mubr.bf16.mxu0 0
      %3515 = vmatmul.mubr.bf16.gmra.mxu0 %v3412
      %v3516 = vpop.f32.mrf.mxu0
      %v3517 = vadd.f32 %v3305, %v3516
      %v3518 = vpop.f32.mrf.mxu0
      %v3519 = vpop.f32.mrf.mxu0
      %v3520 = vadd.f32 %v3308, %v3519
      %v3521 = vpop.f32.mrf.mxu0
      %3522 = vmatprep.mubr.bf16.mxu0 0
      %3523 = vmatmul.mubr.bf16.gmra.mxu0 %v3415
      %v3524 = vpop.f32.mrf.mxu0
      %v3525 = vadd.f32 %v3313, %v3524
      %v3526 = vpop.f32.mrf.mxu0
      %v3527 = vpop.f32.mrf.mxu0
      %v3528 = vadd.f32 %v3316, %v3527
      %v3529 = vpop.f32.mrf.mxu0
      %3530 = vmatprep.mubr.bf16.mxu0 0
      %3531 = vmatmul.mubr.bf16.gmra.mxu0 %v3418
      %v3532 = vpop.f32.mrf.mxu0
      %v3533 = vadd.f32 %v3321, %v3532
      %v3534 = vpop.f32.mrf.mxu0
      %v3535 = vpop.f32.mrf.mxu0
      %v3536 = vadd.f32 %v3324, %v3535
      %v3537 = vpop.f32.mrf.mxu0
      %3538 = vmatprep.mubr.bf16.mxu0 0
      %3539 = vmatmul.mubr.bf16.gmra.mxu0 %v3421
      %v3540 = vpop.f32.mrf.mxu0
      %v3541 = vadd.f32 %v3329, %v3540
      %v3542 = vpop.f32.mrf.mxu0
      %v3543 = vpop.f32.mrf.mxu0
      %v3544 = vadd.f32 %v3332, %v3543
      %v3545 = vpop.f32.mrf.mxu0
      %3546 = vmatprep.mubr.bf16.mxu0 0
      %3547 = vmatmul.mubr.bf16.gmra.mxu0 %v3424
      %v3548 = vpop.f32.mrf.mxu0
      %v3549 = vadd.f32 %v3337, %v3548
      %v3550 = vpop.f32.mrf.mxu0
      %v3551 = vpop.f32.mrf.mxu0
      %v3552 = vadd.f32 %v3340, %v3551
      %v3553 = vpop.f32.mrf.mxu0
      %3554 = vmatprep.mubr.bf16.mxu0 0
      %3555 = vmatmul.mubr.bf16.gmra.mxu0 %v3427
      %v3556 = vpop.f32.mrf.mxu0
      %v3557 = vadd.f32 %v3345, %v3556
      %v3558 = vpop.f32.mrf.mxu0
      %v3559 = vpop.f32.mrf.mxu0
      %v3560 = vadd.f32 %v3348, %v3559
      %v3561 = vpop.f32.mrf.mxu0
      %3562 = vmatprep.mubr.bf16.mxu0 0
      %3563 = vmatmul.mubr.bf16.gmra.mxu0 %v3430
      %v3564 = vpop.f32.mrf.mxu0
      %v3565 = vadd.f32 %v3353, %v3564
      %v3566 = vpop.f32.mrf.mxu0
      %v3567 = vpop.f32.mrf.mxu0
      %v3568 = vadd.f32 %v3356, %v3567
      %v3569 = vpop.f32.mrf.mxu0
      %3570 = vmatprep.mubr.bf16.mxu0 0
      %3571 = vmatmul.mubr.bf16.gmra.mxu0 %v3433
      %v3572 = vpop.f32.mrf.mxu0
      %v3573 = vadd.f32 %v3361, %v3572
      %v3574 = vpop.f32.mrf.mxu0
      %v3575 = vpop.f32.mrf.mxu0
      %v3576 = vadd.f32 %v3364, %v3575
      %v3577 = vpop.f32.mrf.mxu0
      %3578 = vmatprep.mubr.bf16.mxu0 0
      %3579 = vmatmul.mubr.bf16.gmra.mxu0 %v3436
      %v3580 = vpop.f32.mrf.mxu0
      %v3581 = vadd.f32 %v3369, %v3580
      %v3582 = vpop.f32.mrf.mxu0
      %v3583 = vpop.f32.mrf.mxu0
      %v3584 = vadd.f32 %v3372, %v3583
      %v3585 = vpop.f32.mrf.mxu0
      %3586 = vmatprep.mubr.bf16.mxu0 0
      %3587 = vmatmul.mubr.bf16.gmra.mxu0 %v3439
      %v3588 = vpop.f32.mrf.mxu0
      %v3589 = vadd.f32 %v3377, %v3588
      %v3590 = vpop.f32.mrf.mxu0
      %v3591 = vpop.f32.mrf.mxu0
      %v3592 = vadd.f32 %v3380, %v3591
      %v3593 = vpop.f32.mrf.mxu0
      %3594 = vmatprep.mubr.bf16.mxu0 0
      %3595 = vmatmul.mubr.bf16.gmra.mxu0 %v3442
      %v3596 = vpop.f32.mrf.mxu0
      %v3597 = vadd.f32 %v3385, %v3596
      %v3598 = vpop.f32.mrf.mxu0
      %v3599 = vpop.f32.mrf.mxu0
      %v3600 = vadd.f32 %v3388, %v3599
      %v3601 = vpop.f32.mrf.mxu0
      %3602 = vmatprep.mubr.bf16.mxu0 0
      %3603 = vmatmul.mubr.bf16.gmra.mxu0 %v3445
      %v3604 = vpop.f32.mrf.mxu0
      %v3605 = vadd.f32 %v3393, %v3604
      %v3606 = vpop.f32.mrf.mxu0
      %v3607 = vpop.f32.mrf.mxu0
      %v3608 = vadd.f32 %v3396, %v3607
      %v3609 = vpop.f32.mrf.mxu0
      %3610 = vdwg.mxu0
      %v3611 = vld [vmem:[#allocation3 + $0x2] sm:$0xff]
      %v3612 = vld [vmem:[#allocation3 + $0xa] sm:$0xff]
      %v3613 = vld [vmem:[#allocation3 + $0x1a] sm:$0xff]
      %v3614 = vld [vmem:[#allocation3 + $0x22] sm:$0xff]
      %v3615 = vld [vmem:[#allocation3 + $0x32] sm:$0xff]
      %v3616 = vld [vmem:[#allocation3 + $0x3a] sm:$0xff]
      %v3617 = vld [vmem:[#allocation3 + $0x4a] sm:$0xff]
      %v3618 = vld [vmem:[#allocation3 + $0x52] sm:$0xff]
      %v3619 = vld [vmem:[#allocation3 + $0x62] sm:$0xff]
      %v3620 = vld [vmem:[#allocation3 + $0x6a] sm:$0xff]
      %v3621 = vld [vmem:[#allocation3 + $0x7a] sm:$0xff]
      %v3622 = vld [vmem:[#allocation3 + $0x82] sm:$0xff]
      %v3623 = vld [vmem:[#allocation3 + $0x92] sm:$0xff]
      %v3624 = vld [vmem:[#allocation3 + $0x9a] sm:$0xff]
      %v3625 = vld [vmem:[#allocation3 + $0xaa] sm:$0xff]
      %v3626 = vld [vmem:[#allocation3 + $0xb2] sm:$0xff]
      %v3627 = vld [vmem:[#allocation3 + $0xc2] sm:$0xff]
      %v3628 = vld [vmem:[#allocation3 + $0xca] sm:$0xff]
      %v3629 = vld [vmem:[#allocation3 + $0xda] sm:$0xff]
      %v3630 = vld [vmem:[#allocation3 + $0xe2] sm:$0xff]
      %v3631 = vld [vmem:[#allocation3 + $0xf2] sm:$0xff]
      %v3632 = vld [vmem:[#allocation3 + $0xfa] sm:$0xff]
      %v3633 = vld [vmem:[#allocation3 + $0x10a] sm:$0xff]
      %v3634 = vld [vmem:[#allocation3 + $0x112] sm:$0xff]
      %v3635 = vld [vmem:[#allocation3 + $0x122] sm:$0xff]
      %v3636 = vld [vmem:[#allocation3 + $0x12a] sm:$0xff]
      %v3637 = vld [vmem:[#allocation3 + $0x13a] sm:$0xff]
      %v3638 = vld [vmem:[#allocation3 + $0x142] sm:$0xff]
      %v3639 = vld [vmem:[#allocation3 + $0x152] sm:$0xff]
      %v3640 = vld [vmem:[#allocation3 + $0x15a] sm:$0xff]
      %v3641 = vld [vmem:[#allocation3 + $0x16a] sm:$0xff]
      %v3642 = vld [vmem:[#allocation3 + $0x172] sm:$0xff]
      %v3643 = vpack.c.bf16 %v3612, %v3611
      %v3644 = vpack.c.bf16 %v3614, %v3613
      %v3645 = vpack.c.bf16 %v3616, %v3615
      %v3646 = vpack.c.bf16 %v3618, %v3617
      %v3647 = vpack.c.bf16 %v3620, %v3619
      %v3648 = vpack.c.bf16 %v3622, %v3621
      %v3649 = vpack.c.bf16 %v3624, %v3623
      %v3650 = vpack.c.bf16 %v3626, %v3625
      %v3651 = vpack.c.bf16 %v3628, %v3627
      %v3652 = vpack.c.bf16 %v3630, %v3629
      %v3653 = vpack.c.bf16 %v3632, %v3631
      %v3654 = vpack.c.bf16 %v3634, %v3633
      %v3655 = vpack.c.bf16 %v3636, %v3635
      %v3656 = vpack.c.bf16 %v3638, %v3637
      %v3657 = vpack.c.bf16 %v3640, %v3639
      %v3658 = vpack.c.bf16 %v3642, %v3641
      %s3659 = scalar_lea.vmem %s2, 4
      %v3660 = vld [vmem:[%s3659] sm:$0x3]
      %v3662 = vsel %vm226, %v3643, 0
      %v3665 = vsel %vm226, %v3644, 0
      %v3668 = vsel %vm226, %v3645, 0
      %v3671 = vsel %vm226, %v3646, 0
      %v3674 = vsel %vm226, %v3647, 0
      %v3677 = vsel %vm226, %v3648, 0
      %v3680 = vsel %vm226, %v3649, 0
      %v3683 = vsel %vm226, %v3650, 0
      %v3686 = vsel %vm226, %v3651, 0
      %v3689 = vsel %vm226, %v3652, 0
      %v3692 = vsel %vm226, %v3653, 0
      %v3695 = vsel %vm226, %v3654, 0
      %v3698 = vsel %vm226, %v3655, 0
      %v3701 = vsel %vm226, %v3656, 0
      %v3704 = vsel %vm226, %v3657, 0
      %v3707 = vsel %vm226, %v3658, 0
      %v3710 = vsel %vm494, %v3660, 0
      %3712 = vmatprep.subr.bf16.mxu0 0
      %3713 = vmatpush1.bf16.msra.mxu0 0
      %3714 = vmatprep.subr.bf16.mxu0 0
      %3715 = vmatpush1.bf16.msra.mxu0 0
      %3716 = vmatprep.subr.bf16.mxu0 0
      %3717 = vmatpush1.bf16.msra.mxu0 0
      %3718 = vmatprep.subr.bf16.mxu0 0
      %3719 = vmatpush1.bf16.msra.mxu0 0
      %3720 = vmatprep.subr.bf16.mxu0 0
      %3721 = vmatpush1.bf16.msra.mxu0 0
      %3722 = vmatprep.subr.bf16.mxu0 0
      %3723 = vmatpush1.bf16.msra.mxu0 0
      %3724 = vmatprep.subr.bf16.mxu0 0
      %3725 = vmatpush1.bf16.msra.mxu0 0
      %3726 = vmatprep.subr.bf16.mxu0 0
      %3727 = vmatpush1.bf16.msra.mxu0 %v3710
      %3728 = vmatprep.subr.bf16.mxu0 0
      %3729 = vmatpush2.bf16.msra.mxu0 0
      %3730 = vmatprep.subr.bf16.mxu0 0
      %3731 = vmatpush2.bf16.msra.mxu0 0
      %3732 = vmatprep.subr.bf16.mxu0 0
      %3733 = vmatpush2.bf16.msra.mxu0 0
      %3734 = vmatprep.subr.bf16.mxu0 0
      %3735 = vmatpush2.bf16.msra.mxu0 0
      %3736 = vmatprep.subr.bf16.mxu0 0
      %3737 = vmatpush2.bf16.msra.mxu0 0
      %3738 = vmatprep.subr.bf16.mxu0 0
      %3739 = vmatpush2.bf16.msra.mxu0 0
      %3740 = vmatprep.subr.bf16.mxu0 0
      %3741 = vmatpush2.bf16.msra.mxu0 0
      %3742 = vmatprep.subr.bf16.mxu0 0
      %3743 = vmatpush2.bf16.msra.mxu0 0
      %3744 = vmatprep.mubr.bf16.mxu0 0
      %3745 = vmatmul.mubr.bf16.gmra.mxu0 %v3662
      %v3746 = vpop.f32.mrf.mxu0
      %v3747 = vadd.f32 0.0, %v3746
      %v3748 = vpop.f32.mrf.mxu0
      %v3749 = vpop.f32.mrf.mxu0
      %v3750 = vadd.f32 0.0, %v3749
      %v3751 = vpop.f32.mrf.mxu0
      %3752 = vmatprep.mubr.bf16.mxu0 0
      %3753 = vmatmul.mubr.bf16.gmra.mxu0 %v3665
      %v3754 = vpop.f32.mrf.mxu0
      %v3755 = vadd.f32 0.0, %v3754
      %v3756 = vpop.f32.mrf.mxu0
      %v3757 = vpop.f32.mrf.mxu0
      %v3758 = vadd.f32 0.0, %v3757
      %v3759 = vpop.f32.mrf.mxu0
      %3760 = vmatprep.mubr.bf16.mxu0 0
      %3761 = vmatmul.mubr.bf16.gmra.mxu0 %v3668
      %v3762 = vpop.f32.mrf.mxu0
      %v3763 = vadd.f32 0.0, %v3762
      %v3764 = vpop.f32.mrf.mxu0
      %v3765 = vpop.f32.mrf.mxu0
      %v3766 = vadd.f32 0.0, %v3765
      %v3767 = vpop.f32.mrf.mxu0
      %3768 = vmatprep.mubr.bf16.mxu0 0
      %3769 = vmatmul.mubr.bf16.gmra.mxu0 %v3671
      %v3770 = vpop.f32.mrf.mxu0
      %v3771 = vadd.f32 0.0, %v3770
      %v3772 = vpop.f32.mrf.mxu0
      %v3773 = vpop.f32.mrf.mxu0
      %v3774 = vadd.f32 0.0, %v3773
      %v3775 = vpop.f32.mrf.mxu0
      %3776 = vmatprep.mubr.bf16.mxu0 0
      %3777 = vmatmul.mubr.bf16.gmra.mxu0 %v3674
      %v3778 = vpop.f32.mrf.mxu0
      %v3779 = vadd.f32 0.0, %v3778
      %v3780 = vpop.f32.mrf.mxu0
      %v3781 = vpop.f32.mrf.mxu0
      %v3782 = vadd.f32 0.0, %v3781
      %v3783 = vpop.f32.mrf.mxu0
      %3784 = vmatprep.mubr.bf16.mxu0 0
      %3785 = vmatmul.mubr.bf16.gmra.mxu0 %v3677
      %v3786 = vpop.f32.mrf.mxu0
      %v3787 = vadd.f32 0.0, %v3786
      %v3788 = vpop.f32.mrf.mxu0
      %v3789 = vpop.f32.mrf.mxu0
      %v3790 = vadd.f32 0.0, %v3789
      %v3791 = vpop.f32.mrf.mxu0
      %3792 = vmatprep.mubr.bf16.mxu0 0
      %3793 = vmatmul.mubr.bf16.gmra.mxu0 %v3680
      %v3794 = vpop.f32.mrf.mxu0
      %v3795 = vadd.f32 0.0, %v3794
      %v3796 = vpop.f32.mrf.mxu0
      %v3797 = vpop.f32.mrf.mxu0
      %v3798 = vadd.f32 0.0, %v3797
      %v3799 = vpop.f32.mrf.mxu0
      %3800 = vmatprep.mubr.bf16.mxu0 0
      %3801 = vmatmul.mubr.bf16.gmra.mxu0 %v3683
      %v3802 = vpop.f32.mrf.mxu0
      %v3803 = vadd.f32 0.0, %v3802
      %v3804 = vpop.f32.mrf.mxu0
      %v3805 = vpop.f32.mrf.mxu0
      %v3806 = vadd.f32 0.0, %v3805
      %v3807 = vpop.f32.mrf.mxu0
      %3808 = vmatprep.mubr.bf16.mxu0 0
      %3809 = vmatmul.mubr.bf16.gmra.mxu0 %v3686
      %v3810 = vpop.f32.mrf.mxu0
      %v3811 = vadd.f32 0.0, %v3810
      %v3812 = vpop.f32.mrf.mxu0
      %v3813 = vpop.f32.mrf.mxu0
      %v3814 = vadd.f32 0.0, %v3813
      %v3815 = vpop.f32.mrf.mxu0
      %3816 = vmatprep.mubr.bf16.mxu0 0
      %3817 = vmatmul.mubr.bf16.gmra.mxu0 %v3689
      %v3818 = vpop.f32.mrf.mxu0
      %v3819 = vadd.f32 0.0, %v3818
      %v3820 = vpop.f32.mrf.mxu0
      %v3821 = vpop.f32.mrf.mxu0
      %v3822 = vadd.f32 0.0, %v3821
      %v3823 = vpop.f32.mrf.mxu0
      %3824 = vmatprep.mubr.bf16.mxu0 0
      %3825 = vmatmul.mubr.bf16.gmra.mxu0 %v3692
      %v3826 = vpop.f32.mrf.mxu0
      %v3827 = vadd.f32 0.0, %v3826
      %v3828 = vpop.f32.mrf.mxu0
      %v3829 = vpop.f32.mrf.mxu0
      %v3830 = vadd.f32 0.0, %v3829
      %v3831 = vpop.f32.mrf.mxu0
      %3832 = vmatprep.mubr.bf16.mxu0 0
      %3833 = vmatmul.mubr.bf16.gmra.mxu0 %v3695
      %v3834 = vpop.f32.mrf.mxu0
      %v3835 = vadd.f32 0.0, %v3834
      %v3836 = vpop.f32.mrf.mxu0
      %v3837 = vpop.f32.mrf.mxu0
      %v3838 = vadd.f32 0.0, %v3837
      %v3839 = vpop.f32.mrf.mxu0
      %3840 = vmatprep.mubr.bf16.mxu0 0
      %3841 = vmatmul.mubr.bf16.gmra.mxu0 %v3698
      %v3842 = vpop.f32.mrf.mxu0
      %v3843 = vadd.f32 0.0, %v3842
      %v3844 = vpop.f32.mrf.mxu0
      %v3845 = vpop.f32.mrf.mxu0
      %v3846 = vadd.f32 0.0, %v3845
      %v3847 = vpop.f32.mrf.mxu0
      %3848 = vmatprep.mubr.bf16.mxu0 0
      %3849 = vmatmul.mubr.bf16.gmra.mxu0 %v3701
      %v3850 = vpop.f32.mrf.mxu0
      %v3851 = vadd.f32 0.0, %v3850
      %v3852 = vpop.f32.mrf.mxu0
      %v3853 = vpop.f32.mrf.mxu0
      %v3854 = vadd.f32 0.0, %v3853
      %v3855 = vpop.f32.mrf.mxu0
      %3856 = vmatprep.mubr.bf16.mxu0 0
      %3857 = vmatmul.mubr.bf16.gmra.mxu0 %v3704
      %v3858 = vpop.f32.mrf.mxu0
      %v3859 = vadd.f32 0.0, %v3858
      %v3860 = vpop.f32.mrf.mxu0
      %v3861 = vpop.f32.mrf.mxu0
      %v3862 = vadd.f32 0.0, %v3861
      %v3863 = vpop.f32.mrf.mxu0
      %3864 = vmatprep.mubr.bf16.mxu0 0
      %3865 = vmatmul.mubr.bf16.gmra.mxu0 %v3707
      %v3866 = vpop.f32.mrf.mxu0
      %v3867 = vadd.f32 0.0, %v3866
      %v3868 = vpop.f32.mrf.mxu0
      %v3869 = vpop.f32.mrf.mxu0
      %v3870 = vadd.f32 0.0, %v3869
      %v3871 = vpop.f32.mrf.mxu0
      %3872 = vdwg.mxu0
      %v3873 = vadd.f32 %v3485, %v3747
      %v3874 = vadd.f32 %v3488, %v3750
      %v3875 = vadd.f32 %v3493, %v3755
      %v3876 = vadd.f32 %v3496, %v3758
      %v3877 = vadd.f32 %v3501, %v3763
      %v3878 = vadd.f32 %v3504, %v3766
      %v3879 = vadd.f32 %v3509, %v3771
      %v3880 = vadd.f32 %v3512, %v3774
      %v3881 = vadd.f32 %v3517, %v3779
      %v3882 = vadd.f32 %v3520, %v3782
      %v3883 = vadd.f32 %v3525, %v3787
      %v3884 = vadd.f32 %v3528, %v3790
      %v3885 = vadd.f32 %v3533, %v3795
      %v3886 = vadd.f32 %v3536, %v3798
      %v3887 = vadd.f32 %v3541, %v3803
      %v3888 = vadd.f32 %v3544, %v3806
      %v3889 = vadd.f32 %v3549, %v3811
      %v3890 = vadd.f32 %v3552, %v3814
      %v3891 = vadd.f32 %v3557, %v3819
      %v3892 = vadd.f32 %v3560, %v3822
      %v3893 = vadd.f32 %v3565, %v3827
      %v3894 = vadd.f32 %v3568, %v3830
      %v3895 = vadd.f32 %v3573, %v3835
      %v3896 = vadd.f32 %v3576, %v3838
      %v3897 = vadd.f32 %v3581, %v3843
      %v3898 = vadd.f32 %v3584, %v3846
      %v3899 = vadd.f32 %v3589, %v3851
      %v3900 = vadd.f32 %v3592, %v3854
      %v3901 = vadd.f32 %v3597, %v3859
      %v3902 = vadd.f32 %v3600, %v3862
      %v3903 = vadd.f32 %v3605, %v3867
      %v3904 = vadd.f32 %v3608, %v3870
      %v3905 = vld [vmem:[%s3055] sm:$0xff]
      %v3906 = vld [vmem:[%s3055 + $0x8] sm:$0xff]
      %v3907 = vld [vmem:[%s3055 + $0x18] sm:$0xff]
      %v3908 = vld [vmem:[%s3055 + $0x20] sm:$0xff]
      %v3909 = vld [vmem:[%s3055 + $0x30] sm:$0xff]
      %v3910 = vld [vmem:[%s3055 + $0x38] sm:$0xff]
      %v3911 = vld [vmem:[%s3055 + $0x48] sm:$0xff]
      %v3912 = vld [vmem:[%s3055 + $0x50] sm:$0xff]
      %v3913 = vld [vmem:[%s3055 + $0x60] sm:$0xff]
      %v3914 = vld [vmem:[%s3055 + $0x68] sm:$0xff]
      %v3915 = vld [vmem:[%s3055 + $0x78] sm:$0xff]
      %v3916 = vld [vmem:[%s3055 + $0x80] sm:$0xff]
      %v3917 = vld [vmem:[%s3055 + $0x90] sm:$0xff]
      %v3918 = vld [vmem:[%s3055 + $0x98] sm:$0xff]
      %v3919 = vld [vmem:[%s3055 + $0xa8] sm:$0xff]
      %v3920 = vld [vmem:[%s3055 + $0xb0] sm:$0xff]
      %v3921 = vld [vmem:[%s3055 + $0xc0] sm:$0xff]
      %v3922 = vld [vmem:[%s3055 + $0xc8] sm:$0xff]
      %v3923 = vld [vmem:[%s3055 + $0xd8] sm:$0xff]
      %v3924 = vld [vmem:[%s3055 + $0xe0] sm:$0xff]
      %v3925 = vld [vmem:[%s3055 + $0xf0] sm:$0xff]
      %v3926 = vld [vmem:[%s3055 + $0xf8] sm:$0xff]
      %v3927 = vld [vmem:[%s3055 + $0x108] sm:$0xff]
      %v3928 = vld [vmem:[%s3055 + $0x110] sm:$0xff]
      %v3929 = vld [vmem:[%s3055 + $0x120] sm:$0xff]
      %v3930 = vld [vmem:[%s3055 + $0x128] sm:$0xff]
      %v3931 = vld [vmem:[%s3055 + $0x138] sm:$0xff]
      %v3932 = vld [vmem:[%s3055 + $0x140] sm:$0xff]
      %v3933 = vld [vmem:[%s3055 + $0x150] sm:$0xff]
      %v3934 = vld [vmem:[%s3055 + $0x158] sm:$0xff]
      %v3935 = vld [vmem:[%s3055 + $0x168] sm:$0xff]
      %v3936 = vld [vmem:[%s3055 + $0x170] sm:$0xff]
      %v3937 = vpack.c.bf16 %v3906, %v3905
      %v3938 = vpack.c.bf16 %v3908, %v3907
      %v3939 = vpack.c.bf16 %v3910, %v3909
      %v3940 = vpack.c.bf16 %v3912, %v3911
      %v3941 = vpack.c.bf16 %v3914, %v3913
      %v3942 = vpack.c.bf16 %v3916, %v3915
      %v3943 = vpack.c.bf16 %v3918, %v3917
      %v3944 = vpack.c.bf16 %v3920, %v3919
      %v3945 = vpack.c.bf16 %v3922, %v3921
      %v3946 = vpack.c.bf16 %v3924, %v3923
      %v3947 = vpack.c.bf16 %v3926, %v3925
      %v3948 = vpack.c.bf16 %v3928, %v3927
      %v3949 = vpack.c.bf16 %v3930, %v3929
      %v3950 = vpack.c.bf16 %v3932, %v3931
      %v3951 = vpack.c.bf16 %v3934, %v3933
      %v3952 = vpack.c.bf16 %v3936, %v3935
      %s3953 = scalar_lea.vmem %s2, 6
      %v3954 = vld [vmem:[%s3953] sm:$0x3]
      %v3956 = vsel %vm226, %v3937, 0
      %v3959 = vsel %vm226, %v3938, 0
      %v3962 = vsel %vm226, %v3939, 0
      %v3965 = vsel %vm226, %v3940, 0
      %v3968 = vsel %vm226, %v3941, 0
      %v3971 = vsel %vm226, %v3942, 0
      %v3974 = vsel %vm226, %v3943, 0
      %v3977 = vsel %vm226, %v3944, 0
      %v3980 = vsel %vm226, %v3945, 0
      %v3983 = vsel %vm226, %v3946, 0
      %v3986 = vsel %vm226, %v3947, 0
      %v3989 = vsel %vm226, %v3948, 0
      %v3992 = vsel %vm226, %v3949, 0
      %v3995 = vsel %vm226, %v3950, 0
      %v3998 = vsel %vm226, %v3951, 0
      %v4001 = vsel %vm226, %v3952, 0
      %v4004 = vsel %vm494, %v3954, 0
      %4006 = vmatprep.subr.bf16.mxu0 0
      %4007 = vmatpush1.bf16.msra.mxu0 0
      %4008 = vmatprep.subr.bf16.mxu0 0
      %4009 = vmatpush1.bf16.msra.mxu0 0
      %4010 = vmatprep.subr.bf16.mxu0 0
      %4011 = vmatpush1.bf16.msra.mxu0 0
      %4012 = vmatprep.subr.bf16.mxu0 0
      %4013 = vmatpush1.bf16.msra.mxu0 0
      %4014 = vmatprep.subr.bf16.mxu0 0
      %4015 = vmatpush1.bf16.msra.mxu0 0
      %4016 = vmatprep.subr.bf16.mxu0 0
      %4017 = vmatpush1.bf16.msra.mxu0 0
      %4018 = vmatprep.subr.bf16.mxu0 0
      %4019 = vmatpush1.bf16.msra.mxu0 0
      %4020 = vmatprep.subr.bf16.mxu0 0
      %4021 = vmatpush1.bf16.msra.mxu0 %v4004
      %4022 = vmatprep.subr.bf16.mxu0 0
      %4023 = vmatpush2.bf16.msra.mxu0 0
      %4024 = vmatprep.subr.bf16.mxu0 0
      %4025 = vmatpush2.bf16.msra.mxu0 0
      %4026 = vmatprep.subr.bf16.mxu0 0
      %4027 = vmatpush2.bf16.msra.mxu0 0
      %4028 = vmatprep.subr.bf16.mxu0 0
      %4029 = vmatpush2.bf16.msra.mxu0 0
      %4030 = vmatprep.subr.bf16.mxu0 0
      %4031 = vmatpush2.bf16.msra.mxu0 0
      %4032 = vmatprep.subr.bf16.mxu0 0
      %4033 = vmatpush2.bf16.msra.mxu0 0
      %4034 = vmatprep.subr.bf16.mxu0 0
      %4035 = vmatpush2.bf16.msra.mxu0 0
      %4036 = vmatprep.subr.bf16.mxu0 0
      %4037 = vmatpush2.bf16.msra.mxu0 0
      %4038 = vmatprep.mubr.bf16.mxu0 0
      %4039 = vmatmul.mubr.bf16.gmra.mxu0 %v3956
      %v4040 = vpop.f32.mrf.mxu0
      %v4041 = vadd.f32 0.0, %v4040
      %v4042 = vpop.f32.mrf.mxu0
      %v4043 = vpop.f32.mrf.mxu0
      %v4044 = vadd.f32 0.0, %v4043
      %v4045 = vpop.f32.mrf.mxu0
      %4046 = vmatprep.mubr.bf16.mxu0 0
      %4047 = vmatmul.mubr.bf16.gmra.mxu0 %v3959
      %v4048 = vpop.f32.mrf.mxu0
      %v4049 = vadd.f32 0.0, %v4048
      %v4050 = vpop.f32.mrf.mxu0
      %v4051 = vpop.f32.mrf.mxu0
      %v4052 = vadd.f32 0.0, %v4051
      %v4053 = vpop.f32.mrf.mxu0
      %4054 = vmatprep.mubr.bf16.mxu0 0
      %4055 = vmatmul.mubr.bf16.gmra.mxu0 %v3962
      %v4056 = vpop.f32.mrf.mxu0
      %v4057 = vadd.f32 0.0, %v4056
      %v4058 = vpop.f32.mrf.mxu0
      %v4059 = vpop.f32.mrf.mxu0
      %v4060 = vadd.f32 0.0, %v4059
      %v4061 = vpop.f32.mrf.mxu0
      %4062 = vmatprep.mubr.bf16.mxu0 0
      %4063 = vmatmul.mubr.bf16.gmra.mxu0 %v3965
      %v4064 = vpop.f32.mrf.mxu0
      %v4065 = vadd.f32 0.0, %v4064
      %v4066 = vpop.f32.mrf.mxu0
      %v4067 = vpop.f32.mrf.mxu0
      %v4068 = vadd.f32 0.0, %v4067
      %v4069 = vpop.f32.mrf.mxu0
      %4070 = vmatprep.mubr.bf16.mxu0 0
      %4071 = vmatmul.mubr.bf16.gmra.mxu0 %v3968
      %v4072 = vpop.f32.mrf.mxu0
      %v4073 = vadd.f32 0.0, %v4072
      %v4074 = vpop.f32.mrf.mxu0
      %v4075 = vpop.f32.mrf.mxu0
      %v4076 = vadd.f32 0.0, %v4075
      %v4077 = vpop.f32.mrf.mxu0
      %4078 = vmatprep.mubr.bf16.mxu0 0
      %4079 = vmatmul.mubr.bf16.gmra.mxu0 %v3971
      %v4080 = vpop.f32.mrf.mxu0
      %v4081 = vadd.f32 0.0, %v4080
      %v4082 = vpop.f32.mrf.mxu0
      %v4083 = vpop.f32.mrf.mxu0
      %v4084 = vadd.f32 0.0, %v4083
      %v4085 = vpop.f32.mrf.mxu0
      %4086 = vmatprep.mubr.bf16.mxu0 0
      %4087 = vmatmul.mubr.bf16.gmra.mxu0 %v3974
      %v4088 = vpop.f32.mrf.mxu0
      %v4089 = vadd.f32 0.0, %v4088
      %v4090 = vpop.f32.mrf.mxu0
      %v4091 = vpop.f32.mrf.mxu0
      %v4092 = vadd.f32 0.0, %v4091
      %v4093 = vpop.f32.mrf.mxu0
      %4094 = vmatprep.mubr.bf16.mxu0 0
      %4095 = vmatmul.mubr.bf16.gmra.mxu0 %v3977
      %v4096 = vpop.f32.mrf.mxu0
      %v4097 = vadd.f32 0.0, %v4096
      %v4098 = vpop.f32.mrf.mxu0
      %v4099 = vpop.f32.mrf.mxu0
      %v4100 = vadd.f32 0.0, %v4099
      %v4101 = vpop.f32.mrf.mxu0
      %4102 = vmatprep.mubr.bf16.mxu0 0
      %4103 = vmatmul.mubr.bf16.gmra.mxu0 %v3980
      %v4104 = vpop.f32.mrf.mxu0
      %v4105 = vadd.f32 0.0, %v4104
      %v4106 = vpop.f32.mrf.mxu0
      %v4107 = vpop.f32.mrf.mxu0
      %v4108 = vadd.f32 0.0, %v4107
      %v4109 = vpop.f32.mrf.mxu0
      %4110 = vmatprep.mubr.bf16.mxu0 0
      %4111 = vmatmul.mubr.bf16.gmra.mxu0 %v3983
      %v4112 = vpop.f32.mrf.mxu0
      %v4113 = vadd.f32 0.0, %v4112
      %v4114 = vpop.f32.mrf.mxu0
      %v4115 = vpop.f32.mrf.mxu0
      %v4116 = vadd.f32 0.0, %v4115
      %v4117 = vpop.f32.mrf.mxu0
      %4118 = vmatprep.mubr.bf16.mxu0 0
      %4119 = vmatmul.mubr.bf16.gmra.mxu0 %v3986
      %v4120 = vpop.f32.mrf.mxu0
      %v4121 = vadd.f32 0.0, %v4120
      %v4122 = vpop.f32.mrf.mxu0
      %v4123 = vpop.f32.mrf.mxu0
      %v4124 = vadd.f32 0.0, %v4123
      %v4125 = vpop.f32.mrf.mxu0
      %4126 = vmatprep.mubr.bf16.mxu0 0
      %4127 = vmatmul.mubr.bf16.gmra.mxu0 %v3989
      %v4128 = vpop.f32.mrf.mxu0
      %v4129 = vadd.f32 0.0, %v4128
      %v4130 = vpop.f32.mrf.mxu0
      %v4131 = vpop.f32.mrf.mxu0
      %v4132 = vadd.f32 0.0, %v4131
      %v4133 = vpop.f32.mrf.mxu0
      %4134 = vmatprep.mubr.bf16.mxu0 0
      %4135 = vmatmul.mubr.bf16.gmra.mxu0 %v3992
      %v4136 = vpop.f32.mrf.mxu0
      %v4137 = vadd.f32 0.0, %v4136
      %v4138 = vpop.f32.mrf.mxu0
      %v4139 = vpop.f32.mrf.mxu0
      %v4140 = vadd.f32 0.0, %v4139
      %v4141 = vpop.f32.mrf.mxu0
      %4142 = vmatprep.mubr.bf16.mxu0 0
      %4143 = vmatmul.mubr.bf16.gmra.mxu0 %v3995
      %v4144 = vpop.f32.mrf.mxu0
      %v4145 = vadd.f32 0.0, %v4144
      %v4146 = vpop.f32.mrf.mxu0
      %v4147 = vpop.f32.mrf.mxu0
      %v4148 = vadd.f32 0.0, %v4147
      %v4149 = vpop.f32.mrf.mxu0
      %4150 = vmatprep.mubr.bf16.mxu0 0
      %4151 = vmatmul.mubr.bf16.gmra.mxu0 %v3998
      %v4152 = vpop.f32.mrf.mxu0
      %v4153 = vadd.f32 0.0, %v4152
      %v4154 = vpop.f32.mrf.mxu0
      %v4155 = vpop.f32.mrf.mxu0
      %v4156 = vadd.f32 0.0, %v4155
      %v4157 = vpop.f32.mrf.mxu0
      %4158 = vmatprep.mubr.bf16.mxu0 0
      %4159 = vmatmul.mubr.bf16.gmra.mxu0 %v4001
      %v4160 = vpop.f32.mrf.mxu0
      %v4161 = vadd.f32 0.0, %v4160
      %v4162 = vpop.f32.mrf.mxu0
      %v4163 = vpop.f32.mrf.mxu0
      %v4164 = vadd.f32 0.0, %v4163
      %v4165 = vpop.f32.mrf.mxu0
      %4166 = vdwg.mxu0
      %v4167 = vadd.f32 %v3873, %v4041
      %v4168 = vadd.f32 %v3874, %v4044
      %v4169 = vadd.f32 %v3875, %v4049
      %v4170 = vadd.f32 %v3876, %v4052
      %v4171 = vadd.f32 %v3877, %v4057
      %v4172 = vadd.f32 %v3878, %v4060
      %v4173 = vadd.f32 %v3879, %v4065
      %v4174 = vadd.f32 %v3880, %v4068
      %v4175 = vadd.f32 %v3881, %v4073
      %v4176 = vadd.f32 %v3882, %v4076
      %v4177 = vadd.f32 %v3883, %v4081
      %v4178 = vadd.f32 %v3884, %v4084
      %v4179 = vadd.f32 %v3885, %v4089
      %v4180 = vadd.f32 %v3886, %v4092
      %v4181 = vadd.f32 %v3887, %v4097
      %v4182 = vadd.f32 %v3888, %v4100
      %v4183 = vadd.f32 %v3889, %v4105
      %v4184 = vadd.f32 %v3890, %v4108
      %v4185 = vadd.f32 %v3891, %v4113
      %v4186 = vadd.f32 %v3892, %v4116
      %v4187 = vadd.f32 %v3893, %v4121
      %v4188 = vadd.f32 %v3894, %v4124
      %v4189 = vadd.f32 %v3895, %v4129
      %v4190 = vadd.f32 %v3896, %v4132
      %v4191 = vadd.f32 %v3897, %v4137
      %v4192 = vadd.f32 %v3898, %v4140
      %v4193 = vadd.f32 %v3899, %v4145
      %v4194 = vadd.f32 %v3900, %v4148
      %v4195 = vadd.f32 %v3901, %v4153
      %v4196 = vadd.f32 %v3902, %v4156
      %v4197 = vadd.f32 %v3903, %v4161
      %v4198 = vadd.f32 %v3904, %v4164
      %v4199 = vld [vmem:[%s3055 + $0x1] sm:$0xff]
      %v4200 = vld [vmem:[%s3055 + $0x9] sm:$0xff]
      %v4201 = vld [vmem:[%s3055 + $0x19] sm:$0xff]
      %v4202 = vld [vmem:[%s3055 + $0x21] sm:$0xff]
      %v4203 = vld [vmem:[%s3055 + $0x31] sm:$0xff]
      %v4204 = vld [vmem:[%s3055 + $0x39] sm:$0xff]
      %v4205 = vld [vmem:[%s3055 + $0x49] sm:$0xff]
      %v4206 = vld [vmem:[%s3055 + $0x51] sm:$0xff]
      %v4207 = vld [vmem:[%s3055 + $0x61] sm:$0xff]
      %v4208 = vld [vmem:[%s3055 + $0x69] sm:$0xff]
      %v4209 = vld [vmem:[%s3055 + $0x79] sm:$0xff]
      %v4210 = vld [vmem:[%s3055 + $0x81] sm:$0xff]
      %v4211 = vld [vmem:[%s3055 + $0x91] sm:$0xff]
      %v4212 = vld [vmem:[%s3055 + $0x99] sm:$0xff]
      %v4213 = vld [vmem:[%s3055 + $0xa9] sm:$0xff]
      %v4214 = vld [vmem:[%s3055 + $0xb1] sm:$0xff]
      %v4215 = vld [vmem:[%s3055 + $0xc1] sm:$0xff]
      %v4216 = vld [vmem:[%s3055 + $0xc9] sm:$0xff]
      %v4217 = vld [vmem:[%s3055 + $0xd9] sm:$0xff]
      %v4218 = vld [vmem:[%s3055 + $0xe1] sm:$0xff]
      %v4219 = vld [vmem:[%s3055 + $0xf1] sm:$0xff]
      %v4220 = vld [vmem:[%s3055 + $0xf9] sm:$0xff]
      %v4221 = vld [vmem:[%s3055 + $0x109] sm:$0xff]
      %v4222 = vld [vmem:[%s3055 + $0x111] sm:$0xff]
      %v4223 = vld [vmem:[%s3055 + $0x121] sm:$0xff]
      %v4224 = vld [vmem:[%s3055 + $0x129] sm:$0xff]
      %v4225 = vld [vmem:[%s3055 + $0x139] sm:$0xff]
      %v4226 = vld [vmem:[%s3055 + $0x141] sm:$0xff]
      %v4227 = vld [vmem:[%s3055 + $0x151] sm:$0xff]
      %v4228 = vld [vmem:[%s3055 + $0x159] sm:$0xff]
      %v4229 = vld [vmem:[%s3055 + $0x169] sm:$0xff]
      %v4230 = vld [vmem:[%s3055 + $0x171] sm:$0xff]
      %v4231 = vpack.c.bf16 %v4200, %v4199
      %v4232 = vpack.c.bf16 %v4202, %v4201
      %v4233 = vpack.c.bf16 %v4204, %v4203
      %v4234 = vpack.c.bf16 %v4206, %v4205
      %v4235 = vpack.c.bf16 %v4208, %v4207
      %v4236 = vpack.c.bf16 %v4210, %v4209
      %v4237 = vpack.c.bf16 %v4212, %v4211
      %v4238 = vpack.c.bf16 %v4214, %v4213
      %v4239 = vpack.c.bf16 %v4216, %v4215
      %v4240 = vpack.c.bf16 %v4218, %v4217
      %v4241 = vpack.c.bf16 %v4220, %v4219
      %v4242 = vpack.c.bf16 %v4222, %v4221
      %v4243 = vpack.c.bf16 %v4224, %v4223
      %v4244 = vpack.c.bf16 %v4226, %v4225
      %v4245 = vpack.c.bf16 %v4228, %v4227
      %v4246 = vpack.c.bf16 %v4230, %v4229
      %s4247 = scalar_lea.vmem %s2, 8
      %v4248 = vld [vmem:[%s4247] sm:$0x3]
      %v4250 = vsel %vm226, %v4231, 0
      %v4253 = vsel %vm226, %v4232, 0
      %v4256 = vsel %vm226, %v4233, 0
      %v4259 = vsel %vm226, %v4234, 0
      %v4262 = vsel %vm226, %v4235, 0
      %v4265 = vsel %vm226, %v4236, 0
      %v4268 = vsel %vm226, %v4237, 0
      %v4271 = vsel %vm226, %v4238, 0
      %v4274 = vsel %vm226, %v4239, 0
      %v4277 = vsel %vm226, %v4240, 0
      %v4280 = vsel %vm226, %v4241, 0
      %v4283 = vsel %vm226, %v4242, 0
      %v4286 = vsel %vm226, %v4243, 0
      %v4289 = vsel %vm226, %v4244, 0
      %v4292 = vsel %vm226, %v4245, 0
      %v4295 = vsel %vm226, %v4246, 0
      %v4298 = vsel %vm494, %v4248, 0
      %4300 = vmatprep.subr.bf16.mxu0 0
      %4301 = vmatpush1.bf16.msra.mxu0 0
      %4302 = vmatprep.subr.bf16.mxu0 0
      %4303 = vmatpush1.bf16.msra.mxu0 0
      %4304 = vmatprep.subr.bf16.mxu0 0
      %4305 = vmatpush1.bf16.msra.mxu0 0
      %4306 = vmatprep.subr.bf16.mxu0 0
      %4307 = vmatpush1.bf16.msra.mxu0 0
      %4308 = vmatprep.subr.bf16.mxu0 0
      %4309 = vmatpush1.bf16.msra.mxu0 0
      %4310 = vmatprep.subr.bf16.mxu0 0
      %4311 = vmatpush1.bf16.msra.mxu0 0
      %4312 = vmatprep.subr.bf16.mxu0 0
      %4313 = vmatpush1.bf16.msra.mxu0 0
      %4314 = vmatprep.subr.bf16.mxu0 0
      %4315 = vmatpush1.bf16.msra.mxu0 %v4298
      %4316 = vmatprep.subr.bf16.mxu0 0
      %4317 = vmatpush2.bf16.msra.mxu0 0
      %4318 = vmatprep.subr.bf16.mxu0 0
      %4319 = vmatpush2.bf16.msra.mxu0 0
      %4320 = vmatprep.subr.bf16.mxu0 0
      %4321 = vmatpush2.bf16.msra.mxu0 0
      %4322 = vmatprep.subr.bf16.mxu0 0
      %4323 = vmatpush2.bf16.msra.mxu0 0
      %4324 = vmatprep.subr.bf16.mxu0 0
      %4325 = vmatpush2.bf16.msra.mxu0 0
      %4326 = vmatprep.subr.bf16.mxu0 0
      %4327 = vmatpush2.bf16.msra.mxu0 0
      %4328 = vmatprep.subr.bf16.mxu0 0
      %4329 = vmatpush2.bf16.msra.mxu0 0
      %4330 = vmatprep.subr.bf16.mxu0 0
      %4331 = vmatpush2.bf16.msra.mxu0 0
      %4332 = vmatprep.mubr.bf16.mxu0 0
      %4333 = vmatmul.mubr.bf16.gmra.mxu0 %v4250
      %v4334 = vpop.f32.mrf.mxu0
      %v4335 = vadd.f32 0.0, %v4334
      %v4336 = vpop.f32.mrf.mxu0
      %v4337 = vpop.f32.mrf.mxu0
      %v4338 = vadd.f32 0.0, %v4337
      %v4339 = vpop.f32.mrf.mxu0
      %4340 = vmatprep.mubr.bf16.mxu0 0
      %4341 = vmatmul.mubr.bf16.gmra.mxu0 %v4253
      %v4342 = vpop.f32.mrf.mxu0
      %v4343 = vadd.f32 0.0, %v4342
      %v4344 = vpop.f32.mrf.mxu0
      %v4345 = vpop.f32.mrf.mxu0
      %v4346 = vadd.f32 0.0, %v4345
      %v4347 = vpop.f32.mrf.mxu0
      %4348 = vmatprep.mubr.bf16.mxu0 0
      %4349 = vmatmul.mubr.bf16.gmra.mxu0 %v4256
      %v4350 = vpop.f32.mrf.mxu0
      %v4351 = vadd.f32 0.0, %v4350
      %v4352 = vpop.f32.mrf.mxu0
      %v4353 = vpop.f32.mrf.mxu0
      %v4354 = vadd.f32 0.0, %v4353
      %v4355 = vpop.f32.mrf.mxu0
      %4356 = vmatprep.mubr.bf16.mxu0 0
      %4357 = vmatmul.mubr.bf16.gmra.mxu0 %v4259
      %v4358 = vpop.f32.mrf.mxu0
      %v4359 = vadd.f32 0.0, %v4358
      %v4360 = vpop.f32.mrf.mxu0
      %v4361 = vpop.f32.mrf.mxu0
      %v4362 = vadd.f32 0.0, %v4361
      %v4363 = vpop.f32.mrf.mxu0
      %4364 = vmatprep.mubr.bf16.mxu0 0
      %4365 = vmatmul.mubr.bf16.gmra.mxu0 %v4262
      %v4366 = vpop.f32.mrf.mxu0
      %v4367 = vadd.f32 0.0, %v4366
      %v4368 = vpop.f32.mrf.mxu0
      %v4369 = vpop.f32.mrf.mxu0
      %v4370 = vadd.f32 0.0, %v4369
      %v4371 = vpop.f32.mrf.mxu0
      %4372 = vmatprep.mubr.bf16.mxu0 0
      %4373 = vmatmul.mubr.bf16.gmra.mxu0 %v4265
      %v4374 = vpop.f32.mrf.mxu0
      %v4375 = vadd.f32 0.0, %v4374
      %v4376 = vpop.f32.mrf.mxu0
      %v4377 = vpop.f32.mrf.mxu0
      %v4378 = vadd.f32 0.0, %v4377
      %v4379 = vpop.f32.mrf.mxu0
      %4380 = vmatprep.mubr.bf16.mxu0 0
      %4381 = vmatmul.mubr.bf16.gmra.mxu0 %v4268
      %v4382 = vpop.f32.mrf.mxu0
      %v4383 = vadd.f32 0.0, %v4382
      %v4384 = vpop.f32.mrf.mxu0
      %v4385 = vpop.f32.mrf.mxu0
      %v4386 = vadd.f32 0.0, %v4385
      %v4387 = vpop.f32.mrf.mxu0
      %4388 = vmatprep.mubr.bf16.mxu0 0
      %4389 = vmatmul.mubr.bf16.gmra.mxu0 %v4271
      %v4390 = vpop.f32.mrf.mxu0
      %v4391 = vadd.f32 0.0, %v4390
      %v4392 = vpop.f32.mrf.mxu0
      %v4393 = vpop.f32.mrf.mxu0
      %v4394 = vadd.f32 0.0, %v4393
      %v4395 = vpop.f32.mrf.mxu0
      %4396 = vmatprep.mubr.bf16.mxu0 0
      %4397 = vmatmul.mubr.bf16.gmra.mxu0 %v4274
      %v4398 = vpop.f32.mrf.mxu0
      %v4399 = vadd.f32 0.0, %v4398
      %v4400 = vpop.f32.mrf.mxu0
      %v4401 = vpop.f32.mrf.mxu0
      %v4402 = vadd.f32 0.0, %v4401
      %v4403 = vpop.f32.mrf.mxu0
      %4404 = vmatprep.mubr.bf16.mxu0 0
      %4405 = vmatmul.mubr.bf16.gmra.mxu0 %v4277
      %v4406 = vpop.f32.mrf.mxu0
      %v4407 = vadd.f32 0.0, %v4406
      %v4408 = vpop.f32.mrf.mxu0
      %v4409 = vpop.f32.mrf.mxu0
      %v4410 = vadd.f32 0.0, %v4409
      %v4411 = vpop.f32.mrf.mxu0
      %4412 = vmatprep.mubr.bf16.mxu0 0
      %4413 = vmatmul.mubr.bf16.gmra.mxu0 %v4280
      %v4414 = vpop.f32.mrf.mxu0
      %v4415 = vadd.f32 0.0, %v4414
      %v4416 = vpop.f32.mrf.mxu0
      %v4417 = vpop.f32.mrf.mxu0
      %v4418 = vadd.f32 0.0, %v4417
      %v4419 = vpop.f32.mrf.mxu0
      %4420 = vmatprep.mubr.bf16.mxu0 0
      %4421 = vmatmul.mubr.bf16.gmra.mxu0 %v4283
      %v4422 = vpop.f32.mrf.mxu0
      %v4423 = vadd.f32 0.0, %v4422
      %v4424 = vpop.f32.mrf.mxu0
      %v4425 = vpop.f32.mrf.mxu0
      %v4426 = vadd.f32 0.0, %v4425
      %v4427 = vpop.f32.mrf.mxu0
      %4428 = vmatprep.mubr.bf16.mxu0 0
      %4429 = vmatmul.mubr.bf16.gmra.mxu0 %v4286
      %v4430 = vpop.f32.mrf.mxu0
      %v4431 = vadd.f32 0.0, %v4430
      %v4432 = vpop.f32.mrf.mxu0
      %v4433 = vpop.f32.mrf.mxu0
      %v4434 = vadd.f32 0.0, %v4433
      %v4435 = vpop.f32.mrf.mxu0
      %4436 = vmatprep.mubr.bf16.mxu0 0
      %4437 = vmatmul.mubr.bf16.gmra.mxu0 %v4289
      %v4438 = vpop.f32.mrf.mxu0
      %v4439 = vadd.f32 0.0, %v4438
      %v4440 = vpop.f32.mrf.mxu0
      %v4441 = vpop.f32.mrf.mxu0
      %v4442 = vadd.f32 0.0, %v4441
      %v4443 = vpop.f32.mrf.mxu0
      %4444 = vmatprep.mubr.bf16.mxu0 0
      %4445 = vmatmul.mubr.bf16.gmra.mxu0 %v4292
      %v4446 = vpop.f32.mrf.mxu0
      %v4447 = vadd.f32 0.0, %v4446
      %v4448 = vpop.f32.mrf.mxu0
      %v4449 = vpop.f32.mrf.mxu0
      %v4450 = vadd.f32 0.0, %v4449
      %v4451 = vpop.f32.mrf.mxu0
      %4452 = vmatprep.mubr.bf16.mxu0 0
      %4453 = vmatmul.mubr.bf16.gmra.mxu0 %v4295
      %v4454 = vpop.f32.mrf.mxu0
      %v4455 = vadd.f32 0.0, %v4454
      %v4456 = vpop.f32.mrf.mxu0
      %v4457 = vpop.f32.mrf.mxu0
      %v4458 = vadd.f32 0.0, %v4457
      %v4459 = vpop.f32.mrf.mxu0
      %4460 = vdwg.mxu0
      %v4461 = vadd.f32 %v4167, %v4335
      %v4462 = vadd.f32 %v4168, %v4338
      %v4463 = vadd.f32 %v4169, %v4343
      %v4464 = vadd.f32 %v4170, %v4346
      %v4465 = vadd.f32 %v4171, %v4351
      %v4466 = vadd.f32 %v4172, %v4354
      %v4467 = vadd.f32 %v4173, %v4359
      %v4468 = vadd.f32 %v4174, %v4362
      %v4469 = vadd.f32 %v4175, %v4367
      %v4470 = vadd.f32 %v4176, %v4370
      %v4471 = vadd.f32 %v4177, %v4375
      %v4472 = vadd.f32 %v4178, %v4378
      %v4473 = vadd.f32 %v4179, %v4383
      %v4474 = vadd.f32 %v4180, %v4386
      %v4475 = vadd.f32 %v4181, %v4391
      %v4476 = vadd.f32 %v4182, %v4394
      %v4477 = vadd.f32 %v4183, %v4399
      %v4478 = vadd.f32 %v4184, %v4402
      %v4479 = vadd.f32 %v4185, %v4407
      %v4480 = vadd.f32 %v4186, %v4410
      %v4481 = vadd.f32 %v4187, %v4415
      %v4482 = vadd.f32 %v4188, %v4418
      %v4483 = vadd.f32 %v4189, %v4423
      %v4484 = vadd.f32 %v4190, %v4426
      %v4485 = vadd.f32 %v4191, %v4431
      %v4486 = vadd.f32 %v4192, %v4434
      %v4487 = vadd.f32 %v4193, %v4439
      %v4488 = vadd.f32 %v4194, %v4442
      %v4489 = vadd.f32 %v4195, %v4447
      %v4490 = vadd.f32 %v4196, %v4450
      %v4491 = vadd.f32 %v4197, %v4455
      %v4492 = vadd.f32 %v4198, %v4458
      %v4493 = vld [vmem:[%s3055 + $0x2] sm:$0xff]
      %v4494 = vld [vmem:[%s3055 + $0xa] sm:$0xff]
      %v4495 = vld [vmem:[%s3055 + $0x1a] sm:$0xff]
      %v4496 = vld [vmem:[%s3055 + $0x22] sm:$0xff]
      %v4497 = vld [vmem:[%s3055 + $0x32] sm:$0xff]
      %v4498 = vld [vmem:[%s3055 + $0x3a] sm:$0xff]
      %v4499 = vld [vmem:[%s3055 + $0x4a] sm:$0xff]
      %v4500 = vld [vmem:[%s3055 + $0x52] sm:$0xff]
      %v4501 = vld [vmem:[%s3055 + $0x62] sm:$0xff]
      %v4502 = vld [vmem:[%s3055 + $0x6a] sm:$0xff]
      %v4503 = vld [vmem:[%s3055 + $0x7a] sm:$0xff]
      %v4504 = vld [vmem:[%s3055 + $0x82] sm:$0xff]
      %v4505 = vld [vmem:[%s3055 + $0x92] sm:$0xff]
      %v4506 = vld [vmem:[%s3055 + $0x9a] sm:$0xff]
      %v4507 = vld [vmem:[%s3055 + $0xaa] sm:$0xff]
      %v4508 = vld [vmem:[%s3055 + $0xb2] sm:$0xff]
      %v4509 = vld [vmem:[%s3055 + $0xc2] sm:$0xff]
      %v4510 = vld [vmem:[%s3055 + $0xca] sm:$0xff]
      %v4511 = vld [vmem:[%s3055 + $0xda] sm:$0xff]
      %v4512 = vld [vmem:[%s3055 + $0xe2] sm:$0xff]
      %v4513 = vld [vmem:[%s3055 + $0xf2] sm:$0xff]
      %v4514 = vld [vmem:[%s3055 + $0xfa] sm:$0xff]
      %v4515 = vld [vmem:[%s3055 + $0x10a] sm:$0xff]
      %v4516 = vld [vmem:[%s3055 + $0x112] sm:$0xff]
      %v4517 = vld [vmem:[%s3055 + $0x122] sm:$0xff]
      %v4518 = vld [vmem:[%s3055 + $0x12a] sm:$0xff]
      %v4519 = vld [vmem:[%s3055 + $0x13a] sm:$0xff]
      %v4520 = vld [vmem:[%s3055 + $0x142] sm:$0xff]
      %v4521 = vld [vmem:[%s3055 + $0x152] sm:$0xff]
      %v4522 = vld [vmem:[%s3055 + $0x15a] sm:$0xff]
      %v4523 = vld [vmem:[%s3055 + $0x16a] sm:$0xff]
      %v4524 = vld [vmem:[%s3055 + $0x172] sm:$0xff]
      %v4525 = vpack.c.bf16 %v4494, %v4493
      %v4526 = vpack.c.bf16 %v4496, %v4495
      %v4527 = vpack.c.bf16 %v4498, %v4497
      %v4528 = vpack.c.bf16 %v4500, %v4499
      %v4529 = vpack.c.bf16 %v4502, %v4501
      %v4530 = vpack.c.bf16 %v4504, %v4503
      %v4531 = vpack.c.bf16 %v4506, %v4505
      %v4532 = vpack.c.bf16 %v4508, %v4507
      %v4533 = vpack.c.bf16 %v4510, %v4509
      %v4534 = vpack.c.bf16 %v4512, %v4511
      %v4535 = vpack.c.bf16 %v4514, %v4513
      %v4536 = vpack.c.bf16 %v4516, %v4515
      %v4537 = vpack.c.bf16 %v4518, %v4517
      %v4538 = vpack.c.bf16 %v4520, %v4519
      %v4539 = vpack.c.bf16 %v4522, %v4521
      %v4540 = vpack.c.bf16 %v4524, %v4523
      %s4541 = scalar_lea.vmem %s2, 10
      %v4542 = vld [vmem:[%s4541] sm:$0x3]
      %v4544 = vsel %vm226, %v4525, 0
      %v4547 = vsel %vm226, %v4526, 0
      %v4550 = vsel %vm226, %v4527, 0
      %v4553 = vsel %vm226, %v4528, 0
      %v4556 = vsel %vm226, %v4529, 0
      %v4559 = vsel %vm226, %v4530, 0
      %v4562 = vsel %vm226, %v4531, 0
      %v4565 = vsel %vm226, %v4532, 0
      %v4568 = vsel %vm226, %v4533, 0
      %v4571 = vsel %vm226, %v4534, 0
      %v4574 = vsel %vm226, %v4535, 0
      %v4577 = vsel %vm226, %v4536, 0
      %v4580 = vsel %vm226, %v4537, 0
      %v4583 = vsel %vm226, %v4538, 0
      %v4586 = vsel %vm226, %v4539, 0
      %v4589 = vsel %vm226, %v4540, 0
      %v4592 = vsel %vm494, %v4542, 0
      %4594 = vmatprep.subr.bf16.mxu0 0
      %4595 = vmatpush1.bf16.msra.mxu0 0
      %4596 = vmatprep.subr.bf16.mxu0 0
      %4597 = vmatpush1.bf16.msra.mxu0 0
      %4598 = vmatprep.subr.bf16.mxu0 0
      %4599 = vmatpush1.bf16.msra.mxu0 0
      %4600 = vmatprep.subr.bf16.mxu0 0
      %4601 = vmatpush1.bf16.msra.mxu0 0
      %4602 = vmatprep.subr.bf16.mxu0 0
      %4603 = vmatpush1.bf16.msra.mxu0 0
      %4604 = vmatprep.subr.bf16.mxu0 0
      %4605 = vmatpush1.bf16.msra.mxu0 0
      %4606 = vmatprep.subr.bf16.mxu0 0
      %4607 = vmatpush1.bf16.msra.mxu0 0
      %4608 = vmatprep.subr.bf16.mxu0 0
      %4609 = vmatpush1.bf16.msra.mxu0 %v4592
      %4610 = vmatprep.subr.bf16.mxu0 0
      %4611 = vmatpush2.bf16.msra.mxu0 0
      %4612 = vmatprep.subr.bf16.mxu0 0
      %4613 = vmatpush2.bf16.msra.mxu0 0
      %4614 = vmatprep.subr.bf16.mxu0 0
      %4615 = vmatpush2.bf16.msra.mxu0 0
      %4616 = vmatprep.subr.bf16.mxu0 0
      %4617 = vmatpush2.bf16.msra.mxu0 0
      %4618 = vmatprep.subr.bf16.mxu0 0
      %4619 = vmatpush2.bf16.msra.mxu0 0
      %4620 = vmatprep.subr.bf16.mxu0 0
      %4621 = vmatpush2.bf16.msra.mxu0 0
      %4622 = vmatprep.subr.bf16.mxu0 0
      %4623 = vmatpush2.bf16.msra.mxu0 0
      %4624 = vmatprep.subr.bf16.mxu0 0
      %4625 = vmatpush2.bf16.msra.mxu0 0
      %4626 = vmatprep.mubr.bf16.mxu0 0
      %4627 = vmatmul.mubr.bf16.gmra.mxu0 %v4544
      %v4628 = vpop.f32.mrf.mxu0
      %v4629 = vadd.f32 0.0, %v4628
      %v4630 = vpop.f32.mrf.mxu0
      %v4631 = vpop.f32.mrf.mxu0
      %v4632 = vadd.f32 0.0, %v4631
      %v4633 = vpop.f32.mrf.mxu0
      %4634 = vmatprep.mubr.bf16.mxu0 0
      %4635 = vmatmul.mubr.bf16.gmra.mxu0 %v4547
      %v4636 = vpop.f32.mrf.mxu0
      %v4637 = vadd.f32 0.0, %v4636
      %v4638 = vpop.f32.mrf.mxu0
      %v4639 = vpop.f32.mrf.mxu0
      %v4640 = vadd.f32 0.0, %v4639
      %v4641 = vpop.f32.mrf.mxu0
      %4642 = vmatprep.mubr.bf16.mxu0 0
      %4643 = vmatmul.mubr.bf16.gmra.mxu0 %v4550
      %v4644 = vpop.f32.mrf.mxu0
      %v4645 = vadd.f32 0.0, %v4644
      %v4646 = vpop.f32.mrf.mxu0
      %v4647 = vpop.f32.mrf.mxu0
      %v4648 = vadd.f32 0.0, %v4647
      %v4649 = vpop.f32.mrf.mxu0
      %4650 = vmatprep.mubr.bf16.mxu0 0
      %4651 = vmatmul.mubr.bf16.gmra.mxu0 %v4553
      %v4652 = vpop.f32.mrf.mxu0
      %v4653 = vadd.f32 0.0, %v4652
      %v4654 = vpop.f32.mrf.mxu0
      %v4655 = vpop.f32.mrf.mxu0
      %v4656 = vadd.f32 0.0, %v4655
      %v4657 = vpop.f32.mrf.mxu0
      %4658 = vmatprep.mubr.bf16.mxu0 0
      %4659 = vmatmul.mubr.bf16.gmra.mxu0 %v4556
      %v4660 = vpop.f32.mrf.mxu0
      %v4661 = vadd.f32 0.0, %v4660
      %v4662 = vpop.f32.mrf.mxu0
      %v4663 = vpop.f32.mrf.mxu0
      %v4664 = vadd.f32 0.0, %v4663
      %v4665 = vpop.f32.mrf.mxu0
      %4666 = vmatprep.mubr.bf16.mxu0 0
      %4667 = vmatmul.mubr.bf16.gmra.mxu0 %v4559
      %v4668 = vpop.f32.mrf.mxu0
      %v4669 = vadd.f32 0.0, %v4668
      %v4670 = vpop.f32.mrf.mxu0
      %v4671 = vpop.f32.mrf.mxu0
      %v4672 = vadd.f32 0.0, %v4671
      %v4673 = vpop.f32.mrf.mxu0
      %4674 = vmatprep.mubr.bf16.mxu0 0
      %4675 = vmatmul.mubr.bf16.gmra.mxu0 %v4562
      %v4676 = vpop.f32.mrf.mxu0
      %v4677 = vadd.f32 0.0, %v4676
      %v4678 = vpop.f32.mrf.mxu0
      %v4679 = vpop.f32.mrf.mxu0
      %v4680 = vadd.f32 0.0, %v4679
      %v4681 = vpop.f32.mrf.mxu0
      %4682 = vmatprep.mubr.bf16.mxu0 0
      %4683 = vmatmul.mubr.bf16.gmra.mxu0 %v4565
      %v4684 = vpop.f32.mrf.mxu0
      %v4685 = vadd.f32 0.0, %v4684
      %v4686 = vpop.f32.mrf.mxu0
      %v4687 = vpop.f32.mrf.mxu0
      %v4688 = vadd.f32 0.0, %v4687
      %v4689 = vpop.f32.mrf.mxu0
      %4690 = vmatprep.mubr.bf16.mxu0 0
      %4691 = vmatmul.mubr.bf16.gmra.mxu0 %v4568
      %v4692 = vpop.f32.mrf.mxu0
      %v4693 = vadd.f32 0.0, %v4692
      %v4694 = vpop.f32.mrf.mxu0
      %v4695 = vpop.f32.mrf.mxu0
      %v4696 = vadd.f32 0.0, %v4695
      %v4697 = vpop.f32.mrf.mxu0
      %4698 = vmatprep.mubr.bf16.mxu0 0
      %4699 = vmatmul.mubr.bf16.gmra.mxu0 %v4571
      %v4700 = vpop.f32.mrf.mxu0
      %v4701 = vadd.f32 0.0, %v4700
      %v4702 = vpop.f32.mrf.mxu0
      %v4703 = vpop.f32.mrf.mxu0
      %v4704 = vadd.f32 0.0, %v4703
      %v4705 = vpop.f32.mrf.mxu0
      %4706 = vmatprep.mubr.bf16.mxu0 0
      %4707 = vmatmul.mubr.bf16.gmra.mxu0 %v4574
      %v4708 = vpop.f32.mrf.mxu0
      %v4709 = vadd.f32 0.0, %v4708
      %v4710 = vpop.f32.mrf.mxu0
      %v4711 = vpop.f32.mrf.mxu0
      %v4712 = vadd.f32 0.0, %v4711
      %v4713 = vpop.f32.mrf.mxu0
      %4714 = vmatprep.mubr.bf16.mxu0 0
      %4715 = vmatmul.mubr.bf16.gmra.mxu0 %v4577
      %v4716 = vpop.f32.mrf.mxu0
      %v4717 = vadd.f32 0.0, %v4716
      %v4718 = vpop.f32.mrf.mxu0
      %v4719 = vpop.f32.mrf.mxu0
      %v4720 = vadd.f32 0.0, %v4719
      %v4721 = vpop.f32.mrf.mxu0
      %4722 = vmatprep.mubr.bf16.mxu0 0
      %4723 = vmatmul.mubr.bf16.gmra.mxu0 %v4580
      %v4724 = vpop.f32.mrf.mxu0
      %v4725 = vadd.f32 0.0, %v4724
      %v4726 = vpop.f32.mrf.mxu0
      %v4727 = vpop.f32.mrf.mxu0
      %v4728 = vadd.f32 0.0, %v4727
      %v4729 = vpop.f32.mrf.mxu0
      %4730 = vmatprep.mubr.bf16.mxu0 0
      %4731 = vmatmul.mubr.bf16.gmra.mxu0 %v4583
      %v4732 = vpop.f32.mrf.mxu0
      %v4733 = vadd.f32 0.0, %v4732
      %v4734 = vpop.f32.mrf.mxu0
      %v4735 = vpop.f32.mrf.mxu0
      %v4736 = vadd.f32 0.0, %v4735
      %v4737 = vpop.f32.mrf.mxu0
      %4738 = vmatprep.mubr.bf16.mxu0 0
      %4739 = vmatmul.mubr.bf16.gmra.mxu0 %v4586
      %v4740 = vpop.f32.mrf.mxu0
      %v4741 = vadd.f32 0.0, %v4740
      %v4742 = vpop.f32.mrf.mxu0
      %v4743 = vpop.f32.mrf.mxu0
      %v4744 = vadd.f32 0.0, %v4743
      %v4745 = vpop.f32.mrf.mxu0
      %4746 = vmatprep.mubr.bf16.mxu0 0
      %4747 = vmatmul.mubr.bf16.gmra.mxu0 %v4589
      %v4748 = vpop.f32.mrf.mxu0
      %v4749 = vadd.f32 0.0, %v4748
      %v4750 = vpop.f32.mrf.mxu0
      %v4751 = vpop.f32.mrf.mxu0
      %v4752 = vadd.f32 0.0, %v4751
      %v4753 = vpop.f32.mrf.mxu0
      %4754 = vdwg.mxu0
      %v4755 = vadd.f32 %v4461, %v4629
      %v4756 = vadd.f32 %v4462, %v4632
      %v4757 = vadd.f32 %v4463, %v4637
      %v4758 = vadd.f32 %v4464, %v4640
      %v4759 = vadd.f32 %v4465, %v4645
      %v4760 = vadd.f32 %v4466, %v4648
      %v4761 = vadd.f32 %v4467, %v4653
      %v4762 = vadd.f32 %v4468, %v4656
      %v4763 = vadd.f32 %v4469, %v4661
      %v4764 = vadd.f32 %v4470, %v4664
      %v4765 = vadd.f32 %v4471, %v4669
      %v4766 = vadd.f32 %v4472, %v4672
      %v4767 = vadd.f32 %v4473, %v4677
      %v4768 = vadd.f32 %v4474, %v4680
      %v4769 = vadd.f32 %v4475, %v4685
      %v4770 = vadd.f32 %v4476, %v4688
      %v4771 = vadd.f32 %v4477, %v4693
      %v4772 = vadd.f32 %v4478, %v4696
      %v4773 = vadd.f32 %v4479, %v4701
      %v4774 = vadd.f32 %v4480, %v4704
      %v4775 = vadd.f32 %v4481, %v4709
      %v4776 = vadd.f32 %v4482, %v4712
      %v4777 = vadd.f32 %v4483, %v4717
      %v4778 = vadd.f32 %v4484, %v4720
      %v4779 = vadd.f32 %v4485, %v4725
      %v4780 = vadd.f32 %v4486, %v4728
      %v4781 = vadd.f32 %v4487, %v4733
      %v4782 = vadd.f32 %v4488, %v4736
      %v4783 = vadd.f32 %v4489, %v4741
      %v4784 = vadd.f32 %v4490, %v4744
      %v4785 = vadd.f32 %v4491, %v4749
      %v4786 = vadd.f32 %v4492, %v4752
      %s4787 = scalar_lea.vmem [#allocation3], 48
      %v4788 = vld [vmem:[%s4787] sm:$0xff]
      %v4789 = vld [vmem:[%s4787 + $0x8] sm:$0xff]
      %v4790 = vld [vmem:[%s4787 + $0x18] sm:$0xff]
      %v4791 = vld [vmem:[%s4787 + $0x20] sm:$0xff]
      %v4792 = vld [vmem:[%s4787 + $0x30] sm:$0xff]
      %v4793 = vld [vmem:[%s4787 + $0x38] sm:$0xff]
      %v4794 = vld [vmem:[%s4787 + $0x48] sm:$0xff]
      %v4795 = vld [vmem:[%s4787 + $0x50] sm:$0xff]
      %v4796 = vld [vmem:[%s4787 + $0x60] sm:$0xff]
      %v4797 = vld [vmem:[%s4787 + $0x68] sm:$0xff]
      %v4798 = vld [vmem:[%s4787 + $0x78] sm:$0xff]
      %v4799 = vld [vmem:[%s4787 + $0x80] sm:$0xff]
      %v4800 = vld [vmem:[%s4787 + $0x90] sm:$0xff]
      %v4801 = vld [vmem:[%s4787 + $0x98] sm:$0xff]
      %v4802 = vld [vmem:[%s4787 + $0xa8] sm:$0xff]
      %v4803 = vld [vmem:[%s4787 + $0xb0] sm:$0xff]
      %v4804 = vld [vmem:[%s4787 + $0xc0] sm:$0xff]
      %v4805 = vld [vmem:[%s4787 + $0xc8] sm:$0xff]
      %v4806 = vld [vmem:[%s4787 + $0xd8] sm:$0xff]
      %v4807 = vld [vmem:[%s4787 + $0xe0] sm:$0xff]
      %v4808 = vld [vmem:[%s4787 + $0xf0] sm:$0xff]
      %v4809 = vld [vmem:[%s4787 + $0xf8] sm:$0xff]
      %v4810 = vld [vmem:[%s4787 + $0x108] sm:$0xff]
      %v4811 = vld [vmem:[%s4787 + $0x110] sm:$0xff]
      %v4812 = vld [vmem:[%s4787 + $0x120] sm:$0xff]
      %v4813 = vld [vmem:[%s4787 + $0x128] sm:$0xff]
      %v4814 = vld [vmem:[%s4787 + $0x138] sm:$0xff]
      %v4815 = vld [vmem:[%s4787 + $0x140] sm:$0xff]
      %v4816 = vld [vmem:[%s4787 + $0x150] sm:$0xff]
      %v4817 = vld [vmem:[%s4787 + $0x158] sm:$0xff]
      %v4818 = vld [vmem:[%s4787 + $0x168] sm:$0xff]
      %v4819 = vld [vmem:[%s4787 + $0x170] sm:$0xff]
      %v4820 = vpack.c.bf16 %v4789, %v4788
      %v4821 = vpack.c.bf16 %v4791, %v4790
      %v4822 = vpack.c.bf16 %v4793, %v4792
      %v4823 = vpack.c.bf16 %v4795, %v4794
      %v4824 = vpack.c.bf16 %v4797, %v4796
      %v4825 = vpack.c.bf16 %v4799, %v4798
      %v4826 = vpack.c.bf16 %v4801, %v4800
      %v4827 = vpack.c.bf16 %v4803, %v4802
      %v4828 = vpack.c.bf16 %v4805, %v4804
      %v4829 = vpack.c.bf16 %v4807, %v4806
      %v4830 = vpack.c.bf16 %v4809, %v4808
      %v4831 = vpack.c.bf16 %v4811, %v4810
      %v4832 = vpack.c.bf16 %v4813, %v4812
      %v4833 = vpack.c.bf16 %v4815, %v4814
      %v4834 = vpack.c.bf16 %v4817, %v4816
      %v4835 = vpack.c.bf16 %v4819, %v4818
      %s4836 = scalar_lea.vmem %s2, 12
      %v4837 = vld [vmem:[%s4836] sm:$0x3]
      %v4839 = vsel %vm226, %v4820, 0
      %v4842 = vsel %vm226, %v4821, 0
      %v4845 = vsel %vm226, %v4822, 0
      %v4848 = vsel %vm226, %v4823, 0
      %v4851 = vsel %vm226, %v4824, 0
      %v4854 = vsel %vm226, %v4825, 0
      %v4857 = vsel %vm226, %v4826, 0
      %v4860 = vsel %vm226, %v4827, 0
      %v4863 = vsel %vm226, %v4828, 0
      %v4866 = vsel %vm226, %v4829, 0
      %v4869 = vsel %vm226, %v4830, 0
      %v4872 = vsel %vm226, %v4831, 0
      %v4875 = vsel %vm226, %v4832, 0
      %v4878 = vsel %vm226, %v4833, 0
      %v4881 = vsel %vm226, %v4834, 0
      %v4884 = vsel %vm226, %v4835, 0
      %v4887 = vsel %vm494, %v4837, 0
      %4889 = vmatprep.subr.bf16.mxu0 0
      %4890 = vmatpush1.bf16.msra.mxu0 0
      %4891 = vmatprep.subr.bf16.mxu0 0
      %4892 = vmatpush1.bf16.msra.mxu0 0
      %4893 = vmatprep.subr.bf16.mxu0 0
      %4894 = vmatpush1.bf16.msra.mxu0 0
      %4895 = vmatprep.subr.bf16.mxu0 0
      %4896 = vmatpush1.bf16.msra.mxu0 0
      %4897 = vmatprep.subr.bf16.mxu0 0
      %4898 = vmatpush1.bf16.msra.mxu0 0
      %4899 = vmatprep.subr.bf16.mxu0 0
      %4900 = vmatpush1.bf16.msra.mxu0 0
      %4901 = vmatprep.subr.bf16.mxu0 0
      %4902 = vmatpush1.bf16.msra.mxu0 0
      %4903 = vmatprep.subr.bf16.mxu0 0
      %4904 = vmatpush1.bf16.msra.mxu0 %v4887
      %4905 = vmatprep.subr.bf16.mxu0 0
      %4906 = vmatpush2.bf16.msra.mxu0 0
      %4907 = vmatprep.subr.bf16.mxu0 0
      %4908 = vmatpush2.bf16.msra.mxu0 0
      %4909 = vmatprep.subr.bf16.mxu0 0
      %4910 = vmatpush2.bf16.msra.mxu0 0
      %4911 = vmatprep.subr.bf16.mxu0 0
      %4912 = vmatpush2.bf16.msra.mxu0 0
      %4913 = vmatprep.subr.bf16.mxu0 0
      %4914 = vmatpush2.bf16.msra.mxu0 0
      %4915 = vmatprep.subr.bf16.mxu0 0
      %4916 = vmatpush2.bf16.msra.mxu0 0
      %4917 = vmatprep.subr.bf16.mxu0 0
      %4918 = vmatpush2.bf16.msra.mxu0 0
      %4919 = vmatprep.subr.bf16.mxu0 0
      %4920 = vmatpush2.bf16.msra.mxu0 0
      %4921 = vmatprep.mubr.bf16.mxu0 0
      %4922 = vmatmul.mubr.bf16.gmra.mxu0 %v4839
      %v4923 = vpop.f32.mrf.mxu0
      %v4924 = vadd.f32 0.0, %v4923
      %v4925 = vpop.f32.mrf.mxu0
      %v4926 = vpop.f32.mrf.mxu0
      %v4927 = vadd.f32 0.0, %v4926
      %v4928 = vpop.f32.mrf.mxu0
      %4929 = vmatprep.mubr.bf16.mxu0 0
      %4930 = vmatmul.mubr.bf16.gmra.mxu0 %v4842
      %v4931 = vpop.f32.mrf.mxu0
      %v4932 = vadd.f32 0.0, %v4931
      %v4933 = vpop.f32.mrf.mxu0
      %v4934 = vpop.f32.mrf.mxu0
      %v4935 = vadd.f32 0.0, %v4934
      %v4936 = vpop.f32.mrf.mxu0
      %4937 = vmatprep.mubr.bf16.mxu0 0
      %4938 = vmatmul.mubr.bf16.gmra.mxu0 %v4845
      %v4939 = vpop.f32.mrf.mxu0
      %v4940 = vadd.f32 0.0, %v4939
      %v4941 = vpop.f32.mrf.mxu0
      %v4942 = vpop.f32.mrf.mxu0
      %v4943 = vadd.f32 0.0, %v4942
      %v4944 = vpop.f32.mrf.mxu0
      %4945 = vmatprep.mubr.bf16.mxu0 0
      %4946 = vmatmul.mubr.bf16.gmra.mxu0 %v4848
      %v4947 = vpop.f32.mrf.mxu0
      %v4948 = vadd.f32 0.0, %v4947
      %v4949 = vpop.f32.mrf.mxu0
      %v4950 = vpop.f32.mrf.mxu0
      %v4951 = vadd.f32 0.0, %v4950
      %v4952 = vpop.f32.mrf.mxu0
      %4953 = vmatprep.mubr.bf16.mxu0 0
      %4954 = vmatmul.mubr.bf16.gmra.mxu0 %v4851
      %v4955 = vpop.f32.mrf.mxu0
      %v4956 = vadd.f32 0.0, %v4955
      %v4957 = vpop.f32.mrf.mxu0
      %v4958 = vpop.f32.mrf.mxu0
      %v4959 = vadd.f32 0.0, %v4958
      %v4960 = vpop.f32.mrf.mxu0
      %4961 = vmatprep.mubr.bf16.mxu0 0
      %4962 = vmatmul.mubr.bf16.gmra.mxu0 %v4854
      %v4963 = vpop.f32.mrf.mxu0
      %v4964 = vadd.f32 0.0, %v4963
      %v4965 = vpop.f32.mrf.mxu0
      %v4966 = vpop.f32.mrf.mxu0
      %v4967 = vadd.f32 0.0, %v4966
      %v4968 = vpop.f32.mrf.mxu0
      %4969 = vmatprep.mubr.bf16.mxu0 0
      %4970 = vmatmul.mubr.bf16.gmra.mxu0 %v4857
      %v4971 = vpop.f32.mrf.mxu0
      %v4972 = vadd.f32 0.0, %v4971
      %v4973 = vpop.f32.mrf.mxu0
      %v4974 = vpop.f32.mrf.mxu0
      %v4975 = vadd.f32 0.0, %v4974
      %v4976 = vpop.f32.mrf.mxu0
      %4977 = vmatprep.mubr.bf16.mxu0 0
      %4978 = vmatmul.mubr.bf16.gmra.mxu0 %v4860
      %v4979 = vpop.f32.mrf.mxu0
      %v4980 = vadd.f32 0.0, %v4979
      %v4981 = vpop.f32.mrf.mxu0
      %v4982 = vpop.f32.mrf.mxu0
      %v4983 = vadd.f32 0.0, %v4982
      %v4984 = vpop.f32.mrf.mxu0
      %4985 = vmatprep.mubr.bf16.mxu0 0
      %4986 = vmatmul.mubr.bf16.gmra.mxu0 %v4863
      %v4987 = vpop.f32.mrf.mxu0
      %v4988 = vadd.f32 0.0, %v4987
      %v4989 = vpop.f32.mrf.mxu0
      %v4990 = vpop.f32.mrf.mxu0
      %v4991 = vadd.f32 0.0, %v4990
      %v4992 = vpop.f32.mrf.mxu0
      %4993 = vmatprep.mubr.bf16.mxu0 0
      %4994 = vmatmul.mubr.bf16.gmra.mxu0 %v4866
      %v4995 = vpop.f32.mrf.mxu0
      %v4996 = vadd.f32 0.0, %v4995
      %v4997 = vpop.f32.mrf.mxu0
      %v4998 = vpop.f32.mrf.mxu0
      %v4999 = vadd.f32 0.0, %v4998
      %v5000 = vpop.f32.mrf.mxu0
      %5001 = vmatprep.mubr.bf16.mxu0 0
      %5002 = vmatmul.mubr.bf16.gmra.mxu0 %v4869
      %v5003 = vpop.f32.mrf.mxu0
      %v5004 = vadd.f32 0.0, %v5003
      %v5005 = vpop.f32.mrf.mxu0
      %v5006 = vpop.f32.mrf.mxu0
      %v5007 = vadd.f32 0.0, %v5006
      %v5008 = vpop.f32.mrf.mxu0
      %5009 = vmatprep.mubr.bf16.mxu0 0
      %5010 = vmatmul.mubr.bf16.gmra.mxu0 %v4872
      %v5011 = vpop.f32.mrf.mxu0
      %v5012 = vadd.f32 0.0, %v5011
      %v5013 = vpop.f32.mrf.mxu0
      %v5014 = vpop.f32.mrf.mxu0
      %v5015 = vadd.f32 0.0, %v5014
      %v5016 = vpop.f32.mrf.mxu0
      %5017 = vmatprep.mubr.bf16.mxu0 0
      %5018 = vmatmul.mubr.bf16.gmra.mxu0 %v4875
      %v5019 = vpop.f32.mrf.mxu0
      %v5020 = vadd.f32 0.0, %v5019
      %v5021 = vpop.f32.mrf.mxu0
      %v5022 = vpop.f32.mrf.mxu0
      %v5023 = vadd.f32 0.0, %v5022
      %v5024 = vpop.f32.mrf.mxu0
      %5025 = vmatprep.mubr.bf16.mxu0 0
      %5026 = vmatmul.mubr.bf16.gmra.mxu0 %v4878
      %v5027 = vpop.f32.mrf.mxu0
      %v5028 = vadd.f32 0.0, %v5027
      %v5029 = vpop.f32.mrf.mxu0
      %v5030 = vpop.f32.mrf.mxu0
      %v5031 = vadd.f32 0.0, %v5030
      %v5032 = vpop.f32.mrf.mxu0
      %5033 = vmatprep.mubr.bf16.mxu0 0
      %5034 = vmatmul.mubr.bf16.gmra.mxu0 %v4881
      %v5035 = vpop.f32.mrf.mxu0
      %v5036 = vadd.f32 0.0, %v5035
      %v5037 = vpop.f32.mrf.mxu0
      %v5038 = vpop.f32.mrf.mxu0
      %v5039 = vadd.f32 0.0, %v5038
      %v5040 = vpop.f32.mrf.mxu0
      %5041 = vmatprep.mubr.bf16.mxu0 0
      %5042 = vmatmul.mubr.bf16.gmra.mxu0 %v4884
      %v5043 = vpop.f32.mrf.mxu0
      %v5044 = vadd.f32 0.0, %v5043
      %v5045 = vpop.f32.mrf.mxu0
      %v5046 = vpop.f32.mrf.mxu0
      %v5047 = vadd.f32 0.0, %v5046
      %v5048 = vpop.f32.mrf.mxu0
      %5049 = vdwg.mxu0
      %v5050 = vadd.f32 %v4755, %v4924
      %v5051 = vadd.f32 %v4756, %v4927
      %v5052 = vadd.f32 %v4757, %v4932
      %v5053 = vadd.f32 %v4758, %v4935
      %v5054 = vadd.f32 %v4759, %v4940
      %v5055 = vadd.f32 %v4760, %v4943
      %v5056 = vadd.f32 %v4761, %v4948
      %v5057 = vadd.f32 %v4762, %v4951
      %v5058 = vadd.f32 %v4763, %v4956
      %v5059 = vadd.f32 %v4764, %v4959
      %v5060 = vadd.f32 %v4765, %v4964
      %v5061 = vadd.f32 %v4766, %v4967
      %v5062 = vadd.f32 %v4767, %v4972
      %v5063 = vadd.f32 %v4768, %v4975
      %v5064 = vadd.f32 %v4769, %v4980
      %v5065 = vadd.f32 %v4770, %v4983
      %v5066 = vadd.f32 %v4771, %v4988
      %v5067 = vadd.f32 %v4772, %v4991
      %v5068 = vadd.f32 %v4773, %v4996
      %v5069 = vadd.f32 %v4774, %v4999
      %v5070 = vadd.f32 %v4775, %v5004
      %v5071 = vadd.f32 %v4776, %v5007
      %v5072 = vadd.f32 %v4777, %v5012
      %v5073 = vadd.f32 %v4778, %v5015
      %v5074 = vadd.f32 %v4779, %v5020
      %v5075 = vadd.f32 %v4780, %v5023
      %v5076 = vadd.f32 %v4781, %v5028
      %v5077 = vadd.f32 %v4782, %v5031
      %v5078 = vadd.f32 %v4783, %v5036
      %v5079 = vadd.f32 %v4784, %v5039
      %v5080 = vadd.f32 %v4785, %v5044
      %v5081 = vadd.f32 %v4786, %v5047
      %v5082 = vld [vmem:[%s4787 + $0x1] sm:$0xff]
      %v5083 = vld [vmem:[%s4787 + $0x9] sm:$0xff]
      %v5084 = vld [vmem:[%s4787 + $0x19] sm:$0xff]
      %v5085 = vld [vmem:[%s4787 + $0x21] sm:$0xff]
      %v5086 = vld [vmem:[%s4787 + $0x31] sm:$0xff]
      %v5087 = vld [vmem:[%s4787 + $0x39] sm:$0xff]
      %v5088 = vld [vmem:[%s4787 + $0x49] sm:$0xff]
      %v5089 = vld [vmem:[%s4787 + $0x51] sm:$0xff]
      %v5090 = vld [vmem:[%s4787 + $0x61] sm:$0xff]
      %v5091 = vld [vmem:[%s4787 + $0x69] sm:$0xff]
      %v5092 = vld [vmem:[%s4787 + $0x79] sm:$0xff]
      %v5093 = vld [vmem:[%s4787 + $0x81] sm:$0xff]
      %v5094 = vld [vmem:[%s4787 + $0x91] sm:$0xff]
      %v5095 = vld [vmem:[%s4787 + $0x99] sm:$0xff]
      %v5096 = vld [vmem:[%s4787 + $0xa9] sm:$0xff]
      %v5097 = vld [vmem:[%s4787 + $0xb1] sm:$0xff]
      %v5098 = vld [vmem:[%s4787 + $0xc1] sm:$0xff]
      %v5099 = vld [vmem:[%s4787 + $0xc9] sm:$0xff]
      %v5100 = vld [vmem:[%s4787 + $0xd9] sm:$0xff]
      %v5101 = vld [vmem:[%s4787 + $0xe1] sm:$0xff]
      %v5102 = vld [vmem:[%s4787 + $0xf1] sm:$0xff]
      %v5103 = vld [vmem:[%s4787 + $0xf9] sm:$0xff]
      %v5104 = vld [vmem:[%s4787 + $0x109] sm:$0xff]
      %v5105 = vld [vmem:[%s4787 + $0x111] sm:$0xff]
      %v5106 = vld [vmem:[%s4787 + $0x121] sm:$0xff]
      %v5107 = vld [vmem:[%s4787 + $0x129] sm:$0xff]
      %v5108 = vld [vmem:[%s4787 + $0x139] sm:$0xff]
      %v5109 = vld [vmem:[%s4787 + $0x141] sm:$0xff]
      %v5110 = vld [vmem:[%s4787 + $0x151] sm:$0xff]
      %v5111 = vld [vmem:[%s4787 + $0x159] sm:$0xff]
      %v5112 = vld [vmem:[%s4787 + $0x169] sm:$0xff]
      %v5113 = vld [vmem:[%s4787 + $0x171] sm:$0xff]
      %v5114 = vpack.c.bf16 %v5083, %v5082
      %v5115 = vpack.c.bf16 %v5085, %v5084
      %v5116 = vpack.c.bf16 %v5087, %v5086
      %v5117 = vpack.c.bf16 %v5089, %v5088
      %v5118 = vpack.c.bf16 %v5091, %v5090
      %v5119 = vpack.c.bf16 %v5093, %v5092
      %v5120 = vpack.c.bf16 %v5095, %v5094
      %v5121 = vpack.c.bf16 %v5097, %v5096
      %v5122 = vpack.c.bf16 %v5099, %v5098
      %v5123 = vpack.c.bf16 %v5101, %v5100
      %v5124 = vpack.c.bf16 %v5103, %v5102
      %v5125 = vpack.c.bf16 %v5105, %v5104
      %v5126 = vpack.c.bf16 %v5107, %v5106
      %v5127 = vpack.c.bf16 %v5109, %v5108
      %v5128 = vpack.c.bf16 %v5111, %v5110
      %v5129 = vpack.c.bf16 %v5113, %v5112
      %s5130 = scalar_lea.vmem %s2, 14
      %v5131 = vld [vmem:[%s5130] sm:$0x3]
      %v5133 = vsel %vm226, %v5114, 0
      %v5136 = vsel %vm226, %v5115, 0
      %v5139 = vsel %vm226, %v5116, 0
      %v5142 = vsel %vm226, %v5117, 0
      %v5145 = vsel %vm226, %v5118, 0
      %v5148 = vsel %vm226, %v5119, 0
      %v5151 = vsel %vm226, %v5120, 0
      %v5154 = vsel %vm226, %v5121, 0
      %v5157 = vsel %vm226, %v5122, 0
      %v5160 = vsel %vm226, %v5123, 0
      %v5163 = vsel %vm226, %v5124, 0
      %v5166 = vsel %vm226, %v5125, 0
      %v5169 = vsel %vm226, %v5126, 0
      %v5172 = vsel %vm226, %v5127, 0
      %v5175 = vsel %vm226, %v5128, 0
      %v5178 = vsel %vm226, %v5129, 0
      %v5181 = vsel %vm494, %v5131, 0
      %5183 = vmatprep.subr.bf16.mxu0 0
      %5184 = vmatpush1.bf16.msra.mxu0 0
      %5185 = vmatprep.subr.bf16.mxu0 0
      %5186 = vmatpush1.bf16.msra.mxu0 0
      %5187 = vmatprep.subr.bf16.mxu0 0
      %5188 = vmatpush1.bf16.msra.mxu0 0
      %5189 = vmatprep.subr.bf16.mxu0 0
      %5190 = vmatpush1.bf16.msra.mxu0 0
      %5191 = vmatprep.subr.bf16.mxu0 0
      %5192 = vmatpush1.bf16.msra.mxu0 0
      %5193 = vmatprep.subr.bf16.mxu0 0
      %5194 = vmatpush1.bf16.msra.mxu0 0
      %5195 = vmatprep.subr.bf16.mxu0 0
      %5196 = vmatpush1.bf16.msra.mxu0 0
      %5197 = vmatprep.subr.bf16.mxu0 0
      %5198 = vmatpush1.bf16.msra.mxu0 %v5181
      %5199 = vmatprep.subr.bf16.mxu0 0
      %5200 = vmatpush2.bf16.msra.mxu0 0
      %5201 = vmatprep.subr.bf16.mxu0 0
      %5202 = vmatpush2.bf16.msra.mxu0 0
      %5203 = vmatprep.subr.bf16.mxu0 0
      %5204 = vmatpush2.bf16.msra.mxu0 0
      %5205 = vmatprep.subr.bf16.mxu0 0
      %5206 = vmatpush2.bf16.msra.mxu0 0
      %5207 = vmatprep.subr.bf16.mxu0 0
      %5208 = vmatpush2.bf16.msra.mxu0 0
      %5209 = vmatprep.subr.bf16.mxu0 0
      %5210 = vmatpush2.bf16.msra.mxu0 0
      %5211 = vmatprep.subr.bf16.mxu0 0
      %5212 = vmatpush2.bf16.msra.mxu0 0
      %5213 = vmatprep.subr.bf16.mxu0 0
      %5214 = vmatpush2.bf16.msra.mxu0 0
      %5215 = vmatprep.mubr.bf16.mxu0 0
      %5216 = vmatmul.mubr.bf16.gmra.mxu0 %v5133
      %v5217 = vpop.f32.mrf.mxu0
      %v5218 = vadd.f32 0.0, %v5217
      %v5219 = vpop.f32.mrf.mxu0
      %v5220 = vpop.f32.mrf.mxu0
      %v5221 = vadd.f32 0.0, %v5220
      %v5222 = vpop.f32.mrf.mxu0
      %5223 = vmatprep.mubr.bf16.mxu0 0
      %5224 = vmatmul.mubr.bf16.gmra.mxu0 %v5136
      %v5225 = vpop.f32.mrf.mxu0
      %v5226 = vadd.f32 0.0, %v5225
      %v5227 = vpop.f32.mrf.mxu0
      %v5228 = vpop.f32.mrf.mxu0
      %v5229 = vadd.f32 0.0, %v5228
      %v5230 = vpop.f32.mrf.mxu0
      %5231 = vmatprep.mubr.bf16.mxu0 0
      %5232 = vmatmul.mubr.bf16.gmra.mxu0 %v5139
      %v5233 = vpop.f32.mrf.mxu0
      %v5234 = vadd.f32 0.0, %v5233
      %v5235 = vpop.f32.mrf.mxu0
      %v5236 = vpop.f32.mrf.mxu0
      %v5237 = vadd.f32 0.0, %v5236
      %v5238 = vpop.f32.mrf.mxu0
      %5239 = vmatprep.mubr.bf16.mxu0 0
      %5240 = vmatmul.mubr.bf16.gmra.mxu0 %v5142
      %v5241 = vpop.f32.mrf.mxu0
      %v5242 = vadd.f32 0.0, %v5241
      %v5243 = vpop.f32.mrf.mxu0
      %v5244 = vpop.f32.mrf.mxu0
      %v5245 = vadd.f32 0.0, %v5244
      %v5246 = vpop.f32.mrf.mxu0
      %5247 = vmatprep.mubr.bf16.mxu0 0
      %5248 = vmatmul.mubr.bf16.gmra.mxu0 %v5145
      %v5249 = vpop.f32.mrf.mxu0
      %v5250 = vadd.f32 0.0, %v5249
      %v5251 = vpop.f32.mrf.mxu0
      %v5252 = vpop.f32.mrf.mxu0
      %v5253 = vadd.f32 0.0, %v5252
      %v5254 = vpop.f32.mrf.mxu0
      %5255 = vmatprep.mubr.bf16.mxu0 0
      %5256 = vmatmul.mubr.bf16.gmra.mxu0 %v5148
      %v5257 = vpop.f32.mrf.mxu0
      %v5258 = vadd.f32 0.0, %v5257
      %v5259 = vpop.f32.mrf.mxu0
      %v5260 = vpop.f32.mrf.mxu0
      %v5261 = vadd.f32 0.0, %v5260
      %v5262 = vpop.f32.mrf.mxu0
      %5263 = vmatprep.mubr.bf16.mxu0 0
      %5264 = vmatmul.mubr.bf16.gmra.mxu0 %v5151
      %v5265 = vpop.f32.mrf.mxu0
      %v5266 = vadd.f32 0.0, %v5265
      %v5267 = vpop.f32.mrf.mxu0
      %v5268 = vpop.f32.mrf.mxu0
      %v5269 = vadd.f32 0.0, %v5268
      %v5270 = vpop.f32.mrf.mxu0
      %5271 = vmatprep.mubr.bf16.mxu0 0
      %5272 = vmatmul.mubr.bf16.gmra.mxu0 %v5154
      %v5273 = vpop.f32.mrf.mxu0
      %v5274 = vadd.f32 0.0, %v5273
      %v5275 = vpop.f32.mrf.mxu0
      %v5276 = vpop.f32.mrf.mxu0
      %v5277 = vadd.f32 0.0, %v5276
      %v5278 = vpop.f32.mrf.mxu0
      %5279 = vmatprep.mubr.bf16.mxu0 0
      %5280 = vmatmul.mubr.bf16.gmra.mxu0 %v5157
      %v5281 = vpop.f32.mrf.mxu0
      %v5282 = vadd.f32 0.0, %v5281
      %v5283 = vpop.f32.mrf.mxu0
      %v5284 = vpop.f32.mrf.mxu0
      %v5285 = vadd.f32 0.0, %v5284
      %v5286 = vpop.f32.mrf.mxu0
      %5287 = vmatprep.mubr.bf16.mxu0 0
      %5288 = vmatmul.mubr.bf16.gmra.mxu0 %v5160
      %v5289 = vpop.f32.mrf.mxu0
      %v5290 = vadd.f32 0.0, %v5289
      %v5291 = vpop.f32.mrf.mxu0
      %v5292 = vpop.f32.mrf.mxu0
      %v5293 = vadd.f32 0.0, %v5292
      %v5294 = vpop.f32.mrf.mxu0
      %5295 = vmatprep.mubr.bf16.mxu0 0
      %5296 = vmatmul.mubr.bf16.gmra.mxu0 %v5163
      %v5297 = vpop.f32.mrf.mxu0
      %v5298 = vadd.f32 0.0, %v5297
      %v5299 = vpop.f32.mrf.mxu0
      %v5300 = vpop.f32.mrf.mxu0
      %v5301 = vadd.f32 0.0, %v5300
      %v5302 = vpop.f32.mrf.mxu0
      %5303 = vmatprep.mubr.bf16.mxu0 0
      %5304 = vmatmul.mubr.bf16.gmra.mxu0 %v5166
      %v5305 = vpop.f32.mrf.mxu0
      %v5306 = vadd.f32 0.0, %v5305
      %v5307 = vpop.f32.mrf.mxu0
      %v5308 = vpop.f32.mrf.mxu0
      %v5309 = vadd.f32 0.0, %v5308
      %v5310 = vpop.f32.mrf.mxu0
      %5311 = vmatprep.mubr.bf16.mxu0 0
      %5312 = vmatmul.mubr.bf16.gmra.mxu0 %v5169
      %v5313 = vpop.f32.mrf.mxu0
      %v5314 = vadd.f32 0.0, %v5313
      %v5315 = vpop.f32.mrf.mxu0
      %v5316 = vpop.f32.mrf.mxu0
      %v5317 = vadd.f32 0.0, %v5316
      %v5318 = vpop.f32.mrf.mxu0
      %5319 = vmatprep.mubr.bf16.mxu0 0
      %5320 = vmatmul.mubr.bf16.gmra.mxu0 %v5172
      %v5321 = vpop.f32.mrf.mxu0
      %v5322 = vadd.f32 0.0, %v5321
      %v5323 = vpop.f32.mrf.mxu0
      %v5324 = vpop.f32.mrf.mxu0
      %v5325 = vadd.f32 0.0, %v5324
      %v5326 = vpop.f32.mrf.mxu0
      %5327 = vmatprep.mubr.bf16.mxu0 0
      %5328 = vmatmul.mubr.bf16.gmra.mxu0 %v5175
      %v5329 = vpop.f32.mrf.mxu0
      %v5330 = vadd.f32 0.0, %v5329
      %v5331 = vpop.f32.mrf.mxu0
      %v5332 = vpop.f32.mrf.mxu0
      %v5333 = vadd.f32 0.0, %v5332
      %v5334 = vpop.f32.mrf.mxu0
      %5335 = vmatprep.mubr.bf16.mxu0 0
      %5336 = vmatmul.mubr.bf16.gmra.mxu0 %v5178
      %v5337 = vpop.f32.mrf.mxu0
      %v5338 = vadd.f32 0.0, %v5337
      %v5339 = vpop.f32.mrf.mxu0
      %v5340 = vpop.f32.mrf.mxu0
      %v5341 = vadd.f32 0.0, %v5340
      %v5342 = vpop.f32.mrf.mxu0
      %5343 = vdwg.mxu0
      %v5344 = vadd.f32 %v5050, %v5218
      %v5345 = vadd.f32 %v5051, %v5221
      %v5346 = vadd.f32 %v5052, %v5226
      %v5347 = vadd.f32 %v5053, %v5229
      %v5348 = vadd.f32 %v5054, %v5234
      %v5349 = vadd.f32 %v5055, %v5237
      %v5350 = vadd.f32 %v5056, %v5242
      %v5351 = vadd.f32 %v5057, %v5245
      %v5352 = vadd.f32 %v5058, %v5250
      %v5353 = vadd.f32 %v5059, %v5253
      %v5354 = vadd.f32 %v5060, %v5258
      %v5355 = vadd.f32 %v5061, %v5261
      %v5356 = vadd.f32 %v5062, %v5266
      %v5357 = vadd.f32 %v5063, %v5269
      %v5358 = vadd.f32 %v5064, %v5274
      %v5359 = vadd.f32 %v5065, %v5277
      %v5360 = vadd.f32 %v5066, %v5282
      %v5361 = vadd.f32 %v5067, %v5285
      %v5362 = vadd.f32 %v5068, %v5290
      %v5363 = vadd.f32 %v5069, %v5293
      %v5364 = vadd.f32 %v5070, %v5298
      %v5365 = vadd.f32 %v5071, %v5301
      %v5366 = vadd.f32 %v5072, %v5306
      %v5367 = vadd.f32 %v5073, %v5309
      %v5368 = vadd.f32 %v5074, %v5314
      %v5369 = vadd.f32 %v5075, %v5317
      %v5370 = vadd.f32 %v5076, %v5322
      %v5371 = vadd.f32 %v5077, %v5325
      %v5372 = vadd.f32 %v5078, %v5330
      %v5373 = vadd.f32 %v5079, %v5333
      %v5374 = vadd.f32 %v5080, %v5338
      %v5375 = vadd.f32 %v5081, %v5341
      %v5376 = vld [vmem:[%s4787 + $0x2] sm:$0xff]
      %v5377 = vld [vmem:[%s4787 + $0xa] sm:$0xff]
      %v5378 = vld [vmem:[%s4787 + $0x1a] sm:$0xff]
      %v5379 = vld [vmem:[%s4787 + $0x22] sm:$0xff]
      %v5380 = vld [vmem:[%s4787 + $0x32] sm:$0xff]
      %v5381 = vld [vmem:[%s4787 + $0x3a] sm:$0xff]
      %v5382 = vld [vmem:[%s4787 + $0x4a] sm:$0xff]
      %v5383 = vld [vmem:[%s4787 + $0x52] sm:$0xff]
      %v5384 = vld [vmem:[%s4787 + $0x62] sm:$0xff]
      %v5385 = vld [vmem:[%s4787 + $0x6a] sm:$0xff]
      %v5386 = vld [vmem:[%s4787 + $0x7a] sm:$0xff]
      %v5387 = vld [vmem:[%s4787 + $0x82] sm:$0xff]
      %v5388 = vld [vmem:[%s4787 + $0x92] sm:$0xff]
      %v5389 = vld [vmem:[%s4787 + $0x9a] sm:$0xff]
      %v5390 = vld [vmem:[%s4787 + $0xaa] sm:$0xff]
      %v5391 = vld [vmem:[%s4787 + $0xb2] sm:$0xff]
      %v5392 = vld [vmem:[%s4787 + $0xc2] sm:$0xff]
      %v5393 = vld [vmem:[%s4787 + $0xca] sm:$0xff]
      %v5394 = vld [vmem:[%s4787 + $0xda] sm:$0xff]
      %v5395 = vld [vmem:[%s4787 + $0xe2] sm:$0xff]
      %v5396 = vld [vmem:[%s4787 + $0xf2] sm:$0xff]
      %v5397 = vld [vmem:[%s4787 + $0xfa] sm:$0xff]
      %v5398 = vld [vmem:[%s4787 + $0x10a] sm:$0xff]
      %v5399 = vld [vmem:[%s4787 + $0x112] sm:$0xff]
      %v5400 = vld [vmem:[%s4787 + $0x122] sm:$0xff]
      %v5401 = vld [vmem:[%s4787 + $0x12a] sm:$0xff]
      %v5402 = vld [vmem:[%s4787 + $0x13a] sm:$0xff]
      %v5403 = vld [vmem:[%s4787 + $0x142] sm:$0xff]
      %v5404 = vld [vmem:[%s4787 + $0x152] sm:$0xff]
      %v5405 = vld [vmem:[%s4787 + $0x15a] sm:$0xff]
      %v5406 = vld [vmem:[%s4787 + $0x16a] sm:$0xff]
      %v5407 = vld [vmem:[%s4787 + $0x172] sm:$0xff]
      %v5408 = vpack.c.bf16 %v5377, %v5376
      %v5409 = vpack.c.bf16 %v5379, %v5378
      %v5410 = vpack.c.bf16 %v5381, %v5380
      %v5411 = vpack.c.bf16 %v5383, %v5382
      %v5412 = vpack.c.bf16 %v5385, %v5384
      %v5413 = vpack.c.bf16 %v5387, %v5386
      %v5414 = vpack.c.bf16 %v5389, %v5388
      %v5415 = vpack.c.bf16 %v5391, %v5390
      %v5416 = vpack.c.bf16 %v5393, %v5392
      %v5417 = vpack.c.bf16 %v5395, %v5394
      %v5418 = vpack.c.bf16 %v5397, %v5396
      %v5419 = vpack.c.bf16 %v5399, %v5398
      %v5420 = vpack.c.bf16 %v5401, %v5400
      %v5421 = vpack.c.bf16 %v5403, %v5402
      %v5422 = vpack.c.bf16 %v5405, %v5404
      %v5423 = vpack.c.bf16 %v5407, %v5406
      %s5424 = scalar_lea.vmem %s2, 16
      %v5425 = vld [vmem:[%s5424] sm:$0x3]
      %v5427 = vsel %vm226, %v5408, 0
      %v5430 = vsel %vm226, %v5409, 0
      %v5433 = vsel %vm226, %v5410, 0
      %v5436 = vsel %vm226, %v5411, 0
      %v5439 = vsel %vm226, %v5412, 0
      %v5442 = vsel %vm226, %v5413, 0
      %v5445 = vsel %vm226, %v5414, 0
      %v5448 = vsel %vm226, %v5415, 0
      %v5451 = vsel %vm226, %v5416, 0
      %v5454 = vsel %vm226, %v5417, 0
      %v5457 = vsel %vm226, %v5418, 0
      %v5460 = vsel %vm226, %v5419, 0
      %v5463 = vsel %vm226, %v5420, 0
      %v5466 = vsel %vm226, %v5421, 0
      %v5469 = vsel %vm226, %v5422, 0
      %v5472 = vsel %vm226, %v5423, 0
      %v5475 = vsel %vm494, %v5425, 0
      %5477 = vmatprep.subr.bf16.mxu0 0
      %5478 = vmatpush1.bf16.msra.mxu0 0
      %5479 = vmatprep.subr.bf16.mxu0 0
      %5480 = vmatpush1.bf16.msra.mxu0 0
      %5481 = vmatprep.subr.bf16.mxu0 0
      %5482 = vmatpush1.bf16.msra.mxu0 0
      %5483 = vmatprep.subr.bf16.mxu0 0
      %5484 = vmatpush1.bf16.msra.mxu0 0
      %5485 = vmatprep.subr.bf16.mxu0 0
      %5486 = vmatpush1.bf16.msra.mxu0 0
      %5487 = vmatprep.subr.bf16.mxu0 0
      %5488 = vmatpush1.bf16.msra.mxu0 0
      %5489 = vmatprep.subr.bf16.mxu0 0
      %5490 = vmatpush1.bf16.msra.mxu0 0
      %5491 = vmatprep.subr.bf16.mxu0 0
      %5492 = vmatpush1.bf16.msra.mxu0 %v5475
      %5493 = vmatprep.subr.bf16.mxu0 0
      %5494 = vmatpush2.bf16.msra.mxu0 0
      %5495 = vmatprep.subr.bf16.mxu0 0
      %5496 = vmatpush2.bf16.msra.mxu0 0
      %5497 = vmatprep.subr.bf16.mxu0 0
      %5498 = vmatpush2.bf16.msra.mxu0 0
      %5499 = vmatprep.subr.bf16.mxu0 0
      %5500 = vmatpush2.bf16.msra.mxu0 0
      %5501 = vmatprep.subr.bf16.mxu0 0
      %5502 = vmatpush2.bf16.msra.mxu0 0
      %5503 = vmatprep.subr.bf16.mxu0 0
      %5504 = vmatpush2.bf16.msra.mxu0 0
      %5505 = vmatprep.subr.bf16.mxu0 0
      %5506 = vmatpush2.bf16.msra.mxu0 0
      %5507 = vmatprep.subr.bf16.mxu0 0
      %5508 = vmatpush2.bf16.msra.mxu0 0
      %5509 = vmatprep.mubr.bf16.mxu0 0
      %5510 = vmatmul.mubr.bf16.gmra.mxu0 %v5427
      %v5511 = vpop.f32.mrf.mxu0
      %v5512 = vadd.f32 0.0, %v5511
      %v5513 = vpop.f32.mrf.mxu0
      %v5514 = vpop.f32.mrf.mxu0
      %v5515 = vadd.f32 0.0, %v5514
      %v5516 = vpop.f32.mrf.mxu0
      %5517 = vmatprep.mubr.bf16.mxu0 0
      %5518 = vmatmul.mubr.bf16.gmra.mxu0 %v5430
      %v5519 = vpop.f32.mrf.mxu0
      %v5520 = vadd.f32 0.0, %v5519
      %v5521 = vpop.f32.mrf.mxu0
      %v5522 = vpop.f32.mrf.mxu0
      %v5523 = vadd.f32 0.0, %v5522
      %v5524 = vpop.f32.mrf.mxu0
      %5525 = vmatprep.mubr.bf16.mxu0 0
      %5526 = vmatmul.mubr.bf16.gmra.mxu0 %v5433
      %v5527 = vpop.f32.mrf.mxu0
      %v5528 = vadd.f32 0.0, %v5527
      %v5529 = vpop.f32.mrf.mxu0
      %v5530 = vpop.f32.mrf.mxu0
      %v5531 = vadd.f32 0.0, %v5530
      %v5532 = vpop.f32.mrf.mxu0
      %5533 = vmatprep.mubr.bf16.mxu0 0
      %5534 = vmatmul.mubr.bf16.gmra.mxu0 %v5436
      %v5535 = vpop.f32.mrf.mxu0
      %v5536 = vadd.f32 0.0, %v5535
      %v5537 = vpop.f32.mrf.mxu0
      %v5538 = vpop.f32.mrf.mxu0
      %v5539 = vadd.f32 0.0, %v5538
      %v5540 = vpop.f32.mrf.mxu0
      %5541 = vmatprep.mubr.bf16.mxu0 0
      %5542 = vmatmul.mubr.bf16.gmra.mxu0 %v5439
      %v5543 = vpop.f32.mrf.mxu0
      %v5544 = vadd.f32 0.0, %v5543
      %v5545 = vpop.f32.mrf.mxu0
      %v5546 = vpop.f32.mrf.mxu0
      %v5547 = vadd.f32 0.0, %v5546
      %v5548 = vpop.f32.mrf.mxu0
      %5549 = vmatprep.mubr.bf16.mxu0 0
      %5550 = vmatmul.mubr.bf16.gmra.mxu0 %v5442
      %v5551 = vpop.f32.mrf.mxu0
      %v5552 = vadd.f32 0.0, %v5551
      %v5553 = vpop.f32.mrf.mxu0
      %v5554 = vpop.f32.mrf.mxu0
      %v5555 = vadd.f32 0.0, %v5554
      %v5556 = vpop.f32.mrf.mxu0
      %5557 = vmatprep.mubr.bf16.mxu0 0
      %5558 = vmatmul.mubr.bf16.gmra.mxu0 %v5445
      %v5559 = vpop.f32.mrf.mxu0
      %v5560 = vadd.f32 0.0, %v5559
      %v5561 = vpop.f32.mrf.mxu0
      %v5562 = vpop.f32.mrf.mxu0
      %v5563 = vadd.f32 0.0, %v5562
      %v5564 = vpop.f32.mrf.mxu0
      %5565 = vmatprep.mubr.bf16.mxu0 0
      %5566 = vmatmul.mubr.bf16.gmra.mxu0 %v5448
      %v5567 = vpop.f32.mrf.mxu0
      %v5568 = vadd.f32 0.0, %v5567
      %v5569 = vpop.f32.mrf.mxu0
      %v5570 = vpop.f32.mrf.mxu0
      %v5571 = vadd.f32 0.0, %v5570
      %v5572 = vpop.f32.mrf.mxu0
      %5573 = vmatprep.mubr.bf16.mxu0 0
      %5574 = vmatmul.mubr.bf16.gmra.mxu0 %v5451
      %v5575 = vpop.f32.mrf.mxu0
      %v5576 = vadd.f32 0.0, %v5575
      %v5577 = vpop.f32.mrf.mxu0
      %v5578 = vpop.f32.mrf.mxu0
      %v5579 = vadd.f32 0.0, %v5578
      %v5580 = vpop.f32.mrf.mxu0
      %5581 = vmatprep.mubr.bf16.mxu0 0
      %5582 = vmatmul.mubr.bf16.gmra.mxu0 %v5454
      %v5583 = vpop.f32.mrf.mxu0
      %v5584 = vadd.f32 0.0, %v5583
      %v5585 = vpop.f32.mrf.mxu0
      %v5586 = vpop.f32.mrf.mxu0
      %v5587 = vadd.f32 0.0, %v5586
      %v5588 = vpop.f32.mrf.mxu0
      %5589 = vmatprep.mubr.bf16.mxu0 0
      %5590 = vmatmul.mubr.bf16.gmra.mxu0 %v5457
      %v5591 = vpop.f32.mrf.mxu0
      %v5592 = vadd.f32 0.0, %v5591
      %v5593 = vpop.f32.mrf.mxu0
      %v5594 = vpop.f32.mrf.mxu0
      %v5595 = vadd.f32 0.0, %v5594
      %v5596 = vpop.f32.mrf.mxu0
      %5597 = vmatprep.mubr.bf16.mxu0 0
      %5598 = vmatmul.mubr.bf16.gmra.mxu0 %v5460
      %v5599 = vpop.f32.mrf.mxu0
      %v5600 = vadd.f32 0.0, %v5599
      %v5601 = vpop.f32.mrf.mxu0
      %v5602 = vpop.f32.mrf.mxu0
      %v5603 = vadd.f32 0.0, %v5602
      %v5604 = vpop.f32.mrf.mxu0
      %5605 = vmatprep.mubr.bf16.mxu0 0
      %5606 = vmatmul.mubr.bf16.gmra.mxu0 %v5463
      %v5607 = vpop.f32.mrf.mxu0
      %v5608 = vadd.f32 0.0, %v5607
      %v5609 = vpop.f32.mrf.mxu0
      %v5610 = vpop.f32.mrf.mxu0
      %v5611 = vadd.f32 0.0, %v5610
      %v5612 = vpop.f32.mrf.mxu0
      %5613 = vmatprep.mubr.bf16.mxu0 0
      %5614 = vmatmul.mubr.bf16.gmra.mxu0 %v5466
      %v5615 = vpop.f32.mrf.mxu0
      %v5616 = vadd.f32 0.0, %v5615
      %v5617 = vpop.f32.mrf.mxu0
      %v5618 = vpop.f32.mrf.mxu0
      %v5619 = vadd.f32 0.0, %v5618
      %v5620 = vpop.f32.mrf.mxu0
      %5621 = vmatprep.mubr.bf16.mxu0 0
      %5622 = vmatmul.mubr.bf16.gmra.mxu0 %v5469
      %v5623 = vpop.f32.mrf.mxu0
      %v5624 = vadd.f32 0.0, %v5623
      %v5625 = vpop.f32.mrf.mxu0
      %v5626 = vpop.f32.mrf.mxu0
      %v5627 = vadd.f32 0.0, %v5626
      %v5628 = vpop.f32.mrf.mxu0
      %5629 = vmatprep.mubr.bf16.mxu0 0
      %5630 = vmatmul.mubr.bf16.gmra.mxu0 %v5472
      %v5631 = vpop.f32.mrf.mxu0
      %v5632 = vadd.f32 0.0, %v5631
      %v5633 = vpop.f32.mrf.mxu0
      %v5634 = vpop.f32.mrf.mxu0
      %v5635 = vadd.f32 0.0, %v5634
      %v5636 = vpop.f32.mrf.mxu0
      %5637 = vdwg.mxu0
      %v5638 = vadd.f32 %v5344, %v5512
      %v5639 = vadd.f32 %v5345, %v5515
      %v5640 = vadd.f32 %v5346, %v5520
      %v5641 = vadd.f32 %v5347, %v5523
      %v5642 = vadd.f32 %v5348, %v5528
      %v5643 = vadd.f32 %v5349, %v5531
      %v5644 = vadd.f32 %v5350, %v5536
      %v5645 = vadd.f32 %v5351, %v5539
      %v5646 = vadd.f32 %v5352, %v5544
      %v5647 = vadd.f32 %v5353, %v5547
      %v5648 = vadd.f32 %v5354, %v5552
      %v5649 = vadd.f32 %v5355, %v5555
      %v5650 = vadd.f32 %v5356, %v5560
      %v5651 = vadd.f32 %v5357, %v5563
      %v5652 = vadd.f32 %v5358, %v5568
      %v5653 = vadd.f32 %v5359, %v5571
      %v5654 = vadd.f32 %v5360, %v5576
      %v5655 = vadd.f32 %v5361, %v5579
      %v5656 = vadd.f32 %v5362, %v5584
      %v5657 = vadd.f32 %v5363, %v5587
      %v5658 = vadd.f32 %v5364, %v5592
      %v5659 = vadd.f32 %v5365, %v5595
      %v5660 = vadd.f32 %v5366, %v5600
      %v5661 = vadd.f32 %v5367, %v5603
      %v5662 = vadd.f32 %v5368, %v5608
      %v5663 = vadd.f32 %v5369, %v5611
      %v5664 = vadd.f32 %v5370, %v5616
      %v5665 = vadd.f32 %v5371, %v5619
      %v5666 = vadd.f32 %v5372, %v5624
      %v5667 = vadd.f32 %v5373, %v5627
      %v5668 = vadd.f32 %v5374, %v5632
      %v5669 = vadd.f32 %v5375, %v5635
      %v5670 = vld [vmem:[%s4] sm:$0x1]
      %v5672 = vlaneseq
      %v5673 = vshrl.u32 %v5672, 7
      %v5674 = vsub.s32 0, %v5673
      %v5675 = vrot.slane %v5670, %v5674
      %v5677 = vadd.f32 %v5638, %v5675
      %v5678 = vadd.f32 %v5639, %v5675
      %v5679 = vadd.f32 %v5640, %v5675
      %v5680 = vadd.f32 %v5641, %v5675
      %v5681 = vadd.f32 %v5642, %v5675
      %v5682 = vadd.f32 %v5643, %v5675
      %v5683 = vadd.f32 %v5644, %v5675
      %v5684 = vadd.f32 %v5645, %v5675
      %v5685 = vadd.f32 %v5646, %v5675
      %v5686 = vadd.f32 %v5647, %v5675
      %v5687 = vadd.f32 %v5648, %v5675
      %v5688 = vadd.f32 %v5649, %v5675
      %v5689 = vadd.f32 %v5650, %v5675
      %v5690 = vadd.f32 %v5651, %v5675
      %v5691 = vadd.f32 %v5652, %v5675
      %v5692 = vadd.f32 %v5653, %v5675
      %v5693 = vadd.f32 %v5654, %v5675
      %v5694 = vadd.f32 %v5655, %v5675
      %v5695 = vadd.f32 %v5656, %v5675
      %v5696 = vadd.f32 %v5657, %v5675
      %v5697 = vadd.f32 %v5658, %v5675
      %v5698 = vadd.f32 %v5659, %v5675
      %v5699 = vadd.f32 %v5660, %v5675
      %v5700 = vadd.f32 %v5661, %v5675
      %v5701 = vadd.f32 %v5662, %v5675
      %v5702 = vadd.f32 %v5663, %v5675
      %v5703 = vadd.f32 %v5664, %v5675
      %v5704 = vadd.f32 %v5665, %v5675
      %v5705 = vadd.f32 %v5666, %v5675
      %v5706 = vadd.f32 %v5667, %v5675
      %v5707 = vadd.f32 %v5668, %v5675
      %v5708 = vadd.f32 %v5669, %v5675
      %v5709 = vld [vmem:[%s219] sm:$0xff]
      %v5710 = vld [vmem:[%s219 + $0x8] sm:$0xff]
      %v5711 = vld [vmem:[%s219 + $0x10] sm:$0xff]
      %v5712 = vld [vmem:[%s219 + $0x18] sm:$0xff]
      %v5713 = vld [vmem:[%s219 + $0x20] sm:$0xff]
      %v5714 = vld [vmem:[%s219 + $0x28] sm:$0xff]
      %v5715 = vld [vmem:[%s219 + $0x30] sm:$0xff]
      %v5716 = vld [vmem:[%s219 + $0x38] sm:$0xff]
      %v5717 = vld [vmem:[%s219 + $0x40] sm:$0xff]
      %v5718 = vld [vmem:[%s219 + $0x48] sm:$0xff]
      %v5719 = vld [vmem:[%s219 + $0x50] sm:$0xff]
      %v5720 = vld [vmem:[%s219 + $0x58] sm:$0xff]
      %v5721 = vld [vmem:[%s219 + $0x60] sm:$0xff]
      %v5722 = vld [vmem:[%s219 + $0x68] sm:$0xff]
      %v5723 = vld [vmem:[%s219 + $0x70] sm:$0xff]
      %v5724 = vld [vmem:[%s219 + $0x78] sm:$0xff]
      %v5725 = vld [vmem:[%s219 + $0x80] sm:$0xff]
      %v5726 = vld [vmem:[%s219 + $0x88] sm:$0xff]
      %v5727 = vld [vmem:[%s219 + $0x90] sm:$0xff]
      %v5728 = vld [vmem:[%s219 + $0x98] sm:$0xff]
      %v5729 = vld [vmem:[%s219 + $0xa0] sm:$0xff]
      %v5730 = vld [vmem:[%s219 + $0xa8] sm:$0xff]
      %v5731 = vld [vmem:[%s219 + $0xb0] sm:$0xff]
      %v5732 = vld [vmem:[%s219 + $0xb8] sm:$0xff]
      %v5733 = vld [vmem:[%s219 + $0xc0] sm:$0xff]
      %v5734 = vld [vmem:[%s219 + $0xc8] sm:$0xff]
      %v5735 = vld [vmem:[%s219 + $0xd0] sm:$0xff]
      %v5736 = vld [vmem:[%s219 + $0xd8] sm:$0xff]
      %v5737 = vld [vmem:[%s219 + $0xe0] sm:$0xff]
      %v5738 = vld [vmem:[%s219 + $0xe8] sm:$0xff]
      %v5739 = vld [vmem:[%s219 + $0xf0] sm:$0xff]
      %v5740 = vld [vmem:[%s219 + $0xf8] sm:$0xff]
      %v5741 = vadd.f32 %v5677, %v5709
      %v5742 = vadd.f32 %v5678, %v5710
      %v5743 = vadd.f32 %v5679, %v5711
      %v5744 = vadd.f32 %v5680, %v5712
      %v5745 = vadd.f32 %v5681, %v5713
      %v5746 = vadd.f32 %v5682, %v5714
      %v5747 = vadd.f32 %v5683, %v5715
      %v5748 = vadd.f32 %v5684, %v5716
      %v5749 = vadd.f32 %v5685, %v5717
      %v5750 = vadd.f32 %v5686, %v5718
      %v5751 = vadd.f32 %v5687, %v5719
      %v5752 = vadd.f32 %v5688, %v5720
      %v5753 = vadd.f32 %v5689, %v5721
      %v5754 = vadd.f32 %v5690, %v5722
      %v5755 = vadd.f32 %v5691, %v5723
      %v5756 = vadd.f32 %v5692, %v5724
      %v5757 = vadd.f32 %v5693, %v5725
      %v5758 = vadd.f32 %v5694, %v5726
      %v5759 = vadd.f32 %v5695, %v5727
      %v5760 = vadd.f32 %v5696, %v5728
      %v5761 = vadd.f32 %v5697, %v5729
      %v5762 = vadd.f32 %v5698, %v5730
      %v5763 = vadd.f32 %v5699, %v5731
      %v5764 = vadd.f32 %v5700, %v5732
      %v5765 = vadd.f32 %v5701, %v5733
      %v5766 = vadd.f32 %v5702, %v5734
      %v5767 = vadd.f32 %v5703, %v5735
      %v5768 = vadd.f32 %v5704, %v5736
      %v5769 = vadd.f32 %v5705, %v5737
      %v5770 = vadd.f32 %v5706, %v5738
      %v5771 = vadd.f32 %v5707, %v5739
      %v5772 = vadd.f32 %v5708, %v5740
      %v5773 = vmax.f32 %v5741, 0.0
      %v5774 = vmax.f32 %v5742, 0.0
      %v5775 = vmax.f32 %v5743, 0.0
      %v5776 = vmax.f32 %v5744, 0.0
      %v5777 = vmax.f32 %v5745, 0.0
      %v5778 = vmax.f32 %v5746, 0.0
      %v5779 = vmax.f32 %v5747, 0.0
      %v5780 = vmax.f32 %v5748, 0.0
      %v5781 = vmax.f32 %v5749, 0.0
      %v5782 = vmax.f32 %v5750, 0.0
      %v5783 = vmax.f32 %v5751, 0.0
      %v5784 = vmax.f32 %v5752, 0.0
      %v5785 = vmax.f32 %v5753, 0.0
      %v5786 = vmax.f32 %v5754, 0.0
      %v5787 = vmax.f32 %v5755, 0.0
      %v5788 = vmax.f32 %v5756, 0.0
      %v5789 = vmax.f32 %v5757, 0.0
      %v5790 = vmax.f32 %v5758, 0.0
      %v5791 = vmax.f32 %v5759, 0.0
      %v5792 = vmax.f32 %v5760, 0.0
      %v5793 = vmax.f32 %v5761, 0.0
      %v5794 = vmax.f32 %v5762, 0.0
      %v5795 = vmax.f32 %v5763, 0.0
      %v5796 = vmax.f32 %v5764, 0.0
      %v5797 = vmax.f32 %v5765, 0.0
      %v5798 = vmax.f32 %v5766, 0.0
      %v5799 = vmax.f32 %v5767, 0.0
      %v5800 = vmax.f32 %v5768, 0.0
      %v5801 = vmax.f32 %v5769, 0.0
      %v5802 = vmax.f32 %v5770, 0.0
      %v5803 = vmax.f32 %v5771, 0.0
      %v5804 = vmax.f32 %v5772, 0.0
      %5805 = vst.msk [vmem:[%s224] sm:$0xff] %vm226, %v5773
      %5806 = vst.msk [vmem:[%s224 + $0x8] sm:$0xff] %vm226, %v5774
      %5807 = vst.msk [vmem:[%s224 + $0x10] sm:$0xff] %vm226, %v5775
      %5808 = vst.msk [vmem:[%s224 + $0x18] sm:$0xff] %vm226, %v5776
      %5809 = vst.msk [vmem:[%s224 + $0x20] sm:$0xff] %vm226, %v5777
      %5810 = vst.msk [vmem:[%s224 + $0x28] sm:$0xff] %vm226, %v5778
      %5811 = vst.msk [vmem:[%s224 + $0x30] sm:$0xff] %vm226, %v5779
      %5812 = vst.msk [vmem:[%s224 + $0x38] sm:$0xff] %vm226, %v5780
      %5813 = vst.msk [vmem:[%s224 + $0x40] sm:$0xff] %vm226, %v5781
      %5814 = vst.msk [vmem:[%s224 + $0x48] sm:$0xff] %vm226, %v5782
      %5815 = vst.msk [vmem:[%s224 + $0x50] sm:$0xff] %vm226, %v5783
      %5816 = vst.msk [vmem:[%s224 + $0x58] sm:$0xff] %vm226, %v5784
      %5817 = vst.msk [vmem:[%s224 + $0x60] sm:$0xff] %vm226, %v5785
      %5818 = vst.msk [vmem:[%s224 + $0x68] sm:$0xff] %vm226, %v5786
      %5819 = vst.msk [vmem:[%s224 + $0x70] sm:$0xff] %vm226, %v5787
      %5820 = vst.msk [vmem:[%s224 + $0x78] sm:$0xff] %vm226, %v5788
      %5821 = vst.msk [vmem:[%s224 + $0x80] sm:$0xff] %vm226, %v5789
      %5822 = vst.msk [vmem:[%s224 + $0x88] sm:$0xff] %vm226, %v5790
      %5823 = vst.msk [vmem:[%s224 + $0x90] sm:$0xff] %vm226, %v5791
      %5824 = vst.msk [vmem:[%s224 + $0x98] sm:$0xff] %vm226, %v5792
      %5825 = vst.msk [vmem:[%s224 + $0xa0] sm:$0xff] %vm226, %v5793
      %5826 = vst.msk [vmem:[%s224 + $0xa8] sm:$0xff] %vm226, %v5794
      %5827 = vst.msk [vmem:[%s224 + $0xb0] sm:$0xff] %vm226, %v5795
      %5828 = vst.msk [vmem:[%s224 + $0xb8] sm:$0xff] %vm226, %v5796
      %5829 = vst.msk [vmem:[%s224 + $0xc0] sm:$0xff] %vm226, %v5797
      %5830 = vst.msk [vmem:[%s224 + $0xc8] sm:$0xff] %vm226, %v5798
      %5831 = vst.msk [vmem:[%s224 + $0xd0] sm:$0xff] %vm226, %v5799
      %5832 = vst.msk [vmem:[%s224 + $0xd8] sm:$0xff] %vm226, %v5800
      %5833 = vst.msk [vmem:[%s224 + $0xe0] sm:$0xff] %vm226, %v5801
      %5834 = vst.msk [vmem:[%s224 + $0xe8] sm:$0xff] %vm226, %v5802
      %5835 = vst.msk [vmem:[%s224 + $0xf0] sm:$0xff] %vm226, %v5803
      %5836 = vst.msk [vmem:[%s224 + $0xf8] sm:$0xff] %vm226, %v5804
      %p5837 = scmp.lt.s32.totalorder %s16, 1
      %s5838 = scalar_select %p5837, %s16, 1
      %s5839 = smul.addr %s5838, 32
      %s5840 = smul.addr %s5839, 8
      %s5841 = scalar_lea.vmem %s5, %s5840
      // Predicated region
      $region41: #{basic_block_forward.1} parent=39 // pred_check
        %p5842 = pneg %p144
      $region42: #{basic_block_forward.1} parent=39 // pred_check_branch
        %5844 = sbr.rel (%p5842) target = $region44
      $region43: #{basic_block_forward.1} parent=39 // pred_region
        _
      $region44: #{basic_block_forward.1} parent=39 // pred_fallthru
        _
    $region40: #{basic_block_forward.1} parent=5 // pred_fallthru
      _
    %p5845 = scmp.le.s32.totalorder 2, %s11
    // Predicated region
    $region45: #{basic_block_forward.1} parent=5 // pred_check
      %p5846 = pneg %p5845
    $region46: #{basic_block_forward.1} parent=5 // pred_check_branch
      %5848 = sbr.rel (%p5846) target = $region48
    $region47: #{basic_block_forward.1} parent=5 // pred_region
      %s5849 = ssub.s32 %s11, 2
      // Predicated region
      $region49: #{basic_block_forward.1} parent=47 // pred_check
        %p5850 = pneg %p150
      $region50: #{basic_block_forward.1} parent=47 // pred_check_branch
        %5852 = sbr.rel (%p5850) target = $region52
      $region51: #{basic_block_forward.1} parent=47 // pred_region
        %p5853 = scmp.lt.s32.totalorder %s17, 1
        %s5854 = scalar_select %p5853, %s17, 1
        %s5855 = smul.addr %s5854, 32
        %s5856 = smul.addr %s5855, 8
        %s5857 = scalar_lea.vmem %s5, %s5856
      $region52: #{basic_block_forward.1} parent=47 // pred_fallthru
        _
    $region48: #{basic_block_forward.1} parent=5 // pred_fallthru
      _
  $region6: #{basic_block_forward.1} parent=0 // loop_footer
    %s15 = sadd.s32 1, %s11
  $region7: #{basic_block_forward.1} parent=0 // loop_footer_branch
    %10 = sbr.rel target = $region3
  $region8: #{basic_block_forward.1} parent=0 // loop_exit
    _

</llo_original>
